<compile_context>
chip_gen: v5e
topology: v5e:2x2
jax: 0.10.0
libtpu: 0.0.40
codegen_flags: <defaults>
</compile_context>

<pallas_src>
import numpy as np
import jax
import jax.numpy as jnp
from jax.experimental import pallas as pl
from jax.experimental.pallas import tpu as pltpu

BN_EPS = 1e-5
LRELU_SLOPE = 0.1
HID = 256          # conv1_lab output channels
ZP = 128           # lane-padded width of each head (mu / var); HID == 2*ZP


def _qhead_kernel(x_ref, w1_ref, vecs_ref, wh_ref, out_ref):
    """K-streamed fused forward (single step when tk == K).

    grid axis 0 walks the contraction (K) dimension of the collapsed 8x8 conv.
      x_ref   : (N, tk)       f32   input tile (cast to bf16 on the VPU here)
      w1_ref  : (tk, 256)     bf16  conv1_lab weight tile
      vecs_ref: (3, 256)      f32   rows: gamma, beta, fused-head bias [bmu|bvar]
      wh_ref  : (256, 256)    bf16  fused head weight [W_mu | W_var]
      out_ref : (N, 256)      f32   resident accumulator -> final [mu | exp(logvar)]
    """
    k = pl.program_id(0)

    @pl.when(k == 0)
    def _():
        out_ref[...] = jnp.zeros_like(out_ref)

    # conv1_lab (8x8 valid conv == full contraction): bf16 MXU, f32 accumulate
    # directly into the resident output block.
    out_ref[...] += jnp.dot(x_ref[...].astype(jnp.bfloat16), w1_ref[...],
                            preferred_element_type=jnp.float32)

    @pl.when(k == pl.num_programs(0) - 1)
    def _():
        h = out_ref[...]                                            # (N, 256) f32

        # bn1_lab: BatchNorm2d(256), default training mode -> batch statistics,
        # biased variance, eps=1e-5, affine gamma/beta.  All in f32 (VPU).
        # NOTE: eval()-mode running stats are NOT modeled (matches module default).
        mean = jnp.mean(h, axis=0, keepdims=True)
        diff = h - mean
        var = jnp.mean(diff * diff, axis=0, keepdims=True)

        vecs = vecs_ref[...]
        gamma = vecs[0:1, :]
        beta = vecs[1:2, :]
        hbias = vecs[2:3, :]                                        # [bmu | bvar]

        h = diff * jax.lax.rsqrt(var + BN_EPS) * gamma + beta

        # F.leaky_relu(., 0.1)
        h = jnp.where(h >= 0.0, h, LRELU_SLOPE * h)

        # Fused conv_mu_lab | conv_var_lab (1x1 convs == matmul + bias); one
        # 256-wide MXU dot + one lane-dense 256-wide output store.
        z = jnp.dot(h.astype(jnp.bfloat16), wh_ref[...],
                    preferred_element_type=jnp.float32) + hbias      # (N, 256)

        # lanes [0, ZP) = mu, lanes [ZP, 2*ZP) = exp(logvar) (EUP, free slot).
        # exp() is also evaluated on the mu lanes; jnp.where is a *select*, so
        # any inf produced there is safely discarded -- do not replace with
        # arithmetic masking.
        lane = jax.lax.broadcasted_iota(jnp.int32, z.shape, 1)
        out_ref[...] = jnp.where(lane < ZP, z, jnp.exp(z))


def init_params(key, ndf, z_dim_lab):
    """PyTorch-layout parameters (as the nn.Module would hold them)."""
    c_in = ndf * 4
    k1, k2, k3, k4, k5 = jax.random.split(key, 5)
    fan1 = c_in * 8 * 8
    return {
        # conv1_lab: Conv2d(ndf*4, 256, 8, bias=False)
        "conv1_w": jax.random.normal(k1, (HID, c_in, 8, 8), jnp.float32) / np.sqrt(fan1),
        # bn1_lab affine params (PyTorch init: gamma=1, beta=0)
        "gamma": jnp.ones((HID,), jnp.float32),
        "beta": jnp.zeros((HID,), jnp.float32),
        # conv_mu_lab: Conv2d(256, z_dim_lab, 1)
        "mu_w": jax.random.normal(k2, (z_dim_lab, HID, 1, 1), jnp.float32) / np.sqrt(HID),
        "mu_b": 0.01 * jax.random.normal(k3, (z_dim_lab,), jnp.float32),
        # conv_var_lab: Conv2d(256, z_dim_lab, 1)
        "var_w": jax.random.normal(k4, (z_dim_lab, HID, 1, 1), jnp.float32) / np.sqrt(HID),
        "var_b": 0.01 * jax.random.normal(k5, (z_dim_lab,), jnp.float32),
    }


def pack_params(params, z_dim_lab):
    """One-time layout packing (OFF the hot path): transpose / pad / fuse / bf16."""
    assert HID == 2 * ZP
    assert 0 < z_dim_lab <= ZP, f"z_dim_lab={z_dim_lab} must be in (0, {ZP}]"
    out_c, c_in, kh, kw = params["conv1_w"].shape
    K = c_in * kh * kw
    w1 = params["conv1_w"].reshape(HID, K).T.astype(jnp.bfloat16)          # (K, 256)

    def head(w, b):
        wt = w.reshape(z_dim_lab, HID).T                                    # (256, Z)
        wt = jnp.pad(wt, ((0, 0), (0, ZP - z_dim_lab)))
        bp = jnp.pad(b.reshape(z_dim_lab), (0, ZP - z_dim_lab))
        return wt, bp

    wmu, bmu = head(params["mu_w"], params["mu_b"])
    wvar, bvar = head(params["var_w"], params["var_b"])
    wh = jnp.concatenate([wmu, wvar], axis=1).astype(jnp.bfloat16)          # (256, 256)
    vecs = jnp.stack([params["gamma"].reshape(HID).astype(jnp.float32),
                      params["beta"].reshape(HID).astype(jnp.float32),
                      jnp.concatenate([bmu, bvar], axis=0).astype(jnp.float32)],
                     axis=0)                                                # (3, 256)
    return {"w1": w1, "wh": wh, "vecs": vecs}


def bigan_qhead_discriminator(x_nchw, packed, z_dim_lab):
    N, C, H, W = x_nchw.shape
    assert H == 8 and W == 8, "conv1_lab(kernel=8, valid) expects 8x8 spatial input"
    K = C * H * W

    # contiguous NCHW -> (N, K) is a free reshape; stays f32 (cast happens in-kernel).
    x2d = x_nchw.reshape(N, K)

    # Single grid step whenever the double-buffered bf16 w1 tile fits a 16 MiB
    # budget (K <= ~16K covers every realistic ndf).  Larger-K fallback keeps
    # tk as big as possible; K = ndf*4*64 is always a multiple of 256.
    if 2 * K * HID * 2 <= 16 * 1024 * 1024:
        tk = K
    else:
        tk = next((t for t in (8192, 4096, 2048, 1024, 512, 256) if K % t == 0), K)
    num_steps = K // tk
    grid = (num_steps,)

    # Deepen the w1 pipeline only when the K grid is actually long (irrelevant
    # once tk == K).
    if num_steps > 2:
        w1_spec = pl.BlockSpec((tk, HID), lambda k: (k, 0),
                               pipeline_mode=pl.Buffered(3))
    else:
        w1_spec = pl.BlockSpec((tk, HID), lambda k: (k, 0))

    cost = pl.CostEstimate(
        flops=2 * N * K * HID + 2 * N * HID * (2 * ZP),
        transcendentals=N * 2 * ZP,
        bytes_accessed=(N * K * 4 + K * HID * 2 + HID * 2 * ZP * 2
                        + 3 * HID * 4 + N * 2 * ZP * 4),
    )

    out = pl.pallas_call(
        _qhead_kernel,
        out_shape=jax.ShapeDtypeStruct((N, 2 * ZP), jnp.float32),
        grid_spec=pltpu.PrefetchScalarGridSpec(
            num_scalar_prefetch=0,
            grid=grid,
            in_specs=[
                pl.BlockSpec((N, tk), lambda k: (0, k)),          # x tile (f32)
                w1_spec,                                          # w1 tile (bf16)
                pl.BlockSpec((3, HID), lambda k: (0, 0)),         # gamma/beta/bias
                pl.BlockSpec((HID, 2 * ZP), lambda k: (0, 0)),    # fused head weight
            ],
            out_specs=pl.BlockSpec((N, 2 * ZP), lambda k: (0, 0)),
        ),
        compiler_params=pltpu.CompilerParams(
            dimension_semantics=("arbitrary",),          # K is a reduction axis
            vmem_limit_bytes=24 * 1024 * 1024,
        ),
        cost_estimate=cost,
    )(x2d, packed["w1"], packed["vecs"], packed["wh"])

    # .squeeze() on (N, Z, 1, 1) -> (N, Z)  (N > 1 here)
    mu_lab = out[:, :z_dim_lab]
    var_lab = out[:, ZP:ZP + z_dim_lab]
    return mu_lab, var_lab, 0, 0


def _reference(x_nchw, params, z_dim_lab):
    """Pure-JAX reference mirroring the kernel's precision strategy
    (bf16 matmul operands, f32 accumulate, f32 BN / leaky_relu / exp)."""
    N, C, H, W = x_nchw.shape
    x2d = x_nchw.reshape(N, C * H * W)
    w1 = params["conv1_w"].reshape(HID, -1).T
    h = jnp.dot(x2d.astype(jnp.bfloat16), w1.astype(jnp.bfloat16),
                preferred_element_type=jnp.float32)
    mean = jnp.mean(h, axis=0, keepdims=True)
    var = jnp.mean((h - mean) ** 2, axis=0, keepdims=True)
    h = (h - mean) * jax.lax.rsqrt(var + BN_EPS)
    h = h * params["gamma"][None, :] + params["beta"][None, :]
    h = jnp.where(h >= 0, h, LRELU_SLOPE * h)
    hb = h.astype(jnp.bfloat16)
    wmu = params["mu_w"].reshape(z_dim_lab, HID).T.astype(jnp.bfloat16)
    wvar = params["var_w"].reshape(z_dim_lab, HID).T.astype(jnp.bfloat16)
    mu = jnp.dot(hb, wmu, preferred_element_type=jnp.float32) + params["mu_b"][None, :]
    lv = jnp.dot(hb, wvar, preferred_element_type=jnp.float32) + params["var_b"][None, :]
    return mu, jnp.exp(lv)


if __name__ == "__main__":
    ndf = 16          # conv1 input channels = ndf*4 = 64 -> K = 4096
    z_dim_lab = 10
    N = 2             # NOTE: BN uses training-mode batch statistics over these N rows.

    key = jax.random.PRNGKey(0)
    kx, kp = jax.random.split(key)
    x = jax.random.normal(kx, (N, ndf * 4, 8, 8), jnp.float32)
    params = init_params(kp, ndf, z_dim_lab)
    packed = pack_params(params, z_dim_lab)   # one-time layout / bf16 packing

    fwd = jax.jit(lambda xx: bigan_qhead_discriminator(xx, packed, z_dim_lab))
    mu, var, a, b = fwd(x)
    jax.block_until_ready((mu, var))

    mu_ref, var_ref = _reference(x, params, z_dim_lab)
    assert mu.shape == (N, z_dim_lab) and var.shape == (N, z_dim_lab)
    np.testing.assert_allclose(np.asarray(mu), np.asarray(mu_ref), rtol=1e-2, atol=1e-2)
    np.testing.assert_allclose(np.asarray(var), np.asarray(var_ref), rtol=1e-2, atol=1e-2)
    assert int(a) == 0 and int(b) == 0

    print("KERNEL_OK")
</pallas_src>

<mosaic_0001>
module attributes {stable_mosaic.version = 11 : i64} {
  func.func @_qhead_kernel(%arg0: i32, %arg1: memref<2x4096xf32, #tpu.memory_space<vmem>>, %arg2: memref<4096x256xbf16, #tpu.memory_space<vmem>>, %arg3: memref<3x256xf32, #tpu.memory_space<vmem>>, %arg4: memref<256x256xbf16, #tpu.memory_space<vmem>>, %arg5: memref<2x256xf32, #tpu.memory_space<vmem>>) attributes {dimension_semantics = [#tpu.dimension_semantics<arbitrary>], iteration_bounds = array<i64: 1>, scalar_prefetch = 0 : i64, scratch_operands = 0 : i64, tpu.core_type = #tpu.core_type<tc>, window_params = [{transform_indices = @transform_0, window_bounds = array<i64: 2, 4096>}, {transform_indices = @transform_1, window_bounds = array<i64: 4096, 256>}, {pipeline_mode = #tpu.pipeline_mode<synchronous>, transform_indices = @transform_2, window_bounds = array<i64: 3, 256>}, {pipeline_mode = #tpu.pipeline_mode<synchronous>, transform_indices = @transform_3, window_bounds = array<i64: 256, 256>}, {pipeline_mode = #tpu.pipeline_mode<synchronous>, transform_indices = @transform_4, window_bounds = array<i64: 2, 256>}]} {
    %c0_i32 = arith.constant 0 : i32
    %0 = arith.cmpi eq, %arg0, %c0_i32 : i32
    %1 = arith.extui %0 : i1 to i32
    %c0_i32_0 = arith.constant 0 : i32
    %2 = arith.cmpi ne, %1, %c0_i32_0 : i32
    scf.if %2 {
      %cst_10 = arith.constant 0.000000e+00 : f32
      %13 = vector.broadcast %cst_10 : f32 to vector<2x256xf32>
      %c0_11 = arith.constant 0 : index
      %c0_12 = arith.constant 0 : index
      %14 = vector.load %arg5[%c0_11, %c0_12] : memref<2x256xf32, #tpu.memory_space<vmem>>, vector<2x256xf32>
      tpu.vector_store %arg5[%c0_11, %c0_12], %13 {strides = array<i32>} : memref<2x256xf32, #tpu.memory_space<vmem>>, vector<2x256xf32>,
    } else {
    }
    %c0 = arith.constant 0 : index
    %c0_1 = arith.constant 0 : index
    %3 = vector.load %arg5[%c0, %c0_1] : memref<2x256xf32, #tpu.memory_space<vmem>>, vector<2x256xf32>
    %c0_2 = arith.constant 0 : index
    %c0_3 = arith.constant 0 : index
    %4 = vector.load %arg1[%c0_2, %c0_3] : memref<2x4096xf32, #tpu.memory_space<vmem>>, vector<2x4096xf32>
    %5 = arith.truncf %4 : vector<2x4096xf32> to vector<2x4096xbf16>
    %c0_4 = arith.constant 0 : index
    %c0_5 = arith.constant 0 : index
    %6 = vector.load %arg2[%c0_4, %c0_5] : memref<4096x256xbf16, #tpu.memory_space<vmem>>, vector<4096x256xbf16>
    %cst = arith.constant dense<0.000000e+00> : vector<2x256xf32>
    %7 = tpu.matmul %5, %6, %cst {dimension_numbers = #tpu.dot_dimension_numbers<[1], [0], [0], [1], [0, 0, 1, 1], [], []>} : vector<2x4096xbf16>, vector<4096x256xbf16>, vector<2x256xf32> -> vector<2x256xf32>
    %8 = arith.addf %3, %7 : vector<2x256xf32>
    %c0_6 = arith.constant 0 : index
    %c0_7 = arith.constant 0 : index
    %9 = vector.load %arg5[%c0_6, %c0_7] : memref<2x256xf32, #tpu.memory_space<vmem>>, vector<2x256xf32>
    tpu.vector_store %arg5[%c0_6, %c0_7], %8 {strides = array<i32>} : memref<2x256xf32, #tpu.memory_space<vmem>>, vector<2x256xf32>,
    %c0_i32_8 = arith.constant 0 : i32
    %10 = arith.cmpi eq, %arg0, %c0_i32_8 : i32
    %11 = arith.extui %10 : i1 to i32
    %c0_i32_9 = arith.constant 0 : i32
    %12 = arith.cmpi ne, %11, %c0_i32_9 : i32
    scf.if %12 {
      %c0_10 = arith.constant 0 : index
      %c0_11 = arith.constant 0 : index
      %13 = vector.load %arg5[%c0_10, %c0_11] : memref<2x256xf32, #tpu.memory_space<vmem>>, vector<2x256xf32>
      %cst_12 = arith.constant dense<0.000000e+00> : vector<256xf32>
      %14 = vector.multi_reduction <add>, %13, %cst_12 [0] : vector<2x256xf32> to vector<256xf32>
      %15 = vector.shape_cast %14 : vector<256xf32> to vector<1x256xf32>
      %cst_13 = arith.constant 2.000000e+00 : f32
      %16 = vector.broadcast %cst_13 : f32 to vector<1x256xf32>
      %17 = arith.divf %15, %16 : vector<1x256xf32>
      %18 = vector.broadcast %17 : vector<1x256xf32> to vector<2x256xf32>
      %19 = arith.subf %13, %18 : vector<2x256xf32>
      %20 = arith.mulf %19, %19 : vector<2x256xf32>
      %cst_14 = arith.constant dense<0.000000e+00> : vector<256xf32>
      %21 = vector.multi_reduction <add>, %20, %cst_14 [0] : vector<2x256xf32> to vector<256xf32>
      %22 = vector.shape_cast %21 : vector<256xf32> to vector<1x256xf32>
      %cst_15 = arith.constant 2.000000e+00 : f32
      %23 = vector.broadcast %cst_15 : f32 to vector<1x256xf32>
      %24 = arith.divf %22, %23 : vector<1x256xf32>
      %c0_16 = arith.constant 0 : index
      %c0_17 = arith.constant 0 : index
      %25 = vector.load %arg3[%c0_16, %c0_17] : memref<3x256xf32, #tpu.memory_space<vmem>>, vector<3x256xf32>
      %26 = vector.extract_strided_slice %25 {offsets = [0, 0], sizes = [1, 256], strides = [1, 1]} : vector<3x256xf32> to vector<1x256xf32>
      %27 = vector.extract_strided_slice %25 {offsets = [1, 0], sizes = [1, 256], strides = [1, 1]} : vector<3x256xf32> to vector<1x256xf32>
      %28 = vector.extract_strided_slice %25 {offsets = [2, 0], sizes = [1, 256], strides = [1, 1]} : vector<3x256xf32> to vector<1x256xf32>
      %cst_18 = arith.constant 9.99999974E-6 : f32
      %29 = vector.broadcast %cst_18 : f32 to vector<1x256xf32>
      %30 = arith.addf %24, %29 : vector<1x256xf32>
      %31 = math.rsqrt %30 : vector<1x256xf32>
      %32 = vector.broadcast %31 : vector<1x256xf32> to vector<2x256xf32>
      %33 = arith.mulf %19, %32 : vector<2x256xf32>
      %34 = vector.broadcast %26 : vector<1x256xf32> to vector<2x256xf32>
      %35 = arith.mulf %33, %34 : vector<2x256xf32>
      %36 = vector.broadcast %27 : vector<1x256xf32> to vector<2x256xf32>
      %37 = arith.addf %35, %36 : vector<2x256xf32>
      %cst_19 = arith.constant 0.000000e+00 : f32
      %38 = vector.broadcast %cst_19 : f32 to vector<2x256xf32>
      %39 = arith.cmpf oge, %37, %38 : vector<2x256xf32>
      %cst_20 = arith.constant 1.000000e-01 : f32
      %40 = vector.broadcast %cst_20 : f32 to vector<2x256xf32>
      %41 = arith.mulf %40, %37 : vector<2x256xf32>
      %42 = arith.select %39, %37, %41 : vector<2x256xi1>, vector<2x256xf32>
      %43 = arith.truncf %42 : vector<2x256xf32> to vector<2x256xbf16>
      %c0_21 = arith.constant 0 : index
      %c0_22 = arith.constant 0 : index
      %44 = vector.load %arg4[%c0_21, %c0_22] : memref<256x256xbf16, #tpu.memory_space<vmem>>, vector<256x256xbf16>
      %cst_23 = arith.constant dense<0.000000e+00> : vector<2x256xf32>
      %45 = tpu.matmul %43, %44, %cst_23 {dimension_numbers = #tpu.dot_dimension_numbers<[1], [0], [0], [1], [0, 0, 1, 1], [], []>} : vector<2x256xbf16>, vector<256x256xbf16>, vector<2x256xf32> -> vector<2x256xf32>
      %46 = vector.broadcast %28 : vector<1x256xf32> to vector<2x256xf32>
      %47 = arith.addf %45, %46 : vector<2x256xf32>
      %48 = tpu.iota {dimensions = array<i32: 1>} : vector<2x256xi32>
      %c128_i32 = arith.constant 128 : i32
      %49 = vector.broadcast %c128_i32 : i32 to vector<2x256xi32>
      %50 = arith.cmpi slt, %48, %49 : vector<2x256xi32>
      %51 = math.exp %47 : vector<2x256xf32>
      %52 = arith.select %50, %47, %51 : vector<2x256xi1>, vector<2x256xf32>
      %c0_24 = arith.constant 0 : index
      %c0_25 = arith.constant 0 : index
      %53 = vector.load %arg5[%c0_24, %c0_25] : memref<2x256xf32, #tpu.memory_space<vmem>>, vector<2x256xf32>
      tpu.vector_store %arg5[%c0_24, %c0_25], %52 {strides = array<i32>} : memref<2x256xf32, #tpu.memory_space<vmem>>, vector<2x256xf32>,
    } else {
    }
    return
  }
  func.func @transform_0(%arg0: i32) -> (i32, i32) {
    %c0_i32 = arith.constant 0 : i32
    %c0_i32_0 = arith.constant 0 : i32
    return %c0_i32, %arg0 : i32, i32
  }
  func.func @transform_1(%arg0: i32) -> (i32, i32) {
    %c0_i32 = arith.constant 0 : i32
    %c0_i32_0 = arith.constant 0 : i32
    return %arg0, %c0_i32 : i32, i32
  }
  func.func @transform_2(%arg0: i32) -> (i32, i32) {
    %c0_i32 = arith.constant 0 : i32
    %c0_i32_0 = arith.constant 0 : i32
    %c0_i32_1 = arith.constant 0 : i32
    return %c0_i32, %c0_i32_0 : i32, i32
  }
  func.func @transform_3(%arg0: i32) -> (i32, i32) {
    %c0_i32 = arith.constant 0 : i32
    %c0_i32_0 = arith.constant 0 : i32
    %c0_i32_1 = arith.constant 0 : i32
    return %c0_i32, %c0_i32_0 : i32, i32
  }
  func.func @transform_4(%arg0: i32) -> (i32, i32) {
    %c0_i32 = arith.constant 0 : i32
    %c0_i32_0 = arith.constant 0 : i32
    %c0_i32_1 = arith.constant 0 : i32
    return %c0_i32, %c0_i32_0 : i32, i32
  }
}

</mosaic_0001>

<llo_original>
// kernel: _lambda_.1
$region0: #{_lambda_.1}
  #allocation0 [shape = 'u32[]', space=smem, size = 0x4, offset = 0x4, fixed_abs, tag = 'smem constant byte address 0x4 - core index']
  #allocation1 [shape = 'u32[72,128]{1,0:T(1,128)}', space=vmem, size = 0x9000, scoped, tag = 'internal scratch']
  %s0 = inlined_call_operand.vmem [shape: f32[2,4096], index: 0, kind: input, shape index: {}]
  %s1 = inlined_call_operand.hbm [shape: bf16[4096,256], index: 1, kind: input, shape index: {}]
  %s2 = inlined_call_operand.hbm [shape: f32[3,256], index: 2, kind: input, shape index: {}]
  %s3 = inlined_call_operand.hbm [shape: bf16[256,256], index: 3, kind: input, shape index: {}]
  %s4 = inlined_call_operand.vmem [shape: f32[2,256], index: 4, kind: output, shape index: {}]
  %s5 = sld [smem:[#allocation0]]
  $region46: #{_lambda_.1} parent=0
    _
  %s7 = ssub.s32 1, %s5
  %s8 = scalar_select 0, %s7, %s5
  $region1: #{_lambda_.1} parent=0
    #allocation2 [shape = 'u8[2097152]{0}', space=vmem, size = 0x200000, scoped, tag = 'input window, operand 1, single buffered']
    #allocation3 [shape = 's32[1]{0}', space=sflag, size = 0x4, scoped, tag = 'scoped memory for _lambda_.1']
    #allocation4 [shape = 'u8[4096]{0}', space=vmem, size = 0x1000, scoped, tag = 'input window, operand 2, single buffered']
    #allocation5 [shape = 's32[1]{0}', space=sflag, size = 0x4, scoped, tag = 'scoped memory for _lambda_.1']
    #allocation6 [shape = 'u8[131072]{0}', space=vmem, size = 0x20000, scoped, tag = 'input window, operand 3, single buffered']
    %9 = vsyncpa [#allocation3], 0
    %10 = vsyncpa [#allocation5], 0
    // Predicated region
    $region2: #{_lambda_.1} parent=1 // pred_check
      _
    $region3: #{_lambda_.1} parent=1 // pred_check_branch
      %12 = sbr.rel (0) target = $region5
    $region4: #{_lambda_.1} parent=1 // pred_region
      _
    $region5: #{_lambda_.1} parent=1 // pred_fallthru
      _
    // Predicated region
    $region6: #{_lambda_.1} parent=1 // pred_check
      _
    $region7: #{_lambda_.1} parent=1 // pred_check_branch
      %14 = sbr.rel (0) target = $region9
    $region8: #{_lambda_.1} parent=1 // pred_region
      %16 = vsyncadd [#allocation3], 0
      %s17 = sshll.u32 %s1, 4
      %s18 = int_to_ptr.hbm [resolvable:$true] %s17
      %s19 = sshll.u32 [#allocation2], 4
      %s20 = int_to_ptr.vmem [resolvable:$true] %s19
      %25 = dma.hbm_to_vmem [thread:$0]  %s18, 65536, %s20, [#allocation3], 128, 128, 8
    $region9: #{_lambda_.1} parent=1 // pred_fallthru
      _
    // Predicated region
    $region10: #{_lambda_.1} parent=1 // pred_check
      _
    $region11: #{_lambda_.1} parent=1 // pred_check_branch
      %27 = sbr.rel (0) target = $region13
    $region12: #{_lambda_.1} parent=1 // pred_region
      %29 = vsyncadd [#allocation5], 0
      %s31 = sshll.u32 %s2, 4
      %s32 = int_to_ptr.hbm [resolvable:$true] %s31
      %s33 = sshll.u32 [#allocation4], 4
      %s34 = int_to_ptr.vmem [resolvable:$true] %s33
      %36 = dma.hbm_to_vmem [thread:$0]  %s32, 128, %s34, [#allocation5]
    $region13: #{_lambda_.1} parent=1 // pred_fallthru
      _
    // Predicated region
    $region14: #{_lambda_.1} parent=1 // pred_check
      _
    $region15: #{_lambda_.1} parent=1 // pred_check_branch
      %38 = sbr.rel (0) target = $region17
    $region16: #{_lambda_.1} parent=1 // pred_region
      %40 = vsyncadd [#allocation5], 0
      %s41 = sshll.u32 %s3, 4
      %s42 = int_to_ptr.hbm [resolvable:$true] %s41
      %s43 = sshll.u32 [#allocation6], 4
      %s44 = int_to_ptr.vmem [resolvable:$true] %s43
      %49 = dma.hbm_to_vmem [thread:$0]  %s42, 4096, %s44, [#allocation5], 128, 128, 8
    $region17: #{_lambda_.1} parent=1 // pred_fallthru
      _
    // Predicated region
    $region18: #{_lambda_.1} parent=1 // pred_check
      _
    $region19: #{_lambda_.1} parent=1 // pred_check_branch
      %51 = sbr.rel (0) target = $region21
    $region20: #{_lambda_.1} parent=1 // pred_region
      %53 = dma.done [#allocation3], 65536
    $region21: #{_lambda_.1} parent=1 // pred_fallthru
      _
    // Predicated region
    $region22: #{_lambda_.1} parent=1 // pred_check
      _
    $region23: #{_lambda_.1} parent=1 // pred_check_branch
      %55 = sbr.rel (0) target = $region25
    $region24: #{_lambda_.1} parent=1 // pred_region
      %57 = dma.done [#allocation5], 128
    $region25: #{_lambda_.1} parent=1 // pred_fallthru
      _
    // Predicated region
    $region26: #{_lambda_.1} parent=1 // pred_check
      _
    $region27: #{_lambda_.1} parent=1 // pred_check_branch
      %59 = sbr.rel (0) target = $region29
    $region28: #{_lambda_.1} parent=1 // pred_region
      %61 = dma.done [#allocation5], 4096
    $region29: #{_lambda_.1} parent=1 // pred_fallthru
      _
    %p62 = scmp.eq.s32.totalorder 0, 0
    // Predicated region
    $region30: #{_lambda_.1} parent=1 // pred_check
      %p63 = pneg %p62
    $region31: #{_lambda_.1} parent=1 // pred_check_branch
      %65 = sbr.rel (%p63) target = $region33
    $region32: #{_lambda_.1} parent=1 // pred_region
      %66 = vst [vmem:[%s4] sm:$0xf] 0.0
    $region33: #{_lambda_.1} parent=1 // pred_fallthru
      _
    %v67 = vld [vmem:[%s4] sm:$0xf]
    %v68 = vld [vmem:[%s0] sm:$0xff]
    %v69 = vld [vmem:[%s0 + $0x8] sm:$0xff]
    %v70 = vld [vmem:[%s0 + $0x10] sm:$0xff]
    %v71 = vld [vmem:[%s0 + $0x18] sm:$0xff]
    %v72 = vld [vmem:[%s0 + $0x20] sm:$0xff]
    %v73 = vld [vmem:[%s0 + $0x28] sm:$0xff]
    %v74 = vld [vmem:[%s0 + $0x30] sm:$0xff]
    %v75 = vld [vmem:[%s0 + $0x38] sm:$0xff]
    %84 = vst [vmem:[#allocation1] ss:$4 sm:$0xff] %v68
    %s85 = scalar_lea.vmem [#allocation1], 32
    %86 = vst [vmem:[%s85] ss:$4 sm:$0xff] %v69
    %v87 = vld.sshfl [vmem:[#allocation1] sm:$0xff pattern:$0x73625140]
    %v88 = vld.sshfl [vmem:[#allocation1 + $0x8] sm:$0xff pattern:$0x73625140]
    %v89 = vld.sshfl [vmem:[#allocation1 + $0x10] sm:$0xff pattern:$0x73625140]
    %v90 = vld.sshfl [vmem:[#allocation1 + $0x18] sm:$0xff pattern:$0x73625140]
    %v91 = vld.sshfl [vmem:[#allocation1 + $0x20] sm:$0xff pattern:$0x73625140]
    %v92 = vld.sshfl [vmem:[#allocation1 + $0x28] sm:$0xff pattern:$0x73625140]
    %v93 = vld.sshfl [vmem:[#allocation1 + $0x30] sm:$0xff pattern:$0x73625140]
    %v94 = vld.sshfl [vmem:[#allocation1 + $0x38] sm:$0xff pattern:$0x73625140]
    %95 = vst [vmem:[#allocation1] ss:$4 sm:$0xff] %v70
    %96 = vst [vmem:[%s85] ss:$4 sm:$0xff] %v71
    %v97 = vld.sshfl [vmem:[#allocation1] sm:$0xff pattern:$0x73625140]
    %v98 = vld.sshfl [vmem:[#allocation1 + $0x8] sm:$0xff pattern:$0x73625140]
    %v99 = vld.sshfl [vmem:[#allocation1 + $0x10] sm:$0xff pattern:$0x73625140]
    %v100 = vld.sshfl [vmem:[#allocation1 + $0x18] sm:$0xff pattern:$0x73625140]
    %v101 = vld.sshfl [vmem:[#allocation1 + $0x20] sm:$0xff pattern:$0x73625140]
    %v102 = vld.sshfl [vmem:[#allocation1 + $0x28] sm:$0xff pattern:$0x73625140]
    %v103 = vld.sshfl [vmem:[#allocation1 + $0x30] sm:$0xff pattern:$0x73625140]
    %v104 = vld.sshfl [vmem:[#allocation1 + $0x38] sm:$0xff pattern:$0x73625140]
    %105 = vst [vmem:[#allocation1] ss:$4 sm:$0xff] %v72
    %106 = vst [vmem:[%s85] ss:$4 sm:$0xff] %v73
    %v107 = vld.sshfl [vmem:[#allocation1] sm:$0xff pattern:$0x73625140]
    %v108 = vld.sshfl [vmem:[#allocation1 + $0x8] sm:$0xff pattern:$0x73625140]
    %v109 = vld.sshfl [vmem:[#allocation1 + $0x10] sm:$0xff pattern:$0x73625140]
    %v110 = vld.sshfl [vmem:[#allocation1 + $0x18] sm:$0xff pattern:$0x73625140]
    %v111 = vld.sshfl [vmem:[#allocation1 + $0x20] sm:$0xff pattern:$0x73625140]
    %v112 = vld.sshfl [vmem:[#allocation1 + $0x28] sm:$0xff pattern:$0x73625140]
    %v113 = vld.sshfl [vmem:[#allocation1 + $0x30] sm:$0xff pattern:$0x73625140]
    %v114 = vld.sshfl [vmem:[#allocation1 + $0x38] sm:$0xff pattern:$0x73625140]
    %115 = vst [vmem:[#allocation1] ss:$4 sm:$0xff] %v74
    %116 = vst [vmem:[%s85] ss:$4 sm:$0xff] %v75
    %v117 = vld.sshfl [vmem:[#allocation1] sm:$0xff pattern:$0x73625140]
    %v118 = vld.sshfl [vmem:[#allocation1 + $0x8] sm:$0xff pattern:$0x73625140]
    %v119 = vld.sshfl [vmem:[#allocation1 + $0x10] sm:$0xff pattern:$0x73625140]
    %v120 = vld.sshfl [vmem:[#allocation1 + $0x18] sm:$0xff pattern:$0x73625140]
    %v121 = vld.sshfl [vmem:[#allocation1 + $0x20] sm:$0xff pattern:$0x73625140]
    %v122 = vld.sshfl [vmem:[#allocation1 + $0x28] sm:$0xff pattern:$0x73625140]
    %v123 = vld.sshfl [vmem:[#allocation1 + $0x30] sm:$0xff pattern:$0x73625140]
    %v124 = vld.sshfl [vmem:[#allocation1 + $0x38] sm:$0xff pattern:$0x73625140]
    %v157 = vpack.c.bf16 %v87, %v87
    %v158 = vpack.c.bf16 %v88, %v88
    %v159 = vpack.c.bf16 %v89, %v89
    %v160 = vpack.c.bf16 %v90, %v90
    %v161 = vpack.c.bf16 %v91, %v91
    %v162 = vpack.c.bf16 %v92, %v92
    %v163 = vpack.c.bf16 %v93, %v93
    %v164 = vpack.c.bf16 %v94, %v94
    %v165 = vpack.c.bf16 %v97, %v97
    %v166 = vpack.c.bf16 %v98, %v98
    %v167 = vpack.c.bf16 %v99, %v99
    %v168 = vpack.c.bf16 %v100, %v100
    %v169 = vpack.c.bf16 %v101, %v101
    %v170 = vpack.c.bf16 %v102, %v102
    %v171 = vpack.c.bf16 %v103, %v103
    %v172 = vpack.c.bf16 %v104, %v104
    %v173 = vpack.c.bf16 %v107, %v107
    %v174 = vpack.c.bf16 %v108, %v108
    %v175 = vpack.c.bf16 %v109, %v109
    %v176 = vpack.c.bf16 %v110, %v110
    %v177 = vpack.c.bf16 %v111, %v111
    %v178 = vpack.c.bf16 %v112, %v112
    %v179 = vpack.c.bf16 %v113, %v113
    %v180 = vpack.c.bf16 %v114, %v114
    %v181 = vpack.c.bf16 %v117, %v117
    %v182 = vpack.c.bf16 %v118, %v118
    %v183 = vpack.c.bf16 %v119, %v119
    %v184 = vpack.c.bf16 %v120, %v120
    %v185 = vpack.c.bf16 %v121, %v121
    %v186 = vpack.c.bf16 %v122, %v122
    %v187 = vpack.c.bf16 %v123, %v123
    %v188 = vpack.c.bf16 %v124, %v124
    %v189 = vld [vmem:[#allocation2] sm:$0xff]
    %v190 = vld [vmem:[#allocation2 + $0x8] sm:$0xff]
    %v191 = vld [vmem:[#allocation2 + $0x10] sm:$0xff]
    %v192 = vld [vmem:[#allocation2 + $0x18] sm:$0xff]
    %v193 = vld [vmem:[#allocation2 + $0x20] sm:$0xff]
    %v194 = vld [vmem:[#allocation2 + $0x28] sm:$0xff]
    %v195 = vld [vmem:[#allocation2 + $0x30] sm:$0xff]
    %v196 = vld [vmem:[#allocation2 + $0x38] sm:$0xff]
    %v197 = vld [vmem:[#allocation2 + $0x40] sm:$0xff]
    %v198 = vld [vmem:[#allocation2 + $0x48] sm:$0xff]
    %v199 = vld [vmem:[#allocation2 + $0x50] sm:$0xff]
    %v200 = vld [vmem:[#allocation2 + $0x58] sm:$0xff]
    %v201 = vld [vmem:[#allocation2 + $0x60] sm:$0xff]
    %v202 = vld [vmem:[#allocation2 + $0x68] sm:$0xff]
    %v203 = vld [vmem:[#allocation2 + $0x70] sm:$0xff]
    %v204 = vld [vmem:[#allocation2 + $0x78] sm:$0xff]
    %v205 = vld [vmem:[#allocation2 + $0x80] sm:$0xff]
    %v206 = vld [vmem:[#allocation2 + $0x88] sm:$0xff]
    %v207 = vld [vmem:[#allocation2 + $0x90] sm:$0xff]
    %v208 = vld [vmem:[#allocation2 + $0x98] sm:$0xff]
    %v209 = vld [vmem:[#allocation2 + $0xa0] sm:$0xff]
    %v210 = vld [vmem:[#allocation2 + $0xa8] sm:$0xff]
    %v211 = vld [vmem:[#allocation2 + $0xb0] sm:$0xff]
    %v212 = vld [vmem:[#allocation2 + $0xb8] sm:$0xff]
    %v213 = vld [vmem:[#allocation2 + $0xc0] sm:$0xff]
    %v214 = vld [vmem:[#allocation2 + $0xc8] sm:$0xff]
    %v215 = vld [vmem:[#allocation2 + $0xd0] sm:$0xff]
    %v216 = vld [vmem:[#allocation2 + $0xd8] sm:$0xff]
    %v217 = vld [vmem:[#allocation2 + $0xe0] sm:$0xff]
    %v218 = vld [vmem:[#allocation2 + $0xe8] sm:$0xff]
    %v219 = vld [vmem:[#allocation2 + $0xf0] sm:$0xff]
    %v220 = vld [vmem:[#allocation2 + $0xf8] sm:$0xff]
    %v221 = vld [vmem:[#allocation2 + $0x100] sm:$0xff]
    %v222 = vld [vmem:[#allocation2 + $0x108] sm:$0xff]
    %v223 = vld [vmem:[#allocation2 + $0x110] sm:$0xff]
    %v224 = vld [vmem:[#allocation2 + $0x118] sm:$0xff]
    %v225 = vld [vmem:[#allocation2 + $0x120] sm:$0xff]
    %v226 = vld [vmem:[#allocation2 + $0x128] sm:$0xff]
    %v227 = vld [vmem:[#allocation2 + $0x130] sm:$0xff]
    %v228 = vld [vmem:[#allocation2 + $0x138] sm:$0xff]
    %v229 = vld [vmem:[#allocation2 + $0x140] sm:$0xff]
    %v230 = vld [vmem:[#allocation2 + $0x148] sm:$0xff]
    %v231 = vld [vmem:[#allocation2 + $0x150] sm:$0xff]
    %v232 = vld [vmem:[#allocation2 + $0x158] sm:$0xff]
    %v233 = vld [vmem:[#allocation2 + $0x160] sm:$0xff]
    %v234 = vld [vmem:[#allocation2 + $0x168] sm:$0xff]
    %v235 = vld [vmem:[#allocation2 + $0x170] sm:$0xff]
    %v236 = vld [vmem:[#allocation2 + $0x178] sm:$0xff]
    %v237 = vld [vmem:[#allocation2 + $0x180] sm:$0xff]
    %v238 = vld [vmem:[#allocation2 + $0x188] sm:$0xff]
    %v239 = vld [vmem:[#allocation2 + $0x190] sm:$0xff]
    %v240 = vld [vmem:[#allocation2 + $0x198] sm:$0xff]
    %v241 = vld [vmem:[#allocation2 + $0x1a0] sm:$0xff]
    %v242 = vld [vmem:[#allocation2 + $0x1a8] sm:$0xff]
    %v243 = vld [vmem:[#allocation2 + $0x1b0] sm:$0xff]
    %v244 = vld [vmem:[#allocation2 + $0x1b8] sm:$0xff]
    %v245 = vld [vmem:[#allocation2 + $0x1c0] sm:$0xff]
    %v246 = vld [vmem:[#allocation2 + $0x1c8] sm:$0xff]
    %v247 = vld [vmem:[#allocation2 + $0x1d0] sm:$0xff]
    %v248 = vld [vmem:[#allocation2 + $0x1d8] sm:$0xff]
    %v249 = vld [vmem:[#allocation2 + $0x1e0] sm:$0xff]
    %v250 = vld [vmem:[#allocation2 + $0x1e8] sm:$0xff]
    %v251 = vld [vmem:[#allocation2 + $0x1f0] sm:$0xff]
    %v252 = vld [vmem:[#allocation2 + $0x1f8] sm:$0xff]
    %v253 = vld [vmem:[#allocation2 + $0x200] sm:$0xff]
    %v254 = vld [vmem:[#allocation2 + $0x208] sm:$0xff]
    %v255 = vld [vmem:[#allocation2 + $0x210] sm:$0xff]
    %v256 = vld [vmem:[#allocation2 + $0x218] sm:$0xff]
    %v257 = vld [vmem:[#allocation2 + $0x220] sm:$0xff]
    %v258 = vld [vmem:[#allocation2 + $0x228] sm:$0xff]
    %v259 = vld [vmem:[#allocation2 + $0x230] sm:$0xff]
    %v260 = vld [vmem:[#allocation2 + $0x238] sm:$0xff]
    %v261 = vld [vmem:[#allocation2 + $0x240] sm:$0xff]
    %v262 = vld [vmem:[#allocation2 + $0x248] sm:$0xff]
    %v263 = vld [vmem:[#allocation2 + $0x250] sm:$0xff]
    %v264 = vld [vmem:[#allocation2 + $0x258] sm:$0xff]
    %v265 = vld [vmem:[#allocation2 + $0x260] sm:$0xff]
    %v266 = vld [vmem:[#allocation2 + $0x268] sm:$0xff]
    %v267 = vld [vmem:[#allocation2 + $0x270] sm:$0xff]
    %v268 = vld [vmem:[#allocation2 + $0x278] sm:$0xff]
    %v269 = vld [vmem:[#allocation2 + $0x280] sm:$0xff]
    %v270 = vld [vmem:[#allocation2 + $0x288] sm:$0xff]
    %v271 = vld [vmem:[#allocation2 + $0x290] sm:$0xff]
    %v272 = vld [vmem:[#allocation2 + $0x298] sm:$0xff]
    %v273 = vld [vmem:[#allocation2 + $0x2a0] sm:$0xff]
    %v274 = vld [vmem:[#allocation2 + $0x2a8] sm:$0xff]
    %v275 = vld [vmem:[#allocation2 + $0x2b0] sm:$0xff]
    %v276 = vld [vmem:[#allocation2 + $0x2b8] sm:$0xff]
    %v277 = vld [vmem:[#allocation2 + $0x2c0] sm:$0xff]
    %v278 = vld [vmem:[#allocation2 + $0x2c8] sm:$0xff]
    %v279 = vld [vmem:[#allocation2 + $0x2d0] sm:$0xff]
    %v280 = vld [vmem:[#allocation2 + $0x2d8] sm:$0xff]
    %v281 = vld [vmem:[#allocation2 + $0x2e0] sm:$0xff]
    %v282 = vld [vmem:[#allocation2 + $0x2e8] sm:$0xff]
    %v283 = vld [vmem:[#allocation2 + $0x2f0] sm:$0xff]
    %v284 = vld [vmem:[#allocation2 + $0x2f8] sm:$0xff]
    %v285 = vld [vmem:[#allocation2 + $0x300] sm:$0xff]
    %v286 = vld [vmem:[#allocation2 + $0x308] sm:$0xff]
    %v287 = vld [vmem:[#allocation2 + $0x310] sm:$0xff]
    %v288 = vld [vmem:[#allocation2 + $0x318] sm:$0xff]
    %v289 = vld [vmem:[#allocation2 + $0x320] sm:$0xff]
    %v290 = vld [vmem:[#allocation2 + $0x328] sm:$0xff]
    %v291 = vld [vmem:[#allocation2 + $0x330] sm:$0xff]
    %v292 = vld [vmem:[#allocation2 + $0x338] sm:$0xff]
    %v293 = vld [vmem:[#allocation2 + $0x340] sm:$0xff]
    %v294 = vld [vmem:[#allocation2 + $0x348] sm:$0xff]
    %v295 = vld [vmem:[#allocation2 + $0x350] sm:$0xff]
    %v296 = vld [vmem:[#allocation2 + $0x358] sm:$0xff]
    %v297 = vld [vmem:[#allocation2 + $0x360] sm:$0xff]
    %v298 = vld [vmem:[#allocation2 + $0x368] sm:$0xff]
    %v299 = vld [vmem:[#allocation2 + $0x370] sm:$0xff]
    %v300 = vld [vmem:[#allocation2 + $0x378] sm:$0xff]
    %v301 = vld [vmem:[#allocation2 + $0x380] sm:$0xff]
    %v302 = vld [vmem:[#allocation2 + $0x388] sm:$0xff]
    %v303 = vld [vmem:[#allocation2 + $0x390] sm:$0xff]
    %v304 = vld [vmem:[#allocation2 + $0x398] sm:$0xff]
    %v305 = vld [vmem:[#allocation2 + $0x3a0] sm:$0xff]
    %v306 = vld [vmem:[#allocation2 + $0x3a8] sm:$0xff]
    %v307 = vld [vmem:[#allocation2 + $0x3b0] sm:$0xff]
    %v308 = vld [vmem:[#allocation2 + $0x3b8] sm:$0xff]
    %v309 = vld [vmem:[#allocation2 + $0x3c0] sm:$0xff]
    %v310 = vld [vmem:[#allocation2 + $0x3c8] sm:$0xff]
    %v311 = vld [vmem:[#allocation2 + $0x3d0] sm:$0xff]
    %v312 = vld [vmem:[#allocation2 + $0x3d8] sm:$0xff]
    %v313 = vld [vmem:[#allocation2 + $0x3e0] sm:$0xff]
    %v314 = vld [vmem:[#allocation2 + $0x3e8] sm:$0xff]
    %v315 = vld [vmem:[#allocation2 + $0x3f0] sm:$0xff]
    %v316 = vld [vmem:[#allocation2 + $0x3f8] sm:$0xff]
    %v317 = vld [vmem:[#allocation2 + $0x400] sm:$0xff]
    %v318 = vld [vmem:[#allocation2 + $0x408] sm:$0xff]
    %v319 = vld [vmem:[#allocation2 + $0x410] sm:$0xff]
    %v320 = vld [vmem:[#allocation2 + $0x418] sm:$0xff]
    %v321 = vld [vmem:[#allocation2 + $0x420] sm:$0xff]
    %v322 = vld [vmem:[#allocation2 + $0x428] sm:$0xff]
    %v323 = vld [vmem:[#allocation2 + $0x430] sm:$0xff]
    %v324 = vld [vmem:[#allocation2 + $0x438] sm:$0xff]
    %v325 = vld [vmem:[#allocation2 + $0x440] sm:$0xff]
    %v326 = vld [vmem:[#allocation2 + $0x448] sm:$0xff]
    %v327 = vld [vmem:[#allocation2 + $0x450] sm:$0xff]
    %v328 = vld [vmem:[#allocation2 + $0x458] sm:$0xff]
    %v329 = vld [vmem:[#allocation2 + $0x460] sm:$0xff]
    %v330 = vld [vmem:[#allocation2 + $0x468] sm:$0xff]
    %v331 = vld [vmem:[#allocation2 + $0x470] sm:$0xff]
    %v332 = vld [vmem:[#allocation2 + $0x478] sm:$0xff]
    %v333 = vld [vmem:[#allocation2 + $0x480] sm:$0xff]
    %v334 = vld [vmem:[#allocation2 + $0x488] sm:$0xff]
    %v335 = vld [vmem:[#allocation2 + $0x490] sm:$0xff]
    %v336 = vld [vmem:[#allocation2 + $0x498] sm:$0xff]
    %v337 = vld [vmem:[#allocation2 + $0x4a0] sm:$0xff]
    %v338 = vld [vmem:[#allocation2 + $0x4a8] sm:$0xff]
    %v339 = vld [vmem:[#allocation2 + $0x4b0] sm:$0xff]
    %v340 = vld [vmem:[#allocation2 + $0x4b8] sm:$0xff]
    %v341 = vld [vmem:[#allocation2 + $0x4c0] sm:$0xff]
    %v342 = vld [vmem:[#allocation2 + $0x4c8] sm:$0xff]
    %v343 = vld [vmem:[#allocation2 + $0x4d0] sm:$0xff]
    %v344 = vld [vmem:[#allocation2 + $0x4d8] sm:$0xff]
    %v345 = vld [vmem:[#allocation2 + $0x4e0] sm:$0xff]
    %v346 = vld [vmem:[#allocation2 + $0x4e8] sm:$0xff]
    %v347 = vld [vmem:[#allocation2 + $0x4f0] sm:$0xff]
    %v348 = vld [vmem:[#allocation2 + $0x4f8] sm:$0xff]
    %v349 = vld [vmem:[#allocation2 + $0x500] sm:$0xff]
    %v350 = vld [vmem:[#allocation2 + $0x508] sm:$0xff]
    %v351 = vld [vmem:[#allocation2 + $0x510] sm:$0xff]
    %v352 = vld [vmem:[#allocation2 + $0x518] sm:$0xff]
    %v353 = vld [vmem:[#allocation2 + $0x520] sm:$0xff]
    %v354 = vld [vmem:[#allocation2 + $0x528] sm:$0xff]
    %v355 = vld [vmem:[#allocation2 + $0x530] sm:$0xff]
    %v356 = vld [vmem:[#allocation2 + $0x538] sm:$0xff]
    %v357 = vld [vmem:[#allocation2 + $0x540] sm:$0xff]
    %v358 = vld [vmem:[#allocation2 + $0x548] sm:$0xff]
    %v359 = vld [vmem:[#allocation2 + $0x550] sm:$0xff]
    %v360 = vld [vmem:[#allocation2 + $0x558] sm:$0xff]
    %v361 = vld [vmem:[#allocation2 + $0x560] sm:$0xff]
    %v362 = vld [vmem:[#allocation2 + $0x568] sm:$0xff]
    %v363 = vld [vmem:[#allocation2 + $0x570] sm:$0xff]
    %v364 = vld [vmem:[#allocation2 + $0x578] sm:$0xff]
    %v365 = vld [vmem:[#allocation2 + $0x580] sm:$0xff]
    %v366 = vld [vmem:[#allocation2 + $0x588] sm:$0xff]
    %v367 = vld [vmem:[#allocation2 + $0x590] sm:$0xff]
    %v368 = vld [vmem:[#allocation2 + $0x598] sm:$0xff]
    %v369 = vld [vmem:[#allocation2 + $0x5a0] sm:$0xff]
    %v370 = vld [vmem:[#allocation2 + $0x5a8] sm:$0xff]
    %v371 = vld [vmem:[#allocation2 + $0x5b0] sm:$0xff]
    %v372 = vld [vmem:[#allocation2 + $0x5b8] sm:$0xff]
    %v373 = vld [vmem:[#allocation2 + $0x5c0] sm:$0xff]
    %v374 = vld [vmem:[#allocation2 + $0x5c8] sm:$0xff]
    %v375 = vld [vmem:[#allocation2 + $0x5d0] sm:$0xff]
    %v376 = vld [vmem:[#allocation2 + $0x5d8] sm:$0xff]
    %v377 = vld [vmem:[#allocation2 + $0x5e0] sm:$0xff]
    %v378 = vld [vmem:[#allocation2 + $0x5e8] sm:$0xff]
    %v379 = vld [vmem:[#allocation2 + $0x5f0] sm:$0xff]
    %v380 = vld [vmem:[#allocation2 + $0x5f8] sm:$0xff]
    %v381 = vld [vmem:[#allocation2 + $0x600] sm:$0xff]
    %v382 = vld [vmem:[#allocation2 + $0x608] sm:$0xff]
    %v383 = vld [vmem:[#allocation2 + $0x610] sm:$0xff]
    %v384 = vld [vmem:[#allocation2 + $0x618] sm:$0xff]
    %v385 = vld [vmem:[#allocation2 + $0x620] sm:$0xff]
    %v386 = vld [vmem:[#allocation2 + $0x628] sm:$0xff]
    %v387 = vld [vmem:[#allocation2 + $0x630] sm:$0xff]
    %v388 = vld [vmem:[#allocation2 + $0x638] sm:$0xff]
    %v389 = vld [vmem:[#allocation2 + $0x640] sm:$0xff]
    %v390 = vld [vmem:[#allocation2 + $0x648] sm:$0xff]
    %v391 = vld [vmem:[#allocation2 + $0x650] sm:$0xff]
    %v392 = vld [vmem:[#allocation2 + $0x658] sm:$0xff]
    %v393 = vld [vmem:[#allocation2 + $0x660] sm:$0xff]
    %v394 = vld [vmem:[#allocation2 + $0x668] sm:$0xff]
    %v395 = vld [vmem:[#allocation2 + $0x670] sm:$0xff]
    %v396 = vld [vmem:[#allocation2 + $0x678] sm:$0xff]
    %v397 = vld [vmem:[#allocation2 + $0x680] sm:$0xff]
    %v398 = vld [vmem:[#allocation2 + $0x688] sm:$0xff]
    %v399 = vld [vmem:[#allocation2 + $0x690] sm:$0xff]
    %v400 = vld [vmem:[#allocation2 + $0x698] sm:$0xff]
    %v401 = vld [vmem:[#allocation2 + $0x6a0] sm:$0xff]
    %v402 = vld [vmem:[#allocation2 + $0x6a8] sm:$0xff]
    %v403 = vld [vmem:[#allocation2 + $0x6b0] sm:$0xff]
    %v404 = vld [vmem:[#allocation2 + $0x6b8] sm:$0xff]
    %v405 = vld [vmem:[#allocation2 + $0x6c0] sm:$0xff]
    %v406 = vld [vmem:[#allocation2 + $0x6c8] sm:$0xff]
    %v407 = vld [vmem:[#allocation2 + $0x6d0] sm:$0xff]
    %v408 = vld [vmem:[#allocation2 + $0x6d8] sm:$0xff]
    %v409 = vld [vmem:[#allocation2 + $0x6e0] sm:$0xff]
    %v410 = vld [vmem:[#allocation2 + $0x6e8] sm:$0xff]
    %v411 = vld [vmem:[#allocation2 + $0x6f0] sm:$0xff]
    %v412 = vld [vmem:[#allocation2 + $0x6f8] sm:$0xff]
    %v413 = vld [vmem:[#allocation2 + $0x700] sm:$0xff]
    %v414 = vld [vmem:[#allocation2 + $0x708] sm:$0xff]
    %v415 = vld [vmem:[#allocation2 + $0x710] sm:$0xff]
    %v416 = vld [vmem:[#allocation2 + $0x718] sm:$0xff]
    %v417 = vld [vmem:[#allocation2 + $0x720] sm:$0xff]
    %v418 = vld [vmem:[#allocation2 + $0x728] sm:$0xff]
    %v419 = vld [vmem:[#allocation2 + $0x730] sm:$0xff]
    %v420 = vld [vmem:[#allocation2 + $0x738] sm:$0xff]
    %v421 = vld [vmem:[#allocation2 + $0x740] sm:$0xff]
    %v422 = vld [vmem:[#allocation2 + $0x748] sm:$0xff]
    %v423 = vld [vmem:[#allocation2 + $0x750] sm:$0xff]
    %v424 = vld [vmem:[#allocation2 + $0x758] sm:$0xff]
    %v425 = vld [vmem:[#allocation2 + $0x760] sm:$0xff]
    %v426 = vld [vmem:[#allocation2 + $0x768] sm:$0xff]
    %v427 = vld [vmem:[#allocation2 + $0x770] sm:$0xff]
    %v428 = vld [vmem:[#allocation2 + $0x778] sm:$0xff]
    %v429 = vld [vmem:[#allocation2 + $0x780] sm:$0xff]
    %v430 = vld [vmem:[#allocation2 + $0x788] sm:$0xff]
    %v431 = vld [vmem:[#allocation2 + $0x790] sm:$0xff]
    %v432 = vld [vmem:[#allocation2 + $0x798] sm:$0xff]
    %v433 = vld [vmem:[#allocation2 + $0x7a0] sm:$0xff]
    %v434 = vld [vmem:[#allocation2 + $0x7a8] sm:$0xff]
    %v435 = vld [vmem:[#allocation2 + $0x7b0] sm:$0xff]
    %v436 = vld [vmem:[#allocation2 + $0x7b8] sm:$0xff]
    %v437 = vld [vmem:[#allocation2 + $0x7c0] sm:$0xff]
    %v438 = vld [vmem:[#allocation2 + $0x7c8] sm:$0xff]
    %v439 = vld [vmem:[#allocation2 + $0x7d0] sm:$0xff]
    %v440 = vld [vmem:[#allocation2 + $0x7d8] sm:$0xff]
    %v441 = vld [vmem:[#allocation2 + $0x7e0] sm:$0xff]
    %v442 = vld [vmem:[#allocation2 + $0x7e8] sm:$0xff]
    %v443 = vld [vmem:[#allocation2 + $0x7f0] sm:$0xff]
    %v444 = vld [vmem:[#allocation2 + $0x7f8] sm:$0xff]
    %v445 = vld [vmem:[#allocation2 + $0x800] sm:$0xff]
    %v446 = vld [vmem:[#allocation2 + $0x808] sm:$0xff]
    %v447 = vld [vmem:[#allocation2 + $0x810] sm:$0xff]
    %v448 = vld [vmem:[#allocation2 + $0x818] sm:$0xff]
    %v449 = vld [vmem:[#allocation2 + $0x820] sm:$0xff]
    %v450 = vld [vmem:[#allocation2 + $0x828] sm:$0xff]
    %v451 = vld [vmem:[#allocation2 + $0x830] sm:$0xff]
    %v452 = vld [vmem:[#allocation2 + $0x838] sm:$0xff]
    %v453 = vld [vmem:[#allocation2 + $0x840] sm:$0xff]
    %v454 = vld [vmem:[#allocation2 + $0x848] sm:$0xff]
    %v455 = vld [vmem:[#allocation2 + $0x850] sm:$0xff]
    %v456 = vld [vmem:[#allocation2 + $0x858] sm:$0xff]
    %v457 = vld [vmem:[#allocation2 + $0x860] sm:$0xff]
    %v458 = vld [vmem:[#allocation2 + $0x868] sm:$0xff]
    %v459 = vld [vmem:[#allocation2 + $0x870] sm:$0xff]
    %v460 = vld [vmem:[#allocation2 + $0x878] sm:$0xff]
    %v461 = vld [vmem:[#allocation2 + $0x880] sm:$0xff]
    %v462 = vld [vmem:[#allocation2 + $0x888] sm:$0xff]
    %v463 = vld [vmem:[#allocation2 + $0x890] sm:$0xff]
    %v464 = vld [vmem:[#allocation2 + $0x898] sm:$0xff]
    %v465 = vld [vmem:[#allocation2 + $0x8a0] sm:$0xff]
    %v466 = vld [vmem:[#allocation2 + $0x8a8] sm:$0xff]
    %v467 = vld [vmem:[#allocation2 + $0x8b0] sm:$0xff]
    %v468 = vld [vmem:[#allocation2 + $0x8b8] sm:$0xff]
    %v469 = vld [vmem:[#allocation2 + $0x8c0] sm:$0xff]
    %v470 = vld [vmem:[#allocation2 + $0x8c8] sm:$0xff]
    %v471 = vld [vmem:[#allocation2 + $0x8d0] sm:$0xff]
    %v472 = vld [vmem:[#allocation2 + $0x8d8] sm:$0xff]
    %v473 = vld [vmem:[#allocation2 + $0x8e0] sm:$0xff]
    %v474 = vld [vmem:[#allocation2 + $0x8e8] sm:$0xff]
    %v475 = vld [vmem:[#allocation2 + $0x8f0] sm:$0xff]
    %v476 = vld [vmem:[#allocation2 + $0x8f8] sm:$0xff]
    %v477 = vld [vmem:[#allocation2 + $0x900] sm:$0xff]
    %v478 = vld [vmem:[#allocation2 + $0x908] sm:$0xff]
    %v479 = vld [vmem:[#allocation2 + $0x910] sm:$0xff]
    %v480 = vld [vmem:[#allocation2 + $0x918] sm:$0xff]
    %v481 = vld [vmem:[#allocation2 + $0x920] sm:$0xff]
    %v482 = vld [vmem:[#allocation2 + $0x928] sm:$0xff]
    %v483 = vld [vmem:[#allocation2 + $0x930] sm:$0xff]
    %v484 = vld [vmem:[#allocation2 + $0x938] sm:$0xff]
    %v485 = vld [vmem:[#allocation2 + $0x940] sm:$0xff]
    %v486 = vld [vmem:[#allocation2 + $0x948] sm:$0xff]
    %v487 = vld [vmem:[#allocation2 + $0x950] sm:$0xff]
    %v488 = vld [vmem:[#allocation2 + $0x958] sm:$0xff]
    %v489 = vld [vmem:[#allocation2 + $0x960] sm:$0xff]
    %v490 = vld [vmem:[#allocation2 + $0x968] sm:$0xff]
    %v491 = vld [vmem:[#allocation2 + $0x970] sm:$0xff]
    %v492 = vld [vmem:[#allocation2 + $0x978] sm:$0xff]
    %v493 = vld [vmem:[#allocation2 + $0x980] sm:$0xff]
    %v494 = vld [vmem:[#allocation2 + $0x988] sm:$0xff]
    %v495 = vld [vmem:[#allocation2 + $0x990] sm:$0xff]
    %v496 = vld [vmem:[#allocation2 + $0x998] sm:$0xff]
    %v497 = vld [vmem:[#allocation2 + $0x9a0] sm:$0xff]
    %v498 = vld [vmem:[#allocation2 + $0x9a8] sm:$0xff]
    %v499 = vld [vmem:[#allocation2 + $0x9b0] sm:$0xff]
    %v500 = vld [vmem:[#allocation2 + $0x9b8] sm:$0xff]
    %v501 = vld [vmem:[#allocation2 + $0x9c0] sm:$0xff]
    %v502 = vld [vmem:[#allocation2 + $0x9c8] sm:$0xff]
    %v503 = vld [vmem:[#allocation2 + $0x9d0] sm:$0xff]
    %v504 = vld [vmem:[#allocation2 + $0x9d8] sm:$0xff]
    %v505 = vld [vmem:[#allocation2 + $0x9e0] sm:$0xff]
    %v506 = vld [vmem:[#allocation2 + $0x9e8] sm:$0xff]
    %v507 = vld [vmem:[#allocation2 + $0x9f0] sm:$0xff]
    %v508 = vld [vmem:[#allocation2 + $0x9f8] sm:$0xff]
    %v509 = vld [vmem:[#allocation2 + $0xa00] sm:$0xff]
    %v510 = vld [vmem:[#allocation2 + $0xa08] sm:$0xff]
    %v511 = vld [vmem:[#allocation2 + $0xa10] sm:$0xff]
    %v512 = vld [vmem:[#allocation2 + $0xa18] sm:$0xff]
    %v513 = vld [vmem:[#allocation2 + $0xa20] sm:$0xff]
    %v514 = vld [vmem:[#allocation2 + $0xa28] sm:$0xff]
    %v515 = vld [vmem:[#allocation2 + $0xa30] sm:$0xff]
    %v516 = vld [vmem:[#allocation2 + $0xa38] sm:$0xff]
    %v517 = vld [vmem:[#allocation2 + $0xa40] sm:$0xff]
    %v518 = vld [vmem:[#allocation2 + $0xa48] sm:$0xff]
    %v519 = vld [vmem:[#allocation2 + $0xa50] sm:$0xff]
    %v520 = vld [vmem:[#allocation2 + $0xa58] sm:$0xff]
    %v521 = vld [vmem:[#allocation2 + $0xa60] sm:$0xff]
    %v522 = vld [vmem:[#allocation2 + $0xa68] sm:$0xff]
    %v523 = vld [vmem:[#allocation2 + $0xa70] sm:$0xff]
    %v524 = vld [vmem:[#allocation2 + $0xa78] sm:$0xff]
    %v525 = vld [vmem:[#allocation2 + $0xa80] sm:$0xff]
    %v526 = vld [vmem:[#allocation2 + $0xa88] sm:$0xff]
    %v527 = vld [vmem:[#allocation2 + $0xa90] sm:$0xff]
    %v528 = vld [vmem:[#allocation2 + $0xa98] sm:$0xff]
    %v529 = vld [vmem:[#allocation2 + $0xaa0] sm:$0xff]
    %v530 = vld [vmem:[#allocation2 + $0xaa8] sm:$0xff]
    %v531 = vld [vmem:[#allocation2 + $0xab0] sm:$0xff]
    %v532 = vld [vmem:[#allocation2 + $0xab8] sm:$0xff]
    %v533 = vld [vmem:[#allocation2 + $0xac0] sm:$0xff]
    %v534 = vld [vmem:[#allocation2 + $0xac8] sm:$0xff]
    %v535 = vld [vmem:[#allocation2 + $0xad0] sm:$0xff]
    %v536 = vld [vmem:[#allocation2 + $0xad8] sm:$0xff]
    %v537 = vld [vmem:[#allocation2 + $0xae0] sm:$0xff]
    %v538 = vld [vmem:[#allocation2 + $0xae8] sm:$0xff]
    %v539 = vld [vmem:[#allocation2 + $0xaf0] sm:$0xff]
    %v540 = vld [vmem:[#allocation2 + $0xaf8] sm:$0xff]
    %v541 = vld [vmem:[#allocation2 + $0xb00] sm:$0xff]
    %v542 = vld [vmem:[#allocation2 + $0xb08] sm:$0xff]
    %v543 = vld [vmem:[#allocation2 + $0xb10] sm:$0xff]
    %v544 = vld [vmem:[#allocation2 + $0xb18] sm:$0xff]
    %v545 = vld [vmem:[#allocation2 + $0xb20] sm:$0xff]
    %v546 = vld [vmem:[#allocation2 + $0xb28] sm:$0xff]
    %v547 = vld [vmem:[#allocation2 + $0xb30] sm:$0xff]
    %v548 = vld [vmem:[#allocation2 + $0xb38] sm:$0xff]
    %v549 = vld [vmem:[#allocation2 + $0xb40] sm:$0xff]
    %v550 = vld [vmem:[#allocation2 + $0xb48] sm:$0xff]
    %v551 = vld [vmem:[#allocation2 + $0xb50] sm:$0xff]
    %v552 = vld [vmem:[#allocation2 + $0xb58] sm:$0xff]
    %v553 = vld [vmem:[#allocation2 + $0xb60] sm:$0xff]
    %v554 = vld [vmem:[#allocation2 + $0xb68] sm:$0xff]
    %v555 = vld [vmem:[#allocation2 + $0xb70] sm:$0xff]
    %v556 = vld [vmem:[#allocation2 + $0xb78] sm:$0xff]
    %v557 = vld [vmem:[#allocation2 + $0xb80] sm:$0xff]
    %v558 = vld [vmem:[#allocation2 + $0xb88] sm:$0xff]
    %v559 = vld [vmem:[#allocation2 + $0xb90] sm:$0xff]
    %v560 = vld [vmem:[#allocation2 + $0xb98] sm:$0xff]
    %v561 = vld [vmem:[#allocation2 + $0xba0] sm:$0xff]
    %v562 = vld [vmem:[#allocation2 + $0xba8] sm:$0xff]
    %v563 = vld [vmem:[#allocation2 + $0xbb0] sm:$0xff]
    %v564 = vld [vmem:[#allocation2 + $0xbb8] sm:$0xff]
    %v565 = vld [vmem:[#allocation2 + $0xbc0] sm:$0xff]
    %v566 = vld [vmem:[#allocation2 + $0xbc8] sm:$0xff]
    %v567 = vld [vmem:[#allocation2 + $0xbd0] sm:$0xff]
    %v568 = vld [vmem:[#allocation2 + $0xbd8] sm:$0xff]
    %v569 = vld [vmem:[#allocation2 + $0xbe0] sm:$0xff]
    %v570 = vld [vmem:[#allocation2 + $0xbe8] sm:$0xff]
    %v571 = vld [vmem:[#allocation2 + $0xbf0] sm:$0xff]
    %v572 = vld [vmem:[#allocation2 + $0xbf8] sm:$0xff]
    %v573 = vld [vmem:[#allocation2 + $0xc00] sm:$0xff]
    %v574 = vld [vmem:[#allocation2 + $0xc08] sm:$0xff]
    %v575 = vld [vmem:[#allocation2 + $0xc10] sm:$0xff]
    %v576 = vld [vmem:[#allocation2 + $0xc18] sm:$0xff]
    %v577 = vld [vmem:[#allocation2 + $0xc20] sm:$0xff]
    %v578 = vld [vmem:[#allocation2 + $0xc28] sm:$0xff]
    %v579 = vld [vmem:[#allocation2 + $0xc30] sm:$0xff]
    %v580 = vld [vmem:[#allocation2 + $0xc38] sm:$0xff]
    %v581 = vld [vmem:[#allocation2 + $0xc40] sm:$0xff]
    %v582 = vld [vmem:[#allocation2 + $0xc48] sm:$0xff]
    %v583 = vld [vmem:[#allocation2 + $0xc50] sm:$0xff]
    %v584 = vld [vmem:[#allocation2 + $0xc58] sm:$0xff]
    %v585 = vld [vmem:[#allocation2 + $0xc60] sm:$0xff]
    %v586 = vld [vmem:[#allocation2 + $0xc68] sm:$0xff]
    %v587 = vld [vmem:[#allocation2 + $0xc70] sm:$0xff]
    %v588 = vld [vmem:[#allocation2 + $0xc78] sm:$0xff]
    %v589 = vld [vmem:[#allocation2 + $0xc80] sm:$0xff]
    %v590 = vld [vmem:[#allocation2 + $0xc88] sm:$0xff]
    %v591 = vld [vmem:[#allocation2 + $0xc90] sm:$0xff]
    %v592 = vld [vmem:[#allocation2 + $0xc98] sm:$0xff]
    %v593 = vld [vmem:[#allocation2 + $0xca0] sm:$0xff]
    %v594 = vld [vmem:[#allocation2 + $0xca8] sm:$0xff]
    %v595 = vld [vmem:[#allocation2 + $0xcb0] sm:$0xff]
    %v596 = vld [vmem:[#allocation2 + $0xcb8] sm:$0xff]
    %v597 = vld [vmem:[#allocation2 + $0xcc0] sm:$0xff]
    %v598 = vld [vmem:[#allocation2 + $0xcc8] sm:$0xff]
    %v599 = vld [vmem:[#allocation2 + $0xcd0] sm:$0xff]
    %v600 = vld [vmem:[#allocation2 + $0xcd8] sm:$0xff]
    %v601 = vld [vmem:[#allocation2 + $0xce0] sm:$0xff]
    %v602 = vld [vmem:[#allocation2 + $0xce8] sm:$0xff]
    %v603 = vld [vmem:[#allocation2 + $0xcf0] sm:$0xff]
    %v604 = vld [vmem:[#allocation2 + $0xcf8] sm:$0xff]
    %v605 = vld [vmem:[#allocation2 + $0xd00] sm:$0xff]
    %v606 = vld [vmem:[#allocation2 + $0xd08] sm:$0xff]
    %v607 = vld [vmem:[#allocation2 + $0xd10] sm:$0xff]
    %v608 = vld [vmem:[#allocation2 + $0xd18] sm:$0xff]
    %v609 = vld [vmem:[#allocation2 + $0xd20] sm:$0xff]
    %v610 = vld [vmem:[#allocation2 + $0xd28] sm:$0xff]
    %v611 = vld [vmem:[#allocation2 + $0xd30] sm:$0xff]
    %v612 = vld [vmem:[#allocation2 + $0xd38] sm:$0xff]
    %v613 = vld [vmem:[#allocation2 + $0xd40] sm:$0xff]
    %v614 = vld [vmem:[#allocation2 + $0xd48] sm:$0xff]
    %v615 = vld [vmem:[#allocation2 + $0xd50] sm:$0xff]
    %v616 = vld [vmem:[#allocation2 + $0xd58] sm:$0xff]
    %v617 = vld [vmem:[#allocation2 + $0xd60] sm:$0xff]
    %v618 = vld [vmem:[#allocation2 + $0xd68] sm:$0xff]
    %v619 = vld [vmem:[#allocation2 + $0xd70] sm:$0xff]
    %v620 = vld [vmem:[#allocation2 + $0xd78] sm:$0xff]
    %v621 = vld [vmem:[#allocation2 + $0xd80] sm:$0xff]
    %v622 = vld [vmem:[#allocation2 + $0xd88] sm:$0xff]
    %v623 = vld [vmem:[#allocation2 + $0xd90] sm:$0xff]
    %v624 = vld [vmem:[#allocation2 + $0xd98] sm:$0xff]
    %v625 = vld [vmem:[#allocation2 + $0xda0] sm:$0xff]
    %v626 = vld [vmem:[#allocation2 + $0xda8] sm:$0xff]
    %v627 = vld [vmem:[#allocation2 + $0xdb0] sm:$0xff]
    %v628 = vld [vmem:[#allocation2 + $0xdb8] sm:$0xff]
    %v629 = vld [vmem:[#allocation2 + $0xdc0] sm:$0xff]
    %v630 = vld [vmem:[#allocation2 + $0xdc8] sm:$0xff]
    %v631 = vld [vmem:[#allocation2 + $0xdd0] sm:$0xff]
    %v632 = vld [vmem:[#allocation2 + $0xdd8] sm:$0xff]
    %v633 = vld [vmem:[#allocation2 + $0xde0] sm:$0xff]
    %v634 = vld [vmem:[#allocation2 + $0xde8] sm:$0xff]
    %v635 = vld [vmem:[#allocation2 + $0xdf0] sm:$0xff]
    %v636 = vld [vmem:[#allocation2 + $0xdf8] sm:$0xff]
    %v637 = vld [vmem:[#allocation2 + $0xe00] sm:$0xff]
    %v638 = vld [vmem:[#allocation2 + $0xe08] sm:$0xff]
    %v639 = vld [vmem:[#allocation2 + $0xe10] sm:$0xff]
    %v640 = vld [vmem:[#allocation2 + $0xe18] sm:$0xff]
    %v641 = vld [vmem:[#allocation2 + $0xe20] sm:$0xff]
    %v642 = vld [vmem:[#allocation2 + $0xe28] sm:$0xff]
    %v643 = vld [vmem:[#allocation2 + $0xe30] sm:$0xff]
    %v644 = vld [vmem:[#allocation2 + $0xe38] sm:$0xff]
    %v645 = vld [vmem:[#allocation2 + $0xe40] sm:$0xff]
    %v646 = vld [vmem:[#allocation2 + $0xe48] sm:$0xff]
    %v647 = vld [vmem:[#allocation2 + $0xe50] sm:$0xff]
    %v648 = vld [vmem:[#allocation2 + $0xe58] sm:$0xff]
    %v649 = vld [vmem:[#allocation2 + $0xe60] sm:$0xff]
    %v650 = vld [vmem:[#allocation2 + $0xe68] sm:$0xff]
    %v651 = vld [vmem:[#allocation2 + $0xe70] sm:$0xff]
    %v652 = vld [vmem:[#allocation2 + $0xe78] sm:$0xff]
    %v653 = vld [vmem:[#allocation2 + $0xe80] sm:$0xff]
    %v654 = vld [vmem:[#allocation2 + $0xe88] sm:$0xff]
    %v655 = vld [vmem:[#allocation2 + $0xe90] sm:$0xff]
    %v656 = vld [vmem:[#allocation2 + $0xe98] sm:$0xff]
    %v657 = vld [vmem:[#allocation2 + $0xea0] sm:$0xff]
    %v658 = vld [vmem:[#allocation2 + $0xea8] sm:$0xff]
    %v659 = vld [vmem:[#allocation2 + $0xeb0] sm:$0xff]
    %v660 = vld [vmem:[#allocation2 + $0xeb8] sm:$0xff]
    %v661 = vld [vmem:[#allocation2 + $0xec0] sm:$0xff]
    %v662 = vld [vmem:[#allocation2 + $0xec8] sm:$0xff]
    %v663 = vld [vmem:[#allocation2 + $0xed0] sm:$0xff]
    %v664 = vld [vmem:[#allocation2 + $0xed8] sm:$0xff]
    %v665 = vld [vmem:[#allocation2 + $0xee0] sm:$0xff]
    %v666 = vld [vmem:[#allocation2 + $0xee8] sm:$0xff]
    %v667 = vld [vmem:[#allocation2 + $0xef0] sm:$0xff]
    %v668 = vld [vmem:[#allocation2 + $0xef8] sm:$0xff]
    %v669 = vld [vmem:[#allocation2 + $0xf00] sm:$0xff]
    %v670 = vld [vmem:[#allocation2 + $0xf08] sm:$0xff]
    %v671 = vld [vmem:[#allocation2 + $0xf10] sm:$0xff]
    %v672 = vld [vmem:[#allocation2 + $0xf18] sm:$0xff]
    %v673 = vld [vmem:[#allocation2 + $0xf20] sm:$0xff]
    %v674 = vld [vmem:[#allocation2 + $0xf28] sm:$0xff]
    %v675 = vld [vmem:[#allocation2 + $0xf30] sm:$0xff]
    %v676 = vld [vmem:[#allocation2 + $0xf38] sm:$0xff]
    %v677 = vld [vmem:[#allocation2 + $0xf40] sm:$0xff]
    %v678 = vld [vmem:[#allocation2 + $0xf48] sm:$0xff]
    %v679 = vld [vmem:[#allocation2 + $0xf50] sm:$0xff]
    %v680 = vld [vmem:[#allocation2 + $0xf58] sm:$0xff]
    %v681 = vld [vmem:[#allocation2 + $0xf60] sm:$0xff]
    %v682 = vld [vmem:[#allocation2 + $0xf68] sm:$0xff]
    %v683 = vld [vmem:[#allocation2 + $0xf70] sm:$0xff]
    %v684 = vld [vmem:[#allocation2 + $0xf78] sm:$0xff]
    %v685 = vld [vmem:[#allocation2 + $0xf80] sm:$0xff]
    %v686 = vld [vmem:[#allocation2 + $0xf88] sm:$0xff]
    %v687 = vld [vmem:[#allocation2 + $0xf90] sm:$0xff]
    %v688 = vld [vmem:[#allocation2 + $0xf98] sm:$0xff]
    %v689 = vld [vmem:[#allocation2 + $0xfa0] sm:$0xff]
    %v690 = vld [vmem:[#allocation2 + $0xfa8] sm:$0xff]
    %v691 = vld [vmem:[#allocation2 + $0xfb0] sm:$0xff]
    %v692 = vld [vmem:[#allocation2 + $0xfb8] sm:$0xff]
    %v693 = vld [vmem:[#allocation2 + $0xfc0] sm:$0xff]
    %v694 = vld [vmem:[#allocation2 + $0xfc8] sm:$0xff]
    %v695 = vld [vmem:[#allocation2 + $0xfd0] sm:$0xff]
    %v696 = vld [vmem:[#allocation2 + $0xfd8] sm:$0xff]
    %v697 = vld [vmem:[#allocation2 + $0xfe0] sm:$0xff]
    %v698 = vld [vmem:[#allocation2 + $0xfe8] sm:$0xff]
    %v699 = vld [vmem:[#allocation2 + $0xff0] sm:$0xff]
    %v700 = vld [vmem:[#allocation2 + $0xff8] sm:$0xff]
    %v1213 = vunpack.c.l.b16 %v189
    %v1214 = vunpack.c.h.b16 %v189
    %v1215 = vunpack.c.l.b16 %v190
    %v1216 = vunpack.c.h.b16 %v190
    %v1217 = vunpack.c.l.b16 %v191
    %v1218 = vunpack.c.h.b16 %v191
    %v1219 = vunpack.c.l.b16 %v192
    %v1220 = vunpack.c.h.b16 %v192
    %v1221 = vunpack.c.l.b16 %v193
    %v1222 = vunpack.c.h.b16 %v193
    %v1223 = vunpack.c.l.b16 %v194
    %v1224 = vunpack.c.h.b16 %v194
    %v1225 = vunpack.c.l.b16 %v195
    %v1226 = vunpack.c.h.b16 %v195
    %v1227 = vunpack.c.l.b16 %v196
    %v1228 = vunpack.c.h.b16 %v196
    %v1229 = vunpack.c.l.b16 %v197
    %v1230 = vunpack.c.h.b16 %v197
    %v1231 = vunpack.c.l.b16 %v198
    %v1232 = vunpack.c.h.b16 %v198
    %v1233 = vunpack.c.l.b16 %v199
    %v1234 = vunpack.c.h.b16 %v199
    %v1235 = vunpack.c.l.b16 %v200
    %v1236 = vunpack.c.h.b16 %v200
    %v1237 = vunpack.c.l.b16 %v201
    %v1238 = vunpack.c.h.b16 %v201
    %v1239 = vunpack.c.l.b16 %v202
    %v1240 = vunpack.c.h.b16 %v202
    %v1241 = vunpack.c.l.b16 %v203
    %v1242 = vunpack.c.h.b16 %v203
    %v1243 = vunpack.c.l.b16 %v204
    %v1244 = vunpack.c.h.b16 %v204
    %v1245 = vunpack.c.l.b16 %v205
    %v1246 = vunpack.c.h.b16 %v205
    %v1247 = vunpack.c.l.b16 %v206
    %v1248 = vunpack.c.h.b16 %v206
    %v1249 = vunpack.c.l.b16 %v207
    %v1250 = vunpack.c.h.b16 %v207
    %v1251 = vunpack.c.l.b16 %v208
    %v1252 = vunpack.c.h.b16 %v208
    %v1253 = vunpack.c.l.b16 %v209
    %v1254 = vunpack.c.h.b16 %v209
    %v1255 = vunpack.c.l.b16 %v210
    %v1256 = vunpack.c.h.b16 %v210
    %v1257 = vunpack.c.l.b16 %v211
    %v1258 = vunpack.c.h.b16 %v211
    %v1259 = vunpack.c.l.b16 %v212
    %v1260 = vunpack.c.h.b16 %v212
    %v1261 = vunpack.c.l.b16 %v213
    %v1262 = vunpack.c.h.b16 %v213
    %v1263 = vunpack.c.l.b16 %v214
    %v1264 = vunpack.c.h.b16 %v214
    %v1265 = vunpack.c.l.b16 %v215
    %v1266 = vunpack.c.h.b16 %v215
    %v1267 = vunpack.c.l.b16 %v216
    %v1268 = vunpack.c.h.b16 %v216
    %v1269 = vunpack.c.l.b16 %v217
    %v1270 = vunpack.c.h.b16 %v217
    %v1271 = vunpack.c.l.b16 %v218
    %v1272 = vunpack.c.h.b16 %v218
    %v1273 = vunpack.c.l.b16 %v219
    %v1274 = vunpack.c.h.b16 %v219
    %v1275 = vunpack.c.l.b16 %v220
    %v1276 = vunpack.c.h.b16 %v220
    %v1277 = vunpack.c.l.b16 %v221
    %v1278 = vunpack.c.h.b16 %v221
    %v1279 = vunpack.c.l.b16 %v222
    %v1280 = vunpack.c.h.b16 %v222
    %v1281 = vunpack.c.l.b16 %v223
    %v1282 = vunpack.c.h.b16 %v223
    %v1283 = vunpack.c.l.b16 %v224
    %v1284 = vunpack.c.h.b16 %v224
    %v1285 = vunpack.c.l.b16 %v225
    %v1286 = vunpack.c.h.b16 %v225
    %v1287 = vunpack.c.l.b16 %v226
    %v1288 = vunpack.c.h.b16 %v226
    %v1289 = vunpack.c.l.b16 %v227
    %v1290 = vunpack.c.h.b16 %v227
    %v1291 = vunpack.c.l.b16 %v228
    %v1292 = vunpack.c.h.b16 %v228
    %v1293 = vunpack.c.l.b16 %v229
    %v1294 = vunpack.c.h.b16 %v229
    %v1295 = vunpack.c.l.b16 %v230
    %v1296 = vunpack.c.h.b16 %v230
    %v1297 = vunpack.c.l.b16 %v231
    %v1298 = vunpack.c.h.b16 %v231
    %v1299 = vunpack.c.l.b16 %v232
    %v1300 = vunpack.c.h.b16 %v232
    %v1301 = vunpack.c.l.b16 %v233
    %v1302 = vunpack.c.h.b16 %v233
    %v1303 = vunpack.c.l.b16 %v234
    %v1304 = vunpack.c.h.b16 %v234
    %v1305 = vunpack.c.l.b16 %v235
    %v1306 = vunpack.c.h.b16 %v235
    %v1307 = vunpack.c.l.b16 %v236
    %v1308 = vunpack.c.h.b16 %v236
    %v1309 = vunpack.c.l.b16 %v237
    %v1310 = vunpack.c.h.b16 %v237
    %v1311 = vunpack.c.l.b16 %v238
    %v1312 = vunpack.c.h.b16 %v238
    %v1313 = vunpack.c.l.b16 %v239
    %v1314 = vunpack.c.h.b16 %v239
    %v1315 = vunpack.c.l.b16 %v240
    %v1316 = vunpack.c.h.b16 %v240
    %v1317 = vunpack.c.l.b16 %v241
    %v1318 = vunpack.c.h.b16 %v241
    %v1319 = vunpack.c.l.b16 %v242
    %v1320 = vunpack.c.h.b16 %v242
    %v1321 = vunpack.c.l.b16 %v243
    %v1322 = vunpack.c.h.b16 %v243
    %v1323 = vunpack.c.l.b16 %v244
    %v1324 = vunpack.c.h.b16 %v244
    %v1325 = vunpack.c.l.b16 %v245
    %v1326 = vunpack.c.h.b16 %v245
    %v1327 = vunpack.c.l.b16 %v246
    %v1328 = vunpack.c.h.b16 %v246
    %v1329 = vunpack.c.l.b16 %v247
    %v1330 = vunpack.c.h.b16 %v247
    %v1331 = vunpack.c.l.b16 %v248
    %v1332 = vunpack.c.h.b16 %v248
    %v1333 = vunpack.c.l.b16 %v249
    %v1334 = vunpack.c.h.b16 %v249
    %v1335 = vunpack.c.l.b16 %v250
    %v1336 = vunpack.c.h.b16 %v250
    %v1337 = vunpack.c.l.b16 %v251
    %v1338 = vunpack.c.h.b16 %v251
    %v1339 = vunpack.c.l.b16 %v252
    %v1340 = vunpack.c.h.b16 %v252
    %v1341 = vunpack.c.l.b16 %v253
    %v1342 = vunpack.c.h.b16 %v253
    %v1343 = vunpack.c.l.b16 %v254
    %v1344 = vunpack.c.h.b16 %v254
    %v1345 = vunpack.c.l.b16 %v255
    %v1346 = vunpack.c.h.b16 %v255
    %v1347 = vunpack.c.l.b16 %v256
    %v1348 = vunpack.c.h.b16 %v256
    %v1349 = vunpack.c.l.b16 %v257
    %v1350 = vunpack.c.h.b16 %v257
    %v1351 = vunpack.c.l.b16 %v258
    %v1352 = vunpack.c.h.b16 %v258
    %v1353 = vunpack.c.l.b16 %v259
    %v1354 = vunpack.c.h.b16 %v259
    %v1355 = vunpack.c.l.b16 %v260
    %v1356 = vunpack.c.h.b16 %v260
    %v1357 = vunpack.c.l.b16 %v261
    %v1358 = vunpack.c.h.b16 %v261
    %v1359 = vunpack.c.l.b16 %v262
    %v1360 = vunpack.c.h.b16 %v262
    %v1361 = vunpack.c.l.b16 %v263
    %v1362 = vunpack.c.h.b16 %v263
    %v1363 = vunpack.c.l.b16 %v264
    %v1364 = vunpack.c.h.b16 %v264
    %v1365 = vunpack.c.l.b16 %v265
    %v1366 = vunpack.c.h.b16 %v265
    %v1367 = vunpack.c.l.b16 %v266
    %v1368 = vunpack.c.h.b16 %v266
    %v1369 = vunpack.c.l.b16 %v267
    %v1370 = vunpack.c.h.b16 %v267
    %v1371 = vunpack.c.l.b16 %v268
    %v1372 = vunpack.c.h.b16 %v268
    %v1373 = vunpack.c.l.b16 %v269
    %v1374 = vunpack.c.h.b16 %v269
    %v1375 = vunpack.c.l.b16 %v270
    %v1376 = vunpack.c.h.b16 %v270
    %v1377 = vunpack.c.l.b16 %v271
    %v1378 = vunpack.c.h.b16 %v271
    %v1379 = vunpack.c.l.b16 %v272
    %v1380 = vunpack.c.h.b16 %v272
    %v1381 = vunpack.c.l.b16 %v273
    %v1382 = vunpack.c.h.b16 %v273
    %v1383 = vunpack.c.l.b16 %v274
    %v1384 = vunpack.c.h.b16 %v274
    %v1385 = vunpack.c.l.b16 %v275
    %v1386 = vunpack.c.h.b16 %v275
    %v1387 = vunpack.c.l.b16 %v276
    %v1388 = vunpack.c.h.b16 %v276
    %v1389 = vunpack.c.l.b16 %v277
    %v1390 = vunpack.c.h.b16 %v277
    %v1391 = vunpack.c.l.b16 %v278
    %v1392 = vunpack.c.h.b16 %v278
    %v1393 = vunpack.c.l.b16 %v279
    %v1394 = vunpack.c.h.b16 %v279
    %v1395 = vunpack.c.l.b16 %v280
    %v1396 = vunpack.c.h.b16 %v280
    %v1397 = vunpack.c.l.b16 %v281
    %v1398 = vunpack.c.h.b16 %v281
    %v1399 = vunpack.c.l.b16 %v282
    %v1400 = vunpack.c.h.b16 %v282
    %v1401 = vunpack.c.l.b16 %v283
    %v1402 = vunpack.c.h.b16 %v283
    %v1403 = vunpack.c.l.b16 %v284
    %v1404 = vunpack.c.h.b16 %v284
    %v1405 = vunpack.c.l.b16 %v285
    %v1406 = vunpack.c.h.b16 %v285
    %v1407 = vunpack.c.l.b16 %v286
    %v1408 = vunpack.c.h.b16 %v286
    %v1409 = vunpack.c.l.b16 %v287
    %v1410 = vunpack.c.h.b16 %v287
    %v1411 = vunpack.c.l.b16 %v288
    %v1412 = vunpack.c.h.b16 %v288
    %v1413 = vunpack.c.l.b16 %v289
    %v1414 = vunpack.c.h.b16 %v289
    %v1415 = vunpack.c.l.b16 %v290
    %v1416 = vunpack.c.h.b16 %v290
    %v1417 = vunpack.c.l.b16 %v291
    %v1418 = vunpack.c.h.b16 %v291
    %v1419 = vunpack.c.l.b16 %v292
    %v1420 = vunpack.c.h.b16 %v292
    %v1421 = vunpack.c.l.b16 %v293
    %v1422 = vunpack.c.h.b16 %v293
    %v1423 = vunpack.c.l.b16 %v294
    %v1424 = vunpack.c.h.b16 %v294
    %v1425 = vunpack.c.l.b16 %v295
    %v1426 = vunpack.c.h.b16 %v295
    %v1427 = vunpack.c.l.b16 %v296
    %v1428 = vunpack.c.h.b16 %v296
    %v1429 = vunpack.c.l.b16 %v297
    %v1430 = vunpack.c.h.b16 %v297
    %v1431 = vunpack.c.l.b16 %v298
    %v1432 = vunpack.c.h.b16 %v298
    %v1433 = vunpack.c.l.b16 %v299
    %v1434 = vunpack.c.h.b16 %v299
    %v1435 = vunpack.c.l.b16 %v300
    %v1436 = vunpack.c.h.b16 %v300
    %v1437 = vunpack.c.l.b16 %v301
    %v1438 = vunpack.c.h.b16 %v301
    %v1439 = vunpack.c.l.b16 %v302
    %v1440 = vunpack.c.h.b16 %v302
    %v1441 = vunpack.c.l.b16 %v303
    %v1442 = vunpack.c.h.b16 %v303
    %v1443 = vunpack.c.l.b16 %v304
    %v1444 = vunpack.c.h.b16 %v304
    %v1445 = vunpack.c.l.b16 %v305
    %v1446 = vunpack.c.h.b16 %v305
    %v1447 = vunpack.c.l.b16 %v306
    %v1448 = vunpack.c.h.b16 %v306
    %v1449 = vunpack.c.l.b16 %v307
    %v1450 = vunpack.c.h.b16 %v307
    %v1451 = vunpack.c.l.b16 %v308
    %v1452 = vunpack.c.h.b16 %v308
    %v1453 = vunpack.c.l.b16 %v309
    %v1454 = vunpack.c.h.b16 %v309
    %v1455 = vunpack.c.l.b16 %v310
    %v1456 = vunpack.c.h.b16 %v310
    %v1457 = vunpack.c.l.b16 %v311
    %v1458 = vunpack.c.h.b16 %v311
    %v1459 = vunpack.c.l.b16 %v312
    %v1460 = vunpack.c.h.b16 %v312
    %v1461 = vunpack.c.l.b16 %v313
    %v1462 = vunpack.c.h.b16 %v313
    %v1463 = vunpack.c.l.b16 %v314
    %v1464 = vunpack.c.h.b16 %v314
    %v1465 = vunpack.c.l.b16 %v315
    %v1466 = vunpack.c.h.b16 %v315
    %v1467 = vunpack.c.l.b16 %v316
    %v1468 = vunpack.c.h.b16 %v316
    %v1469 = vunpack.c.l.b16 %v317
    %v1470 = vunpack.c.h.b16 %v317
    %v1471 = vunpack.c.l.b16 %v318
    %v1472 = vunpack.c.h.b16 %v318
    %v1473 = vunpack.c.l.b16 %v319
    %v1474 = vunpack.c.h.b16 %v319
    %v1475 = vunpack.c.l.b16 %v320
    %v1476 = vunpack.c.h.b16 %v320
    %v1477 = vunpack.c.l.b16 %v321
    %v1478 = vunpack.c.h.b16 %v321
    %v1479 = vunpack.c.l.b16 %v322
    %v1480 = vunpack.c.h.b16 %v322
    %v1481 = vunpack.c.l.b16 %v323
    %v1482 = vunpack.c.h.b16 %v323
    %v1483 = vunpack.c.l.b16 %v324
    %v1484 = vunpack.c.h.b16 %v324
    %v1485 = vunpack.c.l.b16 %v325
    %v1486 = vunpack.c.h.b16 %v325
    %v1487 = vunpack.c.l.b16 %v326
    %v1488 = vunpack.c.h.b16 %v326
    %v1489 = vunpack.c.l.b16 %v327
    %v1490 = vunpack.c.h.b16 %v327
    %v1491 = vunpack.c.l.b16 %v328
    %v1492 = vunpack.c.h.b16 %v328
    %v1493 = vunpack.c.l.b16 %v329
    %v1494 = vunpack.c.h.b16 %v329
    %v1495 = vunpack.c.l.b16 %v330
    %v1496 = vunpack.c.h.b16 %v330
    %v1497 = vunpack.c.l.b16 %v331
    %v1498 = vunpack.c.h.b16 %v331
    %v1499 = vunpack.c.l.b16 %v332
    %v1500 = vunpack.c.h.b16 %v332
    %v1501 = vunpack.c.l.b16 %v333
    %v1502 = vunpack.c.h.b16 %v333
    %v1503 = vunpack.c.l.b16 %v334
    %v1504 = vunpack.c.h.b16 %v334
    %v1505 = vunpack.c.l.b16 %v335
    %v1506 = vunpack.c.h.b16 %v335
    %v1507 = vunpack.c.l.b16 %v336
    %v1508 = vunpack.c.h.b16 %v336
    %v1509 = vunpack.c.l.b16 %v337
    %v1510 = vunpack.c.h.b16 %v337
    %v1511 = vunpack.c.l.b16 %v338
    %v1512 = vunpack.c.h.b16 %v338
    %v1513 = vunpack.c.l.b16 %v339
    %v1514 = vunpack.c.h.b16 %v339
    %v1515 = vunpack.c.l.b16 %v340
    %v1516 = vunpack.c.h.b16 %v340
    %v1517 = vunpack.c.l.b16 %v341
    %v1518 = vunpack.c.h.b16 %v341
    %v1519 = vunpack.c.l.b16 %v342
    %v1520 = vunpack.c.h.b16 %v342
    %v1521 = vunpack.c.l.b16 %v343
    %v1522 = vunpack.c.h.b16 %v343
    %v1523 = vunpack.c.l.b16 %v344
    %v1524 = vunpack.c.h.b16 %v344
    %v1525 = vunpack.c.l.b16 %v345
    %v1526 = vunpack.c.h.b16 %v345
    %v1527 = vunpack.c.l.b16 %v346
    %v1528 = vunpack.c.h.b16 %v346
    %v1529 = vunpack.c.l.b16 %v347
    %v1530 = vunpack.c.h.b16 %v347
    %v1531 = vunpack.c.l.b16 %v348
    %v1532 = vunpack.c.h.b16 %v348
    %v1533 = vunpack.c.l.b16 %v349
    %v1534 = vunpack.c.h.b16 %v349
    %v1535 = vunpack.c.l.b16 %v350
    %v1536 = vunpack.c.h.b16 %v350
    %v1537 = vunpack.c.l.b16 %v351
    %v1538 = vunpack.c.h.b16 %v351
    %v1539 = vunpack.c.l.b16 %v352
    %v1540 = vunpack.c.h.b16 %v352
    %v1541 = vunpack.c.l.b16 %v353
    %v1542 = vunpack.c.h.b16 %v353
    %v1543 = vunpack.c.l.b16 %v354
    %v1544 = vunpack.c.h.b16 %v354
    %v1545 = vunpack.c.l.b16 %v355
    %v1546 = vunpack.c.h.b16 %v355
    %v1547 = vunpack.c.l.b16 %v356
    %v1548 = vunpack.c.h.b16 %v356
    %v1549 = vunpack.c.l.b16 %v357
    %v1550 = vunpack.c.h.b16 %v357
    %v1551 = vunpack.c.l.b16 %v358
    %v1552 = vunpack.c.h.b16 %v358
    %v1553 = vunpack.c.l.b16 %v359
    %v1554 = vunpack.c.h.b16 %v359
    %v1555 = vunpack.c.l.b16 %v360
    %v1556 = vunpack.c.h.b16 %v360
    %v1557 = vunpack.c.l.b16 %v361
    %v1558 = vunpack.c.h.b16 %v361
    %v1559 = vunpack.c.l.b16 %v362
    %v1560 = vunpack.c.h.b16 %v362
    %v1561 = vunpack.c.l.b16 %v363
    %v1562 = vunpack.c.h.b16 %v363
    %v1563 = vunpack.c.l.b16 %v364
    %v1564 = vunpack.c.h.b16 %v364
    %v1565 = vunpack.c.l.b16 %v365
    %v1566 = vunpack.c.h.b16 %v365
    %v1567 = vunpack.c.l.b16 %v366
    %v1568 = vunpack.c.h.b16 %v366
    %v1569 = vunpack.c.l.b16 %v367
    %v1570 = vunpack.c.h.b16 %v367
    %v1571 = vunpack.c.l.b16 %v368
    %v1572 = vunpack.c.h.b16 %v368
    %v1573 = vunpack.c.l.b16 %v369
    %v1574 = vunpack.c.h.b16 %v369
    %v1575 = vunpack.c.l.b16 %v370
    %v1576 = vunpack.c.h.b16 %v370
    %v1577 = vunpack.c.l.b16 %v371
    %v1578 = vunpack.c.h.b16 %v371
    %v1579 = vunpack.c.l.b16 %v372
    %v1580 = vunpack.c.h.b16 %v372
    %v1581 = vunpack.c.l.b16 %v373
    %v1582 = vunpack.c.h.b16 %v373
    %v1583 = vunpack.c.l.b16 %v374
    %v1584 = vunpack.c.h.b16 %v374
    %v1585 = vunpack.c.l.b16 %v375
    %v1586 = vunpack.c.h.b16 %v375
    %v1587 = vunpack.c.l.b16 %v376
    %v1588 = vunpack.c.h.b16 %v376
    %v1589 = vunpack.c.l.b16 %v377
    %v1590 = vunpack.c.h.b16 %v377
    %v1591 = vunpack.c.l.b16 %v378
    %v1592 = vunpack.c.h.b16 %v378
    %v1593 = vunpack.c.l.b16 %v379
    %v1594 = vunpack.c.h.b16 %v379
    %v1595 = vunpack.c.l.b16 %v380
    %v1596 = vunpack.c.h.b16 %v380
    %v1597 = vunpack.c.l.b16 %v381
    %v1598 = vunpack.c.h.b16 %v381
    %v1599 = vunpack.c.l.b16 %v382
    %v1600 = vunpack.c.h.b16 %v382
    %v1601 = vunpack.c.l.b16 %v383
    %v1602 = vunpack.c.h.b16 %v383
    %v1603 = vunpack.c.l.b16 %v384
    %v1604 = vunpack.c.h.b16 %v384
    %v1605 = vunpack.c.l.b16 %v385
    %v1606 = vunpack.c.h.b16 %v385
    %v1607 = vunpack.c.l.b16 %v386
    %v1608 = vunpack.c.h.b16 %v386
    %v1609 = vunpack.c.l.b16 %v387
    %v1610 = vunpack.c.h.b16 %v387
    %v1611 = vunpack.c.l.b16 %v388
    %v1612 = vunpack.c.h.b16 %v388
    %v1613 = vunpack.c.l.b16 %v389
    %v1614 = vunpack.c.h.b16 %v389
    %v1615 = vunpack.c.l.b16 %v390
    %v1616 = vunpack.c.h.b16 %v390
    %v1617 = vunpack.c.l.b16 %v391
    %v1618 = vunpack.c.h.b16 %v391
    %v1619 = vunpack.c.l.b16 %v392
    %v1620 = vunpack.c.h.b16 %v392
    %v1621 = vunpack.c.l.b16 %v393
    %v1622 = vunpack.c.h.b16 %v393
    %v1623 = vunpack.c.l.b16 %v394
    %v1624 = vunpack.c.h.b16 %v394
    %v1625 = vunpack.c.l.b16 %v395
    %v1626 = vunpack.c.h.b16 %v395
    %v1627 = vunpack.c.l.b16 %v396
    %v1628 = vunpack.c.h.b16 %v396
    %v1629 = vunpack.c.l.b16 %v397
    %v1630 = vunpack.c.h.b16 %v397
    %v1631 = vunpack.c.l.b16 %v398
    %v1632 = vunpack.c.h.b16 %v398
    %v1633 = vunpack.c.l.b16 %v399
    %v1634 = vunpack.c.h.b16 %v399
    %v1635 = vunpack.c.l.b16 %v400
    %v1636 = vunpack.c.h.b16 %v400
    %v1637 = vunpack.c.l.b16 %v401
    %v1638 = vunpack.c.h.b16 %v401
    %v1639 = vunpack.c.l.b16 %v402
    %v1640 = vunpack.c.h.b16 %v402
    %v1641 = vunpack.c.l.b16 %v403
    %v1642 = vunpack.c.h.b16 %v403
    %v1643 = vunpack.c.l.b16 %v404
    %v1644 = vunpack.c.h.b16 %v404
    %v1645 = vunpack.c.l.b16 %v405
    %v1646 = vunpack.c.h.b16 %v405
    %v1647 = vunpack.c.l.b16 %v406
    %v1648 = vunpack.c.h.b16 %v406
    %v1649 = vunpack.c.l.b16 %v407
    %v1650 = vunpack.c.h.b16 %v407
    %v1651 = vunpack.c.l.b16 %v408
    %v1652 = vunpack.c.h.b16 %v408
    %v1653 = vunpack.c.l.b16 %v409
    %v1654 = vunpack.c.h.b16 %v409
    %v1655 = vunpack.c.l.b16 %v410
    %v1656 = vunpack.c.h.b16 %v410
    %v1657 = vunpack.c.l.b16 %v411
    %v1658 = vunpack.c.h.b16 %v411
    %v1659 = vunpack.c.l.b16 %v412
    %v1660 = vunpack.c.h.b16 %v412
    %v1661 = vunpack.c.l.b16 %v413
    %v1662 = vunpack.c.h.b16 %v413
    %v1663 = vunpack.c.l.b16 %v414
    %v1664 = vunpack.c.h.b16 %v414
    %v1665 = vunpack.c.l.b16 %v415
    %v1666 = vunpack.c.h.b16 %v415
    %v1667 = vunpack.c.l.b16 %v416
    %v1668 = vunpack.c.h.b16 %v416
    %v1669 = vunpack.c.l.b16 %v417
    %v1670 = vunpack.c.h.b16 %v417
    %v1671 = vunpack.c.l.b16 %v418
    %v1672 = vunpack.c.h.b16 %v418
    %v1673 = vunpack.c.l.b16 %v419
    %v1674 = vunpack.c.h.b16 %v419
    %v1675 = vunpack.c.l.b16 %v420
    %v1676 = vunpack.c.h.b16 %v420
    %v1677 = vunpack.c.l.b16 %v421
    %v1678 = vunpack.c.h.b16 %v421
    %v1679 = vunpack.c.l.b16 %v422
    %v1680 = vunpack.c.h.b16 %v422
    %v1681 = vunpack.c.l.b16 %v423
    %v1682 = vunpack.c.h.b16 %v423
    %v1683 = vunpack.c.l.b16 %v424
    %v1684 = vunpack.c.h.b16 %v424
    %v1685 = vunpack.c.l.b16 %v425
    %v1686 = vunpack.c.h.b16 %v425
    %v1687 = vunpack.c.l.b16 %v426
    %v1688 = vunpack.c.h.b16 %v426
    %v1689 = vunpack.c.l.b16 %v427
    %v1690 = vunpack.c.h.b16 %v427
    %v1691 = vunpack.c.l.b16 %v428
    %v1692 = vunpack.c.h.b16 %v428
    %v1693 = vunpack.c.l.b16 %v429
    %v1694 = vunpack.c.h.b16 %v429
    %v1695 = vunpack.c.l.b16 %v430
    %v1696 = vunpack.c.h.b16 %v430
    %v1697 = vunpack.c.l.b16 %v431
    %v1698 = vunpack.c.h.b16 %v431
    %v1699 = vunpack.c.l.b16 %v432
    %v1700 = vunpack.c.h.b16 %v432
    %v1701 = vunpack.c.l.b16 %v433
    %v1702 = vunpack.c.h.b16 %v433
    %v1703 = vunpack.c.l.b16 %v434
    %v1704 = vunpack.c.h.b16 %v434
    %v1705 = vunpack.c.l.b16 %v435
    %v1706 = vunpack.c.h.b16 %v435
    %v1707 = vunpack.c.l.b16 %v436
    %v1708 = vunpack.c.h.b16 %v436
    %v1709 = vunpack.c.l.b16 %v437
    %v1710 = vunpack.c.h.b16 %v437
    %v1711 = vunpack.c.l.b16 %v438
    %v1712 = vunpack.c.h.b16 %v438
    %v1713 = vunpack.c.l.b16 %v439
    %v1714 = vunpack.c.h.b16 %v439
    %v1715 = vunpack.c.l.b16 %v440
    %v1716 = vunpack.c.h.b16 %v440
    %v1717 = vunpack.c.l.b16 %v441
    %v1718 = vunpack.c.h.b16 %v441
    %v1719 = vunpack.c.l.b16 %v442
    %v1720 = vunpack.c.h.b16 %v442
    %v1721 = vunpack.c.l.b16 %v443
    %v1722 = vunpack.c.h.b16 %v443
    %v1723 = vunpack.c.l.b16 %v444
    %v1724 = vunpack.c.h.b16 %v444
    %v1725 = vunpack.c.l.b16 %v445
    %v1726 = vunpack.c.h.b16 %v445
    %v1727 = vunpack.c.l.b16 %v446
    %v1728 = vunpack.c.h.b16 %v446
    %v1729 = vunpack.c.l.b16 %v447
    %v1730 = vunpack.c.h.b16 %v447
    %v1731 = vunpack.c.l.b16 %v448
    %v1732 = vunpack.c.h.b16 %v448
    %v1733 = vunpack.c.l.b16 %v449
    %v1734 = vunpack.c.h.b16 %v449
    %v1735 = vunpack.c.l.b16 %v450
    %v1736 = vunpack.c.h.b16 %v450
    %v1737 = vunpack.c.l.b16 %v451
    %v1738 = vunpack.c.h.b16 %v451
    %v1739 = vunpack.c.l.b16 %v452
    %v1740 = vunpack.c.h.b16 %v452
    %v1741 = vunpack.c.l.b16 %v453
    %v1742 = vunpack.c.h.b16 %v453
    %v1743 = vunpack.c.l.b16 %v454
    %v1744 = vunpack.c.h.b16 %v454
    %v1745 = vunpack.c.l.b16 %v455
    %v1746 = vunpack.c.h.b16 %v455
    %v1747 = vunpack.c.l.b16 %v456
    %v1748 = vunpack.c.h.b16 %v456
    %v1749 = vunpack.c.l.b16 %v457
    %v1750 = vunpack.c.h.b16 %v457
    %v1751 = vunpack.c.l.b16 %v458
    %v1752 = vunpack.c.h.b16 %v458
    %v1753 = vunpack.c.l.b16 %v459
    %v1754 = vunpack.c.h.b16 %v459
    %v1755 = vunpack.c.l.b16 %v460
    %v1756 = vunpack.c.h.b16 %v460
    %v1757 = vunpack.c.l.b16 %v461
    %v1758 = vunpack.c.h.b16 %v461
    %v1759 = vunpack.c.l.b16 %v462
    %v1760 = vunpack.c.h.b16 %v462
    %v1761 = vunpack.c.l.b16 %v463
    %v1762 = vunpack.c.h.b16 %v463
    %v1763 = vunpack.c.l.b16 %v464
    %v1764 = vunpack.c.h.b16 %v464
    %v1765 = vunpack.c.l.b16 %v465
    %v1766 = vunpack.c.h.b16 %v465
    %v1767 = vunpack.c.l.b16 %v466
    %v1768 = vunpack.c.h.b16 %v466
    %v1769 = vunpack.c.l.b16 %v467
    %v1770 = vunpack.c.h.b16 %v467
    %v1771 = vunpack.c.l.b16 %v468
    %v1772 = vunpack.c.h.b16 %v468
    %v1773 = vunpack.c.l.b16 %v469
    %v1774 = vunpack.c.h.b16 %v469
    %v1775 = vunpack.c.l.b16 %v470
    %v1776 = vunpack.c.h.b16 %v470
    %v1777 = vunpack.c.l.b16 %v471
    %v1778 = vunpack.c.h.b16 %v471
    %v1779 = vunpack.c.l.b16 %v472
    %v1780 = vunpack.c.h.b16 %v472
    %v1781 = vunpack.c.l.b16 %v473
    %v1782 = vunpack.c.h.b16 %v473
    %v1783 = vunpack.c.l.b16 %v474
    %v1784 = vunpack.c.h.b16 %v474
    %v1785 = vunpack.c.l.b16 %v475
    %v1786 = vunpack.c.h.b16 %v475
    %v1787 = vunpack.c.l.b16 %v476
    %v1788 = vunpack.c.h.b16 %v476
    %v1789 = vunpack.c.l.b16 %v477
    %v1790 = vunpack.c.h.b16 %v477
    %v1791 = vunpack.c.l.b16 %v478
    %v1792 = vunpack.c.h.b16 %v478
    %v1793 = vunpack.c.l.b16 %v479
    %v1794 = vunpack.c.h.b16 %v479
    %v1795 = vunpack.c.l.b16 %v480
    %v1796 = vunpack.c.h.b16 %v480
    %v1797 = vunpack.c.l.b16 %v481
    %v1798 = vunpack.c.h.b16 %v481
    %v1799 = vunpack.c.l.b16 %v482
    %v1800 = vunpack.c.h.b16 %v482
    %v1801 = vunpack.c.l.b16 %v483
    %v1802 = vunpack.c.h.b16 %v483
    %v1803 = vunpack.c.l.b16 %v484
    %v1804 = vunpack.c.h.b16 %v484
    %v1805 = vunpack.c.l.b16 %v485
    %v1806 = vunpack.c.h.b16 %v485
    %v1807 = vunpack.c.l.b16 %v486
    %v1808 = vunpack.c.h.b16 %v486
    %v1809 = vunpack.c.l.b16 %v487
    %v1810 = vunpack.c.h.b16 %v487
    %v1811 = vunpack.c.l.b16 %v488
    %v1812 = vunpack.c.h.b16 %v488
    %v1813 = vunpack.c.l.b16 %v489
    %v1814 = vunpack.c.h.b16 %v489
    %v1815 = vunpack.c.l.b16 %v490
    %v1816 = vunpack.c.h.b16 %v490
    %v1817 = vunpack.c.l.b16 %v491
    %v1818 = vunpack.c.h.b16 %v491
    %v1819 = vunpack.c.l.b16 %v492
    %v1820 = vunpack.c.h.b16 %v492
    %v1821 = vunpack.c.l.b16 %v493
    %v1822 = vunpack.c.h.b16 %v493
    %v1823 = vunpack.c.l.b16 %v494
    %v1824 = vunpack.c.h.b16 %v494
    %v1825 = vunpack.c.l.b16 %v495
    %v1826 = vunpack.c.h.b16 %v495
    %v1827 = vunpack.c.l.b16 %v496
    %v1828 = vunpack.c.h.b16 %v496
    %v1829 = vunpack.c.l.b16 %v497
    %v1830 = vunpack.c.h.b16 %v497
    %v1831 = vunpack.c.l.b16 %v498
    %v1832 = vunpack.c.h.b16 %v498
    %v1833 = vunpack.c.l.b16 %v499
    %v1834 = vunpack.c.h.b16 %v499
    %v1835 = vunpack.c.l.b16 %v500
    %v1836 = vunpack.c.h.b16 %v500
    %v1837 = vunpack.c.l.b16 %v501
    %v1838 = vunpack.c.h.b16 %v501
    %v1839 = vunpack.c.l.b16 %v502
    %v1840 = vunpack.c.h.b16 %v502
    %v1841 = vunpack.c.l.b16 %v503
    %v1842 = vunpack.c.h.b16 %v503
    %v1843 = vunpack.c.l.b16 %v504
    %v1844 = vunpack.c.h.b16 %v504
    %v1845 = vunpack.c.l.b16 %v505
    %v1846 = vunpack.c.h.b16 %v505
    %v1847 = vunpack.c.l.b16 %v506
    %v1848 = vunpack.c.h.b16 %v506
    %v1849 = vunpack.c.l.b16 %v507
    %v1850 = vunpack.c.h.b16 %v507
    %v1851 = vunpack.c.l.b16 %v508
    %v1852 = vunpack.c.h.b16 %v508
    %v1853 = vunpack.c.l.b16 %v509
    %v1854 = vunpack.c.h.b16 %v509
    %v1855 = vunpack.c.l.b16 %v510
    %v1856 = vunpack.c.h.b16 %v510
    %v1857 = vunpack.c.l.b16 %v511
    %v1858 = vunpack.c.h.b16 %v511
    %v1859 = vunpack.c.l.b16 %v512
    %v1860 = vunpack.c.h.b16 %v512
    %v1861 = vunpack.c.l.b16 %v513
    %v1862 = vunpack.c.h.b16 %v513
    %v1863 = vunpack.c.l.b16 %v514
    %v1864 = vunpack.c.h.b16 %v514
    %v1865 = vunpack.c.l.b16 %v515
    %v1866 = vunpack.c.h.b16 %v515
    %v1867 = vunpack.c.l.b16 %v516
    %v1868 = vunpack.c.h.b16 %v516
    %v1869 = vunpack.c.l.b16 %v517
    %v1870 = vunpack.c.h.b16 %v517
    %v1871 = vunpack.c.l.b16 %v518
    %v1872 = vunpack.c.h.b16 %v518
    %v1873 = vunpack.c.l.b16 %v519
    %v1874 = vunpack.c.h.b16 %v519
    %v1875 = vunpack.c.l.b16 %v520
    %v1876 = vunpack.c.h.b16 %v520
    %v1877 = vunpack.c.l.b16 %v521
    %v1878 = vunpack.c.h.b16 %v521
    %v1879 = vunpack.c.l.b16 %v522
    %v1880 = vunpack.c.h.b16 %v522
    %v1881 = vunpack.c.l.b16 %v523
    %v1882 = vunpack.c.h.b16 %v523
    %v1883 = vunpack.c.l.b16 %v524
    %v1884 = vunpack.c.h.b16 %v524
    %v1885 = vunpack.c.l.b16 %v525
    %v1886 = vunpack.c.h.b16 %v525
    %v1887 = vunpack.c.l.b16 %v526
    %v1888 = vunpack.c.h.b16 %v526
    %v1889 = vunpack.c.l.b16 %v527
    %v1890 = vunpack.c.h.b16 %v527
    %v1891 = vunpack.c.l.b16 %v528
    %v1892 = vunpack.c.h.b16 %v528
    %v1893 = vunpack.c.l.b16 %v529
    %v1894 = vunpack.c.h.b16 %v529
    %v1895 = vunpack.c.l.b16 %v530
    %v1896 = vunpack.c.h.b16 %v530
    %v1897 = vunpack.c.l.b16 %v531
    %v1898 = vunpack.c.h.b16 %v531
    %v1899 = vunpack.c.l.b16 %v532
    %v1900 = vunpack.c.h.b16 %v532
    %v1901 = vunpack.c.l.b16 %v533
    %v1902 = vunpack.c.h.b16 %v533
    %v1903 = vunpack.c.l.b16 %v534
    %v1904 = vunpack.c.h.b16 %v534
    %v1905 = vunpack.c.l.b16 %v535
    %v1906 = vunpack.c.h.b16 %v535
    %v1907 = vunpack.c.l.b16 %v536
    %v1908 = vunpack.c.h.b16 %v536
    %v1909 = vunpack.c.l.b16 %v537
    %v1910 = vunpack.c.h.b16 %v537
    %v1911 = vunpack.c.l.b16 %v538
    %v1912 = vunpack.c.h.b16 %v538
    %v1913 = vunpack.c.l.b16 %v539
    %v1914 = vunpack.c.h.b16 %v539
    %v1915 = vunpack.c.l.b16 %v540
    %v1916 = vunpack.c.h.b16 %v540
    %v1917 = vunpack.c.l.b16 %v541
    %v1918 = vunpack.c.h.b16 %v541
    %v1919 = vunpack.c.l.b16 %v542
    %v1920 = vunpack.c.h.b16 %v542
    %v1921 = vunpack.c.l.b16 %v543
    %v1922 = vunpack.c.h.b16 %v543
    %v1923 = vunpack.c.l.b16 %v544
    %v1924 = vunpack.c.h.b16 %v544
    %v1925 = vunpack.c.l.b16 %v545
    %v1926 = vunpack.c.h.b16 %v545
    %v1927 = vunpack.c.l.b16 %v546
    %v1928 = vunpack.c.h.b16 %v546
    %v1929 = vunpack.c.l.b16 %v547
    %v1930 = vunpack.c.h.b16 %v547
    %v1931 = vunpack.c.l.b16 %v548
    %v1932 = vunpack.c.h.b16 %v548
    %v1933 = vunpack.c.l.b16 %v549
    %v1934 = vunpack.c.h.b16 %v549
    %v1935 = vunpack.c.l.b16 %v550
    %v1936 = vunpack.c.h.b16 %v550
    %v1937 = vunpack.c.l.b16 %v551
    %v1938 = vunpack.c.h.b16 %v551
    %v1939 = vunpack.c.l.b16 %v552
    %v1940 = vunpack.c.h.b16 %v552
    %v1941 = vunpack.c.l.b16 %v553
    %v1942 = vunpack.c.h.b16 %v553
    %v1943 = vunpack.c.l.b16 %v554
    %v1944 = vunpack.c.h.b16 %v554
    %v1945 = vunpack.c.l.b16 %v555
    %v1946 = vunpack.c.h.b16 %v555
    %v1947 = vunpack.c.l.b16 %v556
    %v1948 = vunpack.c.h.b16 %v556
    %v1949 = vunpack.c.l.b16 %v557
    %v1950 = vunpack.c.h.b16 %v557
    %v1951 = vunpack.c.l.b16 %v558
    %v1952 = vunpack.c.h.b16 %v558
    %v1953 = vunpack.c.l.b16 %v559
    %v1954 = vunpack.c.h.b16 %v559
    %v1955 = vunpack.c.l.b16 %v560
    %v1956 = vunpack.c.h.b16 %v560
    %v1957 = vunpack.c.l.b16 %v561
    %v1958 = vunpack.c.h.b16 %v561
    %v1959 = vunpack.c.l.b16 %v562
    %v1960 = vunpack.c.h.b16 %v562
    %v1961 = vunpack.c.l.b16 %v563
    %v1962 = vunpack.c.h.b16 %v563
    %v1963 = vunpack.c.l.b16 %v564
    %v1964 = vunpack.c.h.b16 %v564
    %v1965 = vunpack.c.l.b16 %v565
    %v1966 = vunpack.c.h.b16 %v565
    %v1967 = vunpack.c.l.b16 %v566
    %v1968 = vunpack.c.h.b16 %v566
    %v1969 = vunpack.c.l.b16 %v567
    %v1970 = vunpack.c.h.b16 %v567
    %v1971 = vunpack.c.l.b16 %v568
    %v1972 = vunpack.c.h.b16 %v568
    %v1973 = vunpack.c.l.b16 %v569
    %v1974 = vunpack.c.h.b16 %v569
    %v1975 = vunpack.c.l.b16 %v570
    %v1976 = vunpack.c.h.b16 %v570
    %v1977 = vunpack.c.l.b16 %v571
    %v1978 = vunpack.c.h.b16 %v571
    %v1979 = vunpack.c.l.b16 %v572
    %v1980 = vunpack.c.h.b16 %v572
    %v1981 = vunpack.c.l.b16 %v573
    %v1982 = vunpack.c.h.b16 %v573
    %v1983 = vunpack.c.l.b16 %v574
    %v1984 = vunpack.c.h.b16 %v574
    %v1985 = vunpack.c.l.b16 %v575
    %v1986 = vunpack.c.h.b16 %v575
    %v1987 = vunpack.c.l.b16 %v576
    %v1988 = vunpack.c.h.b16 %v576
    %v1989 = vunpack.c.l.b16 %v577
    %v1990 = vunpack.c.h.b16 %v577
    %v1991 = vunpack.c.l.b16 %v578
    %v1992 = vunpack.c.h.b16 %v578
    %v1993 = vunpack.c.l.b16 %v579
    %v1994 = vunpack.c.h.b16 %v579
    %v1995 = vunpack.c.l.b16 %v580
    %v1996 = vunpack.c.h.b16 %v580
    %v1997 = vunpack.c.l.b16 %v581
    %v1998 = vunpack.c.h.b16 %v581
    %v1999 = vunpack.c.l.b16 %v582
    %v2000 = vunpack.c.h.b16 %v582
    %v2001 = vunpack.c.l.b16 %v583
    %v2002 = vunpack.c.h.b16 %v583
    %v2003 = vunpack.c.l.b16 %v584
    %v2004 = vunpack.c.h.b16 %v584
    %v2005 = vunpack.c.l.b16 %v585
    %v2006 = vunpack.c.h.b16 %v585
    %v2007 = vunpack.c.l.b16 %v586
    %v2008 = vunpack.c.h.b16 %v586
    %v2009 = vunpack.c.l.b16 %v587
    %v2010 = vunpack.c.h.b16 %v587
    %v2011 = vunpack.c.l.b16 %v588
    %v2012 = vunpack.c.h.b16 %v588
    %v2013 = vunpack.c.l.b16 %v589
    %v2014 = vunpack.c.h.b16 %v589
    %v2015 = vunpack.c.l.b16 %v590
    %v2016 = vunpack.c.h.b16 %v590
    %v2017 = vunpack.c.l.b16 %v591
    %v2018 = vunpack.c.h.b16 %v591
    %v2019 = vunpack.c.l.b16 %v592
    %v2020 = vunpack.c.h.b16 %v592
    %v2021 = vunpack.c.l.b16 %v593
    %v2022 = vunpack.c.h.b16 %v593
    %v2023 = vunpack.c.l.b16 %v594
    %v2024 = vunpack.c.h.b16 %v594
    %v2025 = vunpack.c.l.b16 %v595
    %v2026 = vunpack.c.h.b16 %v595
    %v2027 = vunpack.c.l.b16 %v596
    %v2028 = vunpack.c.h.b16 %v596
    %v2029 = vunpack.c.l.b16 %v597
    %v2030 = vunpack.c.h.b16 %v597
    %v2031 = vunpack.c.l.b16 %v598
    %v2032 = vunpack.c.h.b16 %v598
    %v2033 = vunpack.c.l.b16 %v599
    %v2034 = vunpack.c.h.b16 %v599
    %v2035 = vunpack.c.l.b16 %v600
    %v2036 = vunpack.c.h.b16 %v600
    %v2037 = vunpack.c.l.b16 %v601
    %v2038 = vunpack.c.h.b16 %v601
    %v2039 = vunpack.c.l.b16 %v602
    %v2040 = vunpack.c.h.b16 %v602
    %v2041 = vunpack.c.l.b16 %v603
    %v2042 = vunpack.c.h.b16 %v603
    %v2043 = vunpack.c.l.b16 %v604
    %v2044 = vunpack.c.h.b16 %v604
    %v2045 = vunpack.c.l.b16 %v605
    %v2046 = vunpack.c.h.b16 %v605
    %v2047 = vunpack.c.l.b16 %v606
    %v2048 = vunpack.c.h.b16 %v606
    %v2049 = vunpack.c.l.b16 %v607
    %v2050 = vunpack.c.h.b16 %v607
    %v2051 = vunpack.c.l.b16 %v608
    %v2052 = vunpack.c.h.b16 %v608
    %v2053 = vunpack.c.l.b16 %v609
    %v2054 = vunpack.c.h.b16 %v609
    %v2055 = vunpack.c.l.b16 %v610
    %v2056 = vunpack.c.h.b16 %v610
    %v2057 = vunpack.c.l.b16 %v611
    %v2058 = vunpack.c.h.b16 %v611
    %v2059 = vunpack.c.l.b16 %v612
    %v2060 = vunpack.c.h.b16 %v612
    %v2061 = vunpack.c.l.b16 %v613
    %v2062 = vunpack.c.h.b16 %v613
    %v2063 = vunpack.c.l.b16 %v614
    %v2064 = vunpack.c.h.b16 %v614
    %v2065 = vunpack.c.l.b16 %v615
    %v2066 = vunpack.c.h.b16 %v615
    %v2067 = vunpack.c.l.b16 %v616
    %v2068 = vunpack.c.h.b16 %v616
    %v2069 = vunpack.c.l.b16 %v617
    %v2070 = vunpack.c.h.b16 %v617
    %v2071 = vunpack.c.l.b16 %v618
    %v2072 = vunpack.c.h.b16 %v618
    %v2073 = vunpack.c.l.b16 %v619
    %v2074 = vunpack.c.h.b16 %v619
    %v2075 = vunpack.c.l.b16 %v620
    %v2076 = vunpack.c.h.b16 %v620
    %v2077 = vunpack.c.l.b16 %v621
    %v2078 = vunpack.c.h.b16 %v621
    %v2079 = vunpack.c.l.b16 %v622
    %v2080 = vunpack.c.h.b16 %v622
    %v2081 = vunpack.c.l.b16 %v623
    %v2082 = vunpack.c.h.b16 %v623
    %v2083 = vunpack.c.l.b16 %v624
    %v2084 = vunpack.c.h.b16 %v624
    %v2085 = vunpack.c.l.b16 %v625
    %v2086 = vunpack.c.h.b16 %v625
    %v2087 = vunpack.c.l.b16 %v626
    %v2088 = vunpack.c.h.b16 %v626
    %v2089 = vunpack.c.l.b16 %v627
    %v2090 = vunpack.c.h.b16 %v627
    %v2091 = vunpack.c.l.b16 %v628
    %v2092 = vunpack.c.h.b16 %v628
    %v2093 = vunpack.c.l.b16 %v629
    %v2094 = vunpack.c.h.b16 %v629
    %v2095 = vunpack.c.l.b16 %v630
    %v2096 = vunpack.c.h.b16 %v630
    %v2097 = vunpack.c.l.b16 %v631
    %v2098 = vunpack.c.h.b16 %v631
    %v2099 = vunpack.c.l.b16 %v632
    %v2100 = vunpack.c.h.b16 %v632
    %v2101 = vunpack.c.l.b16 %v633
    %v2102 = vunpack.c.h.b16 %v633
    %v2103 = vunpack.c.l.b16 %v634
    %v2104 = vunpack.c.h.b16 %v634
    %v2105 = vunpack.c.l.b16 %v635
    %v2106 = vunpack.c.h.b16 %v635
    %v2107 = vunpack.c.l.b16 %v636
    %v2108 = vunpack.c.h.b16 %v636
    %v2109 = vunpack.c.l.b16 %v637
    %v2110 = vunpack.c.h.b16 %v637
    %v2111 = vunpack.c.l.b16 %v638
    %v2112 = vunpack.c.h.b16 %v638
    %v2113 = vunpack.c.l.b16 %v639
    %v2114 = vunpack.c.h.b16 %v639
    %v2115 = vunpack.c.l.b16 %v640
    %v2116 = vunpack.c.h.b16 %v640
    %v2117 = vunpack.c.l.b16 %v641
    %v2118 = vunpack.c.h.b16 %v641
    %v2119 = vunpack.c.l.b16 %v642
    %v2120 = vunpack.c.h.b16 %v642
    %v2121 = vunpack.c.l.b16 %v643
    %v2122 = vunpack.c.h.b16 %v643
    %v2123 = vunpack.c.l.b16 %v644
    %v2124 = vunpack.c.h.b16 %v644
    %v2125 = vunpack.c.l.b16 %v645
    %v2126 = vunpack.c.h.b16 %v645
    %v2127 = vunpack.c.l.b16 %v646
    %v2128 = vunpack.c.h.b16 %v646
    %v2129 = vunpack.c.l.b16 %v647
    %v2130 = vunpack.c.h.b16 %v647
    %v2131 = vunpack.c.l.b16 %v648
    %v2132 = vunpack.c.h.b16 %v648
    %v2133 = vunpack.c.l.b16 %v649
    %v2134 = vunpack.c.h.b16 %v649
    %v2135 = vunpack.c.l.b16 %v650
    %v2136 = vunpack.c.h.b16 %v650
    %v2137 = vunpack.c.l.b16 %v651
    %v2138 = vunpack.c.h.b16 %v651
    %v2139 = vunpack.c.l.b16 %v652
    %v2140 = vunpack.c.h.b16 %v652
    %v2141 = vunpack.c.l.b16 %v653
    %v2142 = vunpack.c.h.b16 %v653
    %v2143 = vunpack.c.l.b16 %v654
    %v2144 = vunpack.c.h.b16 %v654
    %v2145 = vunpack.c.l.b16 %v655
    %v2146 = vunpack.c.h.b16 %v655
    %v2147 = vunpack.c.l.b16 %v656
    %v2148 = vunpack.c.h.b16 %v656
    %v2149 = vunpack.c.l.b16 %v657
    %v2150 = vunpack.c.h.b16 %v657
    %v2151 = vunpack.c.l.b16 %v658
    %v2152 = vunpack.c.h.b16 %v658
    %v2153 = vunpack.c.l.b16 %v659
    %v2154 = vunpack.c.h.b16 %v659
    %v2155 = vunpack.c.l.b16 %v660
    %v2156 = vunpack.c.h.b16 %v660
    %v2157 = vunpack.c.l.b16 %v661
    %v2158 = vunpack.c.h.b16 %v661
    %v2159 = vunpack.c.l.b16 %v662
    %v2160 = vunpack.c.h.b16 %v662
    %v2161 = vunpack.c.l.b16 %v663
    %v2162 = vunpack.c.h.b16 %v663
    %v2163 = vunpack.c.l.b16 %v664
    %v2164 = vunpack.c.h.b16 %v664
    %v2165 = vunpack.c.l.b16 %v665
    %v2166 = vunpack.c.h.b16 %v665
    %v2167 = vunpack.c.l.b16 %v666
    %v2168 = vunpack.c.h.b16 %v666
    %v2169 = vunpack.c.l.b16 %v667
    %v2170 = vunpack.c.h.b16 %v667
    %v2171 = vunpack.c.l.b16 %v668
    %v2172 = vunpack.c.h.b16 %v668
    %v2173 = vunpack.c.l.b16 %v669
    %v2174 = vunpack.c.h.b16 %v669
    %v2175 = vunpack.c.l.b16 %v670
    %v2176 = vunpack.c.h.b16 %v670
    %v2177 = vunpack.c.l.b16 %v671
    %v2178 = vunpack.c.h.b16 %v671
    %v2179 = vunpack.c.l.b16 %v672
    %v2180 = vunpack.c.h.b16 %v672
    %v2181 = vunpack.c.l.b16 %v673
    %v2182 = vunpack.c.h.b16 %v673
    %v2183 = vunpack.c.l.b16 %v674
    %v2184 = vunpack.c.h.b16 %v674
    %v2185 = vunpack.c.l.b16 %v675
    %v2186 = vunpack.c.h.b16 %v675
    %v2187 = vunpack.c.l.b16 %v676
    %v2188 = vunpack.c.h.b16 %v676
    %v2189 = vunpack.c.l.b16 %v677
    %v2190 = vunpack.c.h.b16 %v677
    %v2191 = vunpack.c.l.b16 %v678
    %v2192 = vunpack.c.h.b16 %v678
    %v2193 = vunpack.c.l.b16 %v679
    %v2194 = vunpack.c.h.b16 %v679
    %v2195 = vunpack.c.l.b16 %v680
    %v2196 = vunpack.c.h.b16 %v680
    %v2197 = vunpack.c.l.b16 %v681
    %v2198 = vunpack.c.h.b16 %v681
    %v2199 = vunpack.c.l.b16 %v682
    %v2200 = vunpack.c.h.b16 %v682
    %v2201 = vunpack.c.l.b16 %v683
    %v2202 = vunpack.c.h.b16 %v683
    %v2203 = vunpack.c.l.b16 %v684
    %v2204 = vunpack.c.h.b16 %v684
    %v2205 = vunpack.c.l.b16 %v685
    %v2206 = vunpack.c.h.b16 %v685
    %v2207 = vunpack.c.l.b16 %v686
    %v2208 = vunpack.c.h.b16 %v686
    %v2209 = vunpack.c.l.b16 %v687
    %v2210 = vunpack.c.h.b16 %v687
    %v2211 = vunpack.c.l.b16 %v688
    %v2212 = vunpack.c.h.b16 %v688
    %v2213 = vunpack.c.l.b16 %v689
    %v2214 = vunpack.c.h.b16 %v689
    %v2215 = vunpack.c.l.b16 %v690
    %v2216 = vunpack.c.h.b16 %v690
    %v2217 = vunpack.c.l.b16 %v691
    %v2218 = vunpack.c.h.b16 %v691
    %v2219 = vunpack.c.l.b16 %v692
    %v2220 = vunpack.c.h.b16 %v692
    %v2221 = vunpack.c.l.b16 %v693
    %v2222 = vunpack.c.h.b16 %v693
    %v2223 = vunpack.c.l.b16 %v694
    %v2224 = vunpack.c.h.b16 %v694
    %v2225 = vunpack.c.l.b16 %v695
    %v2226 = vunpack.c.h.b16 %v695
    %v2227 = vunpack.c.l.b16 %v696
    %v2228 = vunpack.c.h.b16 %v696
    %v2229 = vunpack.c.l.b16 %v697
    %v2230 = vunpack.c.h.b16 %v697
    %v2231 = vunpack.c.l.b16 %v698
    %v2232 = vunpack.c.h.b16 %v698
    %v2233 = vunpack.c.l.b16 %v699
    %v2234 = vunpack.c.h.b16 %v699
    %v2235 = vunpack.c.l.b16 %v700
    %v2236 = vunpack.c.h.b16 %v700
    %v2237 = vpack.c.b16 %v1215, %v1213
    %v2238 = vpack.c.b16 %v1216, %v1214
    %v2239 = vpack.c.b16 %v1219, %v1217
    %v2240 = vpack.c.b16 %v1220, %v1218
    %v2241 = vpack.c.b16 %v1223, %v1221
    %v2242 = vpack.c.b16 %v1224, %v1222
    %v2243 = vpack.c.b16 %v1227, %v1225
    %v2244 = vpack.c.b16 %v1228, %v1226
    %v2245 = vpack.c.b16 %v1231, %v1229
    %v2246 = vpack.c.b16 %v1232, %v1230
    %v2247 = vpack.c.b16 %v1235, %v1233
    %v2248 = vpack.c.b16 %v1236, %v1234
    %v2249 = vpack.c.b16 %v1239, %v1237
    %v2250 = vpack.c.b16 %v1240, %v1238
    %v2251 = vpack.c.b16 %v1243, %v1241
    %v2252 = vpack.c.b16 %v1244, %v1242
    %v2253 = vpack.c.b16 %v1247, %v1245
    %v2254 = vpack.c.b16 %v1248, %v1246
    %v2255 = vpack.c.b16 %v1251, %v1249
    %v2256 = vpack.c.b16 %v1252, %v1250
    %v2257 = vpack.c.b16 %v1255, %v1253
    %v2258 = vpack.c.b16 %v1256, %v1254
    %v2259 = vpack.c.b16 %v1259, %v1257
    %v2260 = vpack.c.b16 %v1260, %v1258
    %v2261 = vpack.c.b16 %v1263, %v1261
    %v2262 = vpack.c.b16 %v1264, %v1262
    %v2263 = vpack.c.b16 %v1267, %v1265
    %v2264 = vpack.c.b16 %v1268, %v1266
    %v2265 = vpack.c.b16 %v1271, %v1269
    %v2266 = vpack.c.b16 %v1272, %v1270
    %v2267 = vpack.c.b16 %v1275, %v1273
    %v2268 = vpack.c.b16 %v1276, %v1274
    %v2269 = vpack.c.b16 %v1279, %v1277
    %v2270 = vpack.c.b16 %v1280, %v1278
    %v2271 = vpack.c.b16 %v1283, %v1281
    %v2272 = vpack.c.b16 %v1284, %v1282
    %v2273 = vpack.c.b16 %v1287, %v1285
    %v2274 = vpack.c.b16 %v1288, %v1286
    %v2275 = vpack.c.b16 %v1291, %v1289
    %v2276 = vpack.c.b16 %v1292, %v1290
    %v2277 = vpack.c.b16 %v1295, %v1293
    %v2278 = vpack.c.b16 %v1296, %v1294
    %v2279 = vpack.c.b16 %v1299, %v1297
    %v2280 = vpack.c.b16 %v1300, %v1298
    %v2281 = vpack.c.b16 %v1303, %v1301
    %v2282 = vpack.c.b16 %v1304, %v1302
    %v2283 = vpack.c.b16 %v1307, %v1305
    %v2284 = vpack.c.b16 %v1308, %v1306
    %v2285 = vpack.c.b16 %v1311, %v1309
    %v2286 = vpack.c.b16 %v1312, %v1310
    %v2287 = vpack.c.b16 %v1315, %v1313
    %v2288 = vpack.c.b16 %v1316, %v1314
    %v2289 = vpack.c.b16 %v1319, %v1317
    %v2290 = vpack.c.b16 %v1320, %v1318
    %v2291 = vpack.c.b16 %v1323, %v1321
    %v2292 = vpack.c.b16 %v1324, %v1322
    %v2293 = vpack.c.b16 %v1327, %v1325
    %v2294 = vpack.c.b16 %v1328, %v1326
    %v2295 = vpack.c.b16 %v1331, %v1329
    %v2296 = vpack.c.b16 %v1332, %v1330
    %v2297 = vpack.c.b16 %v1335, %v1333
    %v2298 = vpack.c.b16 %v1336, %v1334
    %v2299 = vpack.c.b16 %v1339, %v1337
    %v2300 = vpack.c.b16 %v1340, %v1338
    %v2301 = vpack.c.b16 %v1343, %v1341
    %v2302 = vpack.c.b16 %v1344, %v1342
    %v2303 = vpack.c.b16 %v1347, %v1345
    %v2304 = vpack.c.b16 %v1348, %v1346
    %v2305 = vpack.c.b16 %v1351, %v1349
    %v2306 = vpack.c.b16 %v1352, %v1350
    %v2307 = vpack.c.b16 %v1355, %v1353
    %v2308 = vpack.c.b16 %v1356, %v1354
    %v2309 = vpack.c.b16 %v1359, %v1357
    %v2310 = vpack.c.b16 %v1360, %v1358
    %v2311 = vpack.c.b16 %v1363, %v1361
    %v2312 = vpack.c.b16 %v1364, %v1362
    %v2313 = vpack.c.b16 %v1367, %v1365
    %v2314 = vpack.c.b16 %v1368, %v1366
    %v2315 = vpack.c.b16 %v1371, %v1369
    %v2316 = vpack.c.b16 %v1372, %v1370
    %v2317 = vpack.c.b16 %v1375, %v1373
    %v2318 = vpack.c.b16 %v1376, %v1374
    %v2319 = vpack.c.b16 %v1379, %v1377
    %v2320 = vpack.c.b16 %v1380, %v1378
    %v2321 = vpack.c.b16 %v1383, %v1381
    %v2322 = vpack.c.b16 %v1384, %v1382
    %v2323 = vpack.c.b16 %v1387, %v1385
    %v2324 = vpack.c.b16 %v1388, %v1386
    %v2325 = vpack.c.b16 %v1391, %v1389
    %v2326 = vpack.c.b16 %v1392, %v1390
    %v2327 = vpack.c.b16 %v1395, %v1393
    %v2328 = vpack.c.b16 %v1396, %v1394
    %v2329 = vpack.c.b16 %v1399, %v1397
    %v2330 = vpack.c.b16 %v1400, %v1398
    %v2331 = vpack.c.b16 %v1403, %v1401
    %v2332 = vpack.c.b16 %v1404, %v1402
    %v2333 = vpack.c.b16 %v1407, %v1405
    %v2334 = vpack.c.b16 %v1408, %v1406
    %v2335 = vpack.c.b16 %v1411, %v1409
    %v2336 = vpack.c.b16 %v1412, %v1410
    %v2337 = vpack.c.b16 %v1415, %v1413
    %v2338 = vpack.c.b16 %v1416, %v1414
    %v2339 = vpack.c.b16 %v1419, %v1417
    %v2340 = vpack.c.b16 %v1420, %v1418
    %v2341 = vpack.c.b16 %v1423, %v1421
    %v2342 = vpack.c.b16 %v1424, %v1422
    %v2343 = vpack.c.b16 %v1427, %v1425
    %v2344 = vpack.c.b16 %v1428, %v1426
    %v2345 = vpack.c.b16 %v1431, %v1429
    %v2346 = vpack.c.b16 %v1432, %v1430
    %v2347 = vpack.c.b16 %v1435, %v1433
    %v2348 = vpack.c.b16 %v1436, %v1434
    %v2349 = vpack.c.b16 %v1439, %v1437
    %v2350 = vpack.c.b16 %v1440, %v1438
    %v2351 = vpack.c.b16 %v1443, %v1441
    %v2352 = vpack.c.b16 %v1444, %v1442
    %v2353 = vpack.c.b16 %v1447, %v1445
    %v2354 = vpack.c.b16 %v1448, %v1446
    %v2355 = vpack.c.b16 %v1451, %v1449
    %v2356 = vpack.c.b16 %v1452, %v1450
    %v2357 = vpack.c.b16 %v1455, %v1453
    %v2358 = vpack.c.b16 %v1456, %v1454
    %v2359 = vpack.c.b16 %v1459, %v1457
    %v2360 = vpack.c.b16 %v1460, %v1458
    %v2361 = vpack.c.b16 %v1463, %v1461
    %v2362 = vpack.c.b16 %v1464, %v1462
    %v2363 = vpack.c.b16 %v1467, %v1465
    %v2364 = vpack.c.b16 %v1468, %v1466
    %v2365 = vpack.c.b16 %v1471, %v1469
    %v2366 = vpack.c.b16 %v1472, %v1470
    %v2367 = vpack.c.b16 %v1475, %v1473
    %v2368 = vpack.c.b16 %v1476, %v1474
    %v2369 = vpack.c.b16 %v1479, %v1477
    %v2370 = vpack.c.b16 %v1480, %v1478
    %v2371 = vpack.c.b16 %v1483, %v1481
    %v2372 = vpack.c.b16 %v1484, %v1482
    %v2373 = vpack.c.b16 %v1487, %v1485
    %v2374 = vpack.c.b16 %v1488, %v1486
    %v2375 = vpack.c.b16 %v1491, %v1489
    %v2376 = vpack.c.b16 %v1492, %v1490
    %v2377 = vpack.c.b16 %v1495, %v1493
    %v2378 = vpack.c.b16 %v1496, %v1494
    %v2379 = vpack.c.b16 %v1499, %v1497
    %v2380 = vpack.c.b16 %v1500, %v1498
    %v2381 = vpack.c.b16 %v1503, %v1501
    %v2382 = vpack.c.b16 %v1504, %v1502
    %v2383 = vpack.c.b16 %v1507, %v1505
    %v2384 = vpack.c.b16 %v1508, %v1506
    %v2385 = vpack.c.b16 %v1511, %v1509
    %v2386 = vpack.c.b16 %v1512, %v1510
    %v2387 = vpack.c.b16 %v1515, %v1513
    %v2388 = vpack.c.b16 %v1516, %v1514
    %v2389 = vpack.c.b16 %v1519, %v1517
    %v2390 = vpack.c.b16 %v1520, %v1518
    %v2391 = vpack.c.b16 %v1523, %v1521
    %v2392 = vpack.c.b16 %v1524, %v1522
    %v2393 = vpack.c.b16 %v1527, %v1525
    %v2394 = vpack.c.b16 %v1528, %v1526
    %v2395 = vpack.c.b16 %v1531, %v1529
    %v2396 = vpack.c.b16 %v1532, %v1530
    %v2397 = vpack.c.b16 %v1535, %v1533
    %v2398 = vpack.c.b16 %v1536, %v1534
    %v2399 = vpack.c.b16 %v1539, %v1537
    %v2400 = vpack.c.b16 %v1540, %v1538
    %v2401 = vpack.c.b16 %v1543, %v1541
    %v2402 = vpack.c.b16 %v1544, %v1542
    %v2403 = vpack.c.b16 %v1547, %v1545
    %v2404 = vpack.c.b16 %v1548, %v1546
    %v2405 = vpack.c.b16 %v1551, %v1549
    %v2406 = vpack.c.b16 %v1552, %v1550
    %v2407 = vpack.c.b16 %v1555, %v1553
    %v2408 = vpack.c.b16 %v1556, %v1554
    %v2409 = vpack.c.b16 %v1559, %v1557
    %v2410 = vpack.c.b16 %v1560, %v1558
    %v2411 = vpack.c.b16 %v1563, %v1561
    %v2412 = vpack.c.b16 %v1564, %v1562
    %v2413 = vpack.c.b16 %v1567, %v1565
    %v2414 = vpack.c.b16 %v1568, %v1566
    %v2415 = vpack.c.b16 %v1571, %v1569
    %v2416 = vpack.c.b16 %v1572, %v1570
    %v2417 = vpack.c.b16 %v1575, %v1573
    %v2418 = vpack.c.b16 %v1576, %v1574
    %v2419 = vpack.c.b16 %v1579, %v1577
    %v2420 = vpack.c.b16 %v1580, %v1578
    %v2421 = vpack.c.b16 %v1583, %v1581
    %v2422 = vpack.c.b16 %v1584, %v1582
    %v2423 = vpack.c.b16 %v1587, %v1585
    %v2424 = vpack.c.b16 %v1588, %v1586
    %v2425 = vpack.c.b16 %v1591, %v1589
    %v2426 = vpack.c.b16 %v1592, %v1590
    %v2427 = vpack.c.b16 %v1595, %v1593
    %v2428 = vpack.c.b16 %v1596, %v1594
    %v2429 = vpack.c.b16 %v1599, %v1597
    %v2430 = vpack.c.b16 %v1600, %v1598
    %v2431 = vpack.c.b16 %v1603, %v1601
    %v2432 = vpack.c.b16 %v1604, %v1602
    %v2433 = vpack.c.b16 %v1607, %v1605
    %v2434 = vpack.c.b16 %v1608, %v1606
    %v2435 = vpack.c.b16 %v1611, %v1609
    %v2436 = vpack.c.b16 %v1612, %v1610
    %v2437 = vpack.c.b16 %v1615, %v1613
    %v2438 = vpack.c.b16 %v1616, %v1614
    %v2439 = vpack.c.b16 %v1619, %v1617
    %v2440 = vpack.c.b16 %v1620, %v1618
    %v2441 = vpack.c.b16 %v1623, %v1621
    %v2442 = vpack.c.b16 %v1624, %v1622
    %v2443 = vpack.c.b16 %v1627, %v1625
    %v2444 = vpack.c.b16 %v1628, %v1626
    %v2445 = vpack.c.b16 %v1631, %v1629
    %v2446 = vpack.c.b16 %v1632, %v1630
    %v2447 = vpack.c.b16 %v1635, %v1633
    %v2448 = vpack.c.b16 %v1636, %v1634
    %v2449 = vpack.c.b16 %v1639, %v1637
    %v2450 = vpack.c.b16 %v1640, %v1638
    %v2451 = vpack.c.b16 %v1643, %v1641
    %v2452 = vpack.c.b16 %v1644, %v1642
    %v2453 = vpack.c.b16 %v1647, %v1645
    %v2454 = vpack.c.b16 %v1648, %v1646
    %v2455 = vpack.c.b16 %v1651, %v1649
    %v2456 = vpack.c.b16 %v1652, %v1650
    %v2457 = vpack.c.b16 %v1655, %v1653
    %v2458 = vpack.c.b16 %v1656, %v1654
    %v2459 = vpack.c.b16 %v1659, %v1657
    %v2460 = vpack.c.b16 %v1660, %v1658
    %v2461 = vpack.c.b16 %v1663, %v1661
    %v2462 = vpack.c.b16 %v1664, %v1662
    %v2463 = vpack.c.b16 %v1667, %v1665
    %v2464 = vpack.c.b16 %v1668, %v1666
    %v2465 = vpack.c.b16 %v1671, %v1669
    %v2466 = vpack.c.b16 %v1672, %v1670
    %v2467 = vpack.c.b16 %v1675, %v1673
    %v2468 = vpack.c.b16 %v1676, %v1674
    %v2469 = vpack.c.b16 %v1679, %v1677
    %v2470 = vpack.c.b16 %v1680, %v1678
    %v2471 = vpack.c.b16 %v1683, %v1681
    %v2472 = vpack.c.b16 %v1684, %v1682
    %v2473 = vpack.c.b16 %v1687, %v1685
    %v2474 = vpack.c.b16 %v1688, %v1686
    %v2475 = vpack.c.b16 %v1691, %v1689
    %v2476 = vpack.c.b16 %v1692, %v1690
    %v2477 = vpack.c.b16 %v1695, %v1693
    %v2478 = vpack.c.b16 %v1696, %v1694
    %v2479 = vpack.c.b16 %v1699, %v1697
    %v2480 = vpack.c.b16 %v1700, %v1698
    %v2481 = vpack.c.b16 %v1703, %v1701
    %v2482 = vpack.c.b16 %v1704, %v1702
    %v2483 = vpack.c.b16 %v1707, %v1705
    %v2484 = vpack.c.b16 %v1708, %v1706
    %v2485 = vpack.c.b16 %v1711, %v1709
    %v2486 = vpack.c.b16 %v1712, %v1710
    %v2487 = vpack.c.b16 %v1715, %v1713
    %v2488 = vpack.c.b16 %v1716, %v1714
    %v2489 = vpack.c.b16 %v1719, %v1717
    %v2490 = vpack.c.b16 %v1720, %v1718
    %v2491 = vpack.c.b16 %v1723, %v1721
    %v2492 = vpack.c.b16 %v1724, %v1722
    %v2493 = vpack.c.b16 %v1727, %v1725
    %v2494 = vpack.c.b16 %v1728, %v1726
    %v2495 = vpack.c.b16 %v1731, %v1729
    %v2496 = vpack.c.b16 %v1732, %v1730
    %v2497 = vpack.c.b16 %v1735, %v1733
    %v2498 = vpack.c.b16 %v1736, %v1734
    %v2499 = vpack.c.b16 %v1739, %v1737
    %v2500 = vpack.c.b16 %v1740, %v1738
    %v2501 = vpack.c.b16 %v1743, %v1741
    %v2502 = vpack.c.b16 %v1744, %v1742
    %v2503 = vpack.c.b16 %v1747, %v1745
    %v2504 = vpack.c.b16 %v1748, %v1746
    %v2505 = vpack.c.b16 %v1751, %v1749
    %v2506 = vpack.c.b16 %v1752, %v1750
    %v2507 = vpack.c.b16 %v1755, %v1753
    %v2508 = vpack.c.b16 %v1756, %v1754
    %v2509 = vpack.c.b16 %v1759, %v1757
    %v2510 = vpack.c.b16 %v1760, %v1758
    %v2511 = vpack.c.b16 %v1763, %v1761
    %v2512 = vpack.c.b16 %v1764, %v1762
    %v2513 = vpack.c.b16 %v1767, %v1765
    %v2514 = vpack.c.b16 %v1768, %v1766
    %v2515 = vpack.c.b16 %v1771, %v1769
    %v2516 = vpack.c.b16 %v1772, %v1770
    %v2517 = vpack.c.b16 %v1775, %v1773
    %v2518 = vpack.c.b16 %v1776, %v1774
    %v2519 = vpack.c.b16 %v1779, %v1777
    %v2520 = vpack.c.b16 %v1780, %v1778
    %v2521 = vpack.c.b16 %v1783, %v1781
    %v2522 = vpack.c.b16 %v1784, %v1782
    %v2523 = vpack.c.b16 %v1787, %v1785
    %v2524 = vpack.c.b16 %v1788, %v1786
    %v2525 = vpack.c.b16 %v1791, %v1789
    %v2526 = vpack.c.b16 %v1792, %v1790
    %v2527 = vpack.c.b16 %v1795, %v1793
    %v2528 = vpack.c.b16 %v1796, %v1794
    %v2529 = vpack.c.b16 %v1799, %v1797
    %v2530 = vpack.c.b16 %v1800, %v1798
    %v2531 = vpack.c.b16 %v1803, %v1801
    %v2532 = vpack.c.b16 %v1804, %v1802
    %v2533 = vpack.c.b16 %v1807, %v1805
    %v2534 = vpack.c.b16 %v1808, %v1806
    %v2535 = vpack.c.b16 %v1811, %v1809
    %v2536 = vpack.c.b16 %v1812, %v1810
    %v2537 = vpack.c.b16 %v1815, %v1813
    %v2538 = vpack.c.b16 %v1816, %v1814
    %v2539 = vpack.c.b16 %v1819, %v1817
    %v2540 = vpack.c.b16 %v1820, %v1818
    %v2541 = vpack.c.b16 %v1823, %v1821
    %v2542 = vpack.c.b16 %v1824, %v1822
    %v2543 = vpack.c.b16 %v1827, %v1825
    %v2544 = vpack.c.b16 %v1828, %v1826
    %v2545 = vpack.c.b16 %v1831, %v1829
    %v2546 = vpack.c.b16 %v1832, %v1830
    %v2547 = vpack.c.b16 %v1835, %v1833
    %v2548 = vpack.c.b16 %v1836, %v1834
    %v2549 = vpack.c.b16 %v1839, %v1837
    %v2550 = vpack.c.b16 %v1840, %v1838
    %v2551 = vpack.c.b16 %v1843, %v1841
    %v2552 = vpack.c.b16 %v1844, %v1842
    %v2553 = vpack.c.b16 %v1847, %v1845
    %v2554 = vpack.c.b16 %v1848, %v1846
    %v2555 = vpack.c.b16 %v1851, %v1849
    %v2556 = vpack.c.b16 %v1852, %v1850
    %v2557 = vpack.c.b16 %v1855, %v1853
    %v2558 = vpack.c.b16 %v1856, %v1854
    %v2559 = vpack.c.b16 %v1859, %v1857
    %v2560 = vpack.c.b16 %v1860, %v1858
    %v2561 = vpack.c.b16 %v1863, %v1861
    %v2562 = vpack.c.b16 %v1864, %v1862
    %v2563 = vpack.c.b16 %v1867, %v1865
    %v2564 = vpack.c.b16 %v1868, %v1866
    %v2565 = vpack.c.b16 %v1871, %v1869
    %v2566 = vpack.c.b16 %v1872, %v1870
    %v2567 = vpack.c.b16 %v1875, %v1873
    %v2568 = vpack.c.b16 %v1876, %v1874
    %v2569 = vpack.c.b16 %v1879, %v1877
    %v2570 = vpack.c.b16 %v1880, %v1878
    %v2571 = vpack.c.b16 %v1883, %v1881
    %v2572 = vpack.c.b16 %v1884, %v1882
    %v2573 = vpack.c.b16 %v1887, %v1885
    %v2574 = vpack.c.b16 %v1888, %v1886
    %v2575 = vpack.c.b16 %v1891, %v1889
    %v2576 = vpack.c.b16 %v1892, %v1890
    %v2577 = vpack.c.b16 %v1895, %v1893
    %v2578 = vpack.c.b16 %v1896, %v1894
    %v2579 = vpack.c.b16 %v1899, %v1897
    %v2580 = vpack.c.b16 %v1900, %v1898
    %v2581 = vpack.c.b16 %v1903, %v1901
    %v2582 = vpack.c.b16 %v1904, %v1902
    %v2583 = vpack.c.b16 %v1907, %v1905
    %v2584 = vpack.c.b16 %v1908, %v1906
    %v2585 = vpack.c.b16 %v1911, %v1909
    %v2586 = vpack.c.b16 %v1912, %v1910
    %v2587 = vpack.c.b16 %v1915, %v1913
    %v2588 = vpack.c.b16 %v1916, %v1914
    %v2589 = vpack.c.b16 %v1919, %v1917
    %v2590 = vpack.c.b16 %v1920, %v1918
    %v2591 = vpack.c.b16 %v1923, %v1921
    %v2592 = vpack.c.b16 %v1924, %v1922
    %v2593 = vpack.c.b16 %v1927, %v1925
    %v2594 = vpack.c.b16 %v1928, %v1926
    %v2595 = vpack.c.b16 %v1931, %v1929
    %v2596 = vpack.c.b16 %v1932, %v1930
    %v2597 = vpack.c.b16 %v1935, %v1933
    %v2598 = vpack.c.b16 %v1936, %v1934
    %v2599 = vpack.c.b16 %v1939, %v1937
    %v2600 = vpack.c.b16 %v1940, %v1938
    %v2601 = vpack.c.b16 %v1943, %v1941
    %v2602 = vpack.c.b16 %v1944, %v1942
    %v2603 = vpack.c.b16 %v1947, %v1945
    %v2604 = vpack.c.b16 %v1948, %v1946
    %v2605 = vpack.c.b16 %v1951, %v1949
    %v2606 = vpack.c.b16 %v1952, %v1950
    %v2607 = vpack.c.b16 %v1955, %v1953
    %v2608 = vpack.c.b16 %v1956, %v1954
    %v2609 = vpack.c.b16 %v1959, %v1957
    %v2610 = vpack.c.b16 %v1960, %v1958
    %v2611 = vpack.c.b16 %v1963, %v1961
    %v2612 = vpack.c.b16 %v1964, %v1962
    %v2613 = vpack.c.b16 %v1967, %v1965
    %v2614 = vpack.c.b16 %v1968, %v1966
    %v2615 = vpack.c.b16 %v1971, %v1969
    %v2616 = vpack.c.b16 %v1972, %v1970
    %v2617 = vpack.c.b16 %v1975, %v1973
    %v2618 = vpack.c.b16 %v1976, %v1974
    %v2619 = vpack.c.b16 %v1979, %v1977
    %v2620 = vpack.c.b16 %v1980, %v1978
    %v2621 = vpack.c.b16 %v1983, %v1981
    %v2622 = vpack.c.b16 %v1984, %v1982
    %v2623 = vpack.c.b16 %v1987, %v1985
    %v2624 = vpack.c.b16 %v1988, %v1986
    %v2625 = vpack.c.b16 %v1991, %v1989
    %v2626 = vpack.c.b16 %v1992, %v1990
    %v2627 = vpack.c.b16 %v1995, %v1993
    %v2628 = vpack.c.b16 %v1996, %v1994
    %v2629 = vpack.c.b16 %v1999, %v1997
    %v2630 = vpack.c.b16 %v2000, %v1998
    %v2631 = vpack.c.b16 %v2003, %v2001
    %v2632 = vpack.c.b16 %v2004, %v2002
    %v2633 = vpack.c.b16 %v2007, %v2005
    %v2634 = vpack.c.b16 %v2008, %v2006
    %v2635 = vpack.c.b16 %v2011, %v2009
    %v2636 = vpack.c.b16 %v2012, %v2010
    %v2637 = vpack.c.b16 %v2015, %v2013
    %v2638 = vpack.c.b16 %v2016, %v2014
    %v2639 = vpack.c.b16 %v2019, %v2017
    %v2640 = vpack.c.b16 %v2020, %v2018
    %v2641 = vpack.c.b16 %v2023, %v2021
    %v2642 = vpack.c.b16 %v2024, %v2022
    %v2643 = vpack.c.b16 %v2027, %v2025
    %v2644 = vpack.c.b16 %v2028, %v2026
    %v2645 = vpack.c.b16 %v2031, %v2029
    %v2646 = vpack.c.b16 %v2032, %v2030
    %v2647 = vpack.c.b16 %v2035, %v2033
    %v2648 = vpack.c.b16 %v2036, %v2034
    %v2649 = vpack.c.b16 %v2039, %v2037
    %v2650 = vpack.c.b16 %v2040, %v2038
    %v2651 = vpack.c.b16 %v2043, %v2041
    %v2652 = vpack.c.b16 %v2044, %v2042
    %v2653 = vpack.c.b16 %v2047, %v2045
    %v2654 = vpack.c.b16 %v2048, %v2046
    %v2655 = vpack.c.b16 %v2051, %v2049
    %v2656 = vpack.c.b16 %v2052, %v2050
    %v2657 = vpack.c.b16 %v2055, %v2053
    %v2658 = vpack.c.b16 %v2056, %v2054
    %v2659 = vpack.c.b16 %v2059, %v2057
    %v2660 = vpack.c.b16 %v2060, %v2058
    %v2661 = vpack.c.b16 %v2063, %v2061
    %v2662 = vpack.c.b16 %v2064, %v2062
    %v2663 = vpack.c.b16 %v2067, %v2065
    %v2664 = vpack.c.b16 %v2068, %v2066
    %v2665 = vpack.c.b16 %v2071, %v2069
    %v2666 = vpack.c.b16 %v2072, %v2070
    %v2667 = vpack.c.b16 %v2075, %v2073
    %v2668 = vpack.c.b16 %v2076, %v2074
    %v2669 = vpack.c.b16 %v2079, %v2077
    %v2670 = vpack.c.b16 %v2080, %v2078
    %v2671 = vpack.c.b16 %v2083, %v2081
    %v2672 = vpack.c.b16 %v2084, %v2082
    %v2673 = vpack.c.b16 %v2087, %v2085
    %v2674 = vpack.c.b16 %v2088, %v2086
    %v2675 = vpack.c.b16 %v2091, %v2089
    %v2676 = vpack.c.b16 %v2092, %v2090
    %v2677 = vpack.c.b16 %v2095, %v2093
    %v2678 = vpack.c.b16 %v2096, %v2094
    %v2679 = vpack.c.b16 %v2099, %v2097
    %v2680 = vpack.c.b16 %v2100, %v2098
    %v2681 = vpack.c.b16 %v2103, %v2101
    %v2682 = vpack.c.b16 %v2104, %v2102
    %v2683 = vpack.c.b16 %v2107, %v2105
    %v2684 = vpack.c.b16 %v2108, %v2106
    %v2685 = vpack.c.b16 %v2111, %v2109
    %v2686 = vpack.c.b16 %v2112, %v2110
    %v2687 = vpack.c.b16 %v2115, %v2113
    %v2688 = vpack.c.b16 %v2116, %v2114
    %v2689 = vpack.c.b16 %v2119, %v2117
    %v2690 = vpack.c.b16 %v2120, %v2118
    %v2691 = vpack.c.b16 %v2123, %v2121
    %v2692 = vpack.c.b16 %v2124, %v2122
    %v2693 = vpack.c.b16 %v2127, %v2125
    %v2694 = vpack.c.b16 %v2128, %v2126
    %v2695 = vpack.c.b16 %v2131, %v2129
    %v2696 = vpack.c.b16 %v2132, %v2130
    %v2697 = vpack.c.b16 %v2135, %v2133
    %v2698 = vpack.c.b16 %v2136, %v2134
    %v2699 = vpack.c.b16 %v2139, %v2137
    %v2700 = vpack.c.b16 %v2140, %v2138
    %v2701 = vpack.c.b16 %v2143, %v2141
    %v2702 = vpack.c.b16 %v2144, %v2142
    %v2703 = vpack.c.b16 %v2147, %v2145
    %v2704 = vpack.c.b16 %v2148, %v2146
    %v2705 = vpack.c.b16 %v2151, %v2149
    %v2706 = vpack.c.b16 %v2152, %v2150
    %v2707 = vpack.c.b16 %v2155, %v2153
    %v2708 = vpack.c.b16 %v2156, %v2154
    %v2709 = vpack.c.b16 %v2159, %v2157
    %v2710 = vpack.c.b16 %v2160, %v2158
    %v2711 = vpack.c.b16 %v2163, %v2161
    %v2712 = vpack.c.b16 %v2164, %v2162
    %v2713 = vpack.c.b16 %v2167, %v2165
    %v2714 = vpack.c.b16 %v2168, %v2166
    %v2715 = vpack.c.b16 %v2171, %v2169
    %v2716 = vpack.c.b16 %v2172, %v2170
    %v2717 = vpack.c.b16 %v2175, %v2173
    %v2718 = vpack.c.b16 %v2176, %v2174
    %v2719 = vpack.c.b16 %v2179, %v2177
    %v2720 = vpack.c.b16 %v2180, %v2178
    %v2721 = vpack.c.b16 %v2183, %v2181
    %v2722 = vpack.c.b16 %v2184, %v2182
    %v2723 = vpack.c.b16 %v2187, %v2185
    %v2724 = vpack.c.b16 %v2188, %v2186
    %v2725 = vpack.c.b16 %v2191, %v2189
    %v2726 = vpack.c.b16 %v2192, %v2190
    %v2727 = vpack.c.b16 %v2195, %v2193
    %v2728 = vpack.c.b16 %v2196, %v2194
    %v2729 = vpack.c.b16 %v2199, %v2197
    %v2730 = vpack.c.b16 %v2200, %v2198
    %v2731 = vpack.c.b16 %v2203, %v2201
    %v2732 = vpack.c.b16 %v2204, %v2202
    %v2733 = vpack.c.b16 %v2207, %v2205
    %v2734 = vpack.c.b16 %v2208, %v2206
    %v2735 = vpack.c.b16 %v2211, %v2209
    %v2736 = vpack.c.b16 %v2212, %v2210
    %v2737 = vpack.c.b16 %v2215, %v2213
    %v2738 = vpack.c.b16 %v2216, %v2214
    %v2739 = vpack.c.b16 %v2219, %v2217
    %v2740 = vpack.c.b16 %v2220, %v2218
    %v2741 = vpack.c.b16 %v2223, %v2221
    %v2742 = vpack.c.b16 %v2224, %v2222
    %v2743 = vpack.c.b16 %v2227, %v2225
    %v2744 = vpack.c.b16 %v2228, %v2226
    %v2745 = vpack.c.b16 %v2231, %v2229
    %v2746 = vpack.c.b16 %v2232, %v2230
    %v2747 = vpack.c.b16 %v2235, %v2233
    %v2748 = vpack.c.b16 %v2236, %v2234
    %3261 = vmatpush.bf16.msra.mxu0 %v2251
    %3262 = vmatpush.bf16.msra.mxu0 %v2249
    %3263 = vmatpush.bf16.msra.mxu0 %v2247
    %3264 = vmatpush.bf16.msra.mxu0 %v2245
    %3265 = vmatpush.bf16.msra.mxu0 %v2243
    %3266 = vmatpush.bf16.msra.mxu0 %v2241
    %3267 = vmatpush.bf16.msra.mxu0 %v2239
    %3268 = vmatpush.bf16.msra.mxu0 %v2237
    %3269 = vmatmul.bf16.gmra.mxu0 %v157
    %v3270 = vpop.f32.mrf.mxu0
    %v3271 = vadd.f32 0.0, %v3270
    %v3272 = vpop.f32.mrf.mxu0
    %3273 = vdwg.mxu0
    %3274 = vmatpush.bf16.msra.mxu0 %v2267
    %3275 = vmatpush.bf16.msra.mxu0 %v2265
    %3276 = vmatpush.bf16.msra.mxu0 %v2263
    %3277 = vmatpush.bf16.msra.mxu0 %v2261
    %3278 = vmatpush.bf16.msra.mxu0 %v2259
    %3279 = vmatpush.bf16.msra.mxu0 %v2257
    %3280 = vmatpush.bf16.msra.mxu0 %v2255
    %3281 = vmatpush.bf16.msra.mxu0 %v2253
    %3282 = vmatmul.bf16.gmra.mxu0 %v158
    %v3283 = vpop.f32.mrf.mxu0
    %v3284 = vadd.f32 %v3271, %v3283
    %v3285 = vpop.f32.mrf.mxu0
    %3286 = vdwg.mxu0
    %3287 = vmatpush.bf16.msra.mxu0 %v2283
    %3288 = vmatpush.bf16.msra.mxu0 %v2281
    %3289 = vmatpush.bf16.msra.mxu0 %v2279
    %3290 = vmatpush.bf16.msra.mxu0 %v2277
    %3291 = vmatpush.bf16.msra.mxu0 %v2275
    %3292 = vmatpush.bf16.msra.mxu0 %v2273
    %3293 = vmatpush.bf16.msra.mxu0 %v2271
    %3294 = vmatpush.bf16.msra.mxu0 %v2269
    %3295 = vmatmul.bf16.gmra.mxu0 %v159
    %v3296 = vpop.f32.mrf.mxu0
    %v3297 = vadd.f32 %v3284, %v3296
    %v3298 = vpop.f32.mrf.mxu0
    %3299 = vdwg.mxu0
    %3300 = vmatpush.bf16.msra.mxu0 %v2299
    %3301 = vmatpush.bf16.msra.mxu0 %v2297
    %3302 = vmatpush.bf16.msra.mxu0 %v2295
    %3303 = vmatpush.bf16.msra.mxu0 %v2293
    %3304 = vmatpush.bf16.msra.mxu0 %v2291
    %3305 = vmatpush.bf16.msra.mxu0 %v2289
    %3306 = vmatpush.bf16.msra.mxu0 %v2287
    %3307 = vmatpush.bf16.msra.mxu0 %v2285
    %3308 = vmatmul.bf16.gmra.mxu0 %v160
    %v3309 = vpop.f32.mrf.mxu0
    %v3310 = vadd.f32 %v3297, %v3309
    %v3311 = vpop.f32.mrf.mxu0
    %3312 = vdwg.mxu0
    %3313 = vmatpush.bf16.msra.mxu0 %v2315
    %3314 = vmatpush.bf16.msra.mxu0 %v2313
    %3315 = vmatpush.bf16.msra.mxu0 %v2311
    %3316 = vmatpush.bf16.msra.mxu0 %v2309
    %3317 = vmatpush.bf16.msra.mxu0 %v2307
    %3318 = vmatpush.bf16.msra.mxu0 %v2305
    %3319 = vmatpush.bf16.msra.mxu0 %v2303
    %3320 = vmatpush.bf16.msra.mxu0 %v2301
    %3321 = vmatmul.bf16.gmra.mxu0 %v161
    %v3322 = vpop.f32.mrf.mxu0
    %v3323 = vadd.f32 %v3310, %v3322
    %v3324 = vpop.f32.mrf.mxu0
    %3325 = vdwg.mxu0
    %3326 = vmatpush.bf16.msra.mxu0 %v2331
    %3327 = vmatpush.bf16.msra.mxu0 %v2329
    %3328 = vmatpush.bf16.msra.mxu0 %v2327
    %3329 = vmatpush.bf16.msra.mxu0 %v2325
    %3330 = vmatpush.bf16.msra.mxu0 %v2323
    %3331 = vmatpush.bf16.msra.mxu0 %v2321
    %3332 = vmatpush.bf16.msra.mxu0 %v2319
    %3333 = vmatpush.bf16.msra.mxu0 %v2317
    %3334 = vmatmul.bf16.gmra.mxu0 %v162
    %v3335 = vpop.f32.mrf.mxu0
    %v3336 = vadd.f32 %v3323, %v3335
    %v3337 = vpop.f32.mrf.mxu0
    %3338 = vdwg.mxu0
    %3339 = vmatpush.bf16.msra.mxu0 %v2347
    %3340 = vmatpush.bf16.msra.mxu0 %v2345
    %3341 = vmatpush.bf16.msra.mxu0 %v2343
    %3342 = vmatpush.bf16.msra.mxu0 %v2341
    %3343 = vmatpush.bf16.msra.mxu0 %v2339
    %3344 = vmatpush.bf16.msra.mxu0 %v2337
    %3345 = vmatpush.bf16.msra.mxu0 %v2335
    %3346 = vmatpush.bf16.msra.mxu0 %v2333
    %3347 = vmatmul.bf16.gmra.mxu0 %v163
    %v3348 = vpop.f32.mrf.mxu0
    %v3349 = vadd.f32 %v3336, %v3348
    %v3350 = vpop.f32.mrf.mxu0
    %3351 = vdwg.mxu0
    %3352 = vmatpush.bf16.msra.mxu0 %v2363
    %3353 = vmatpush.bf16.msra.mxu0 %v2361
    %3354 = vmatpush.bf16.msra.mxu0 %v2359
    %3355 = vmatpush.bf16.msra.mxu0 %v2357
    %3356 = vmatpush.bf16.msra.mxu0 %v2355
    %3357 = vmatpush.bf16.msra.mxu0 %v2353
    %3358 = vmatpush.bf16.msra.mxu0 %v2351
    %3359 = vmatpush.bf16.msra.mxu0 %v2349
    %3360 = vmatmul.bf16.gmra.mxu0 %v164
    %v3361 = vpop.f32.mrf.mxu0
    %v3362 = vadd.f32 %v3349, %v3361
    %v3363 = vpop.f32.mrf.mxu0
    %3364 = vdwg.mxu0
    %3365 = vmatpush.bf16.msra.mxu0 %v2379
    %3366 = vmatpush.bf16.msra.mxu0 %v2377
    %3367 = vmatpush.bf16.msra.mxu0 %v2375
    %3368 = vmatpush.bf16.msra.mxu0 %v2373
    %3369 = vmatpush.bf16.msra.mxu0 %v2371
    %3370 = vmatpush.bf16.msra.mxu0 %v2369
    %3371 = vmatpush.bf16.msra.mxu0 %v2367
    %3372 = vmatpush.bf16.msra.mxu0 %v2365
    %3373 = vmatmul.bf16.gmra.mxu0 %v165
    %v3374 = vpop.f32.mrf.mxu0
    %v3375 = vadd.f32 %v3362, %v3374
    %v3376 = vpop.f32.mrf.mxu0
    %3377 = vdwg.mxu0
    %3378 = vmatpush.bf16.msra.mxu0 %v2395
    %3379 = vmatpush.bf16.msra.mxu0 %v2393
    %3380 = vmatpush.bf16.msra.mxu0 %v2391
    %3381 = vmatpush.bf16.msra.mxu0 %v2389
    %3382 = vmatpush.bf16.msra.mxu0 %v2387
    %3383 = vmatpush.bf16.msra.mxu0 %v2385
    %3384 = vmatpush.bf16.msra.mxu0 %v2383
    %3385 = vmatpush.bf16.msra.mxu0 %v2381
    %3386 = vmatmul.bf16.gmra.mxu0 %v166
    %v3387 = vpop.f32.mrf.mxu0
    %v3388 = vadd.f32 %v3375, %v3387
    %v3389 = vpop.f32.mrf.mxu0
    %3390 = vdwg.mxu0
    %3391 = vmatpush.bf16.msra.mxu0 %v2411
    %3392 = vmatpush.bf16.msra.mxu0 %v2409
    %3393 = vmatpush.bf16.msra.mxu0 %v2407
    %3394 = vmatpush.bf16.msra.mxu0 %v2405
    %3395 = vmatpush.bf16.msra.mxu0 %v2403
    %3396 = vmatpush.bf16.msra.mxu0 %v2401
    %3397 = vmatpush.bf16.msra.mxu0 %v2399
    %3398 = vmatpush.bf16.msra.mxu0 %v2397
    %3399 = vmatmul.bf16.gmra.mxu0 %v167
    %v3400 = vpop.f32.mrf.mxu0
    %v3401 = vadd.f32 %v3388, %v3400
    %v3402 = vpop.f32.mrf.mxu0
    %3403 = vdwg.mxu0
    %3404 = vmatpush.bf16.msra.mxu0 %v2427
    %3405 = vmatpush.bf16.msra.mxu0 %v2425
    %3406 = vmatpush.bf16.msra.mxu0 %v2423
    %3407 = vmatpush.bf16.msra.mxu0 %v2421
    %3408 = vmatpush.bf16.msra.mxu0 %v2419
    %3409 = vmatpush.bf16.msra.mxu0 %v2417
    %3410 = vmatpush.bf16.msra.mxu0 %v2415
    %3411 = vmatpush.bf16.msra.mxu0 %v2413
    %3412 = vmatmul.bf16.gmra.mxu0 %v168
    %v3413 = vpop.f32.mrf.mxu0
    %v3414 = vadd.f32 %v3401, %v3413
    %v3415 = vpop.f32.mrf.mxu0
    %3416 = vdwg.mxu0
    %3417 = vmatpush.bf16.msra.mxu0 %v2443
    %3418 = vmatpush.bf16.msra.mxu0 %v2441
    %3419 = vmatpush.bf16.msra.mxu0 %v2439
    %3420 = vmatpush.bf16.msra.mxu0 %v2437
    %3421 = vmatpush.bf16.msra.mxu0 %v2435
    %3422 = vmatpush.bf16.msra.mxu0 %v2433
    %3423 = vmatpush.bf16.msra.mxu0 %v2431
    %3424 = vmatpush.bf16.msra.mxu0 %v2429
    %3425 = vmatmul.bf16.gmra.mxu0 %v169
    %v3426 = vpop.f32.mrf.mxu0
    %v3427 = vadd.f32 %v3414, %v3426
    %v3428 = vpop.f32.mrf.mxu0
    %3429 = vdwg.mxu0
    %3430 = vmatpush.bf16.msra.mxu0 %v2459
    %3431 = vmatpush.bf16.msra.mxu0 %v2457
    %3432 = vmatpush.bf16.msra.mxu0 %v2455
    %3433 = vmatpush.bf16.msra.mxu0 %v2453
    %3434 = vmatpush.bf16.msra.mxu0 %v2451
    %3435 = vmatpush.bf16.msra.mxu0 %v2449
    %3436 = vmatpush.bf16.msra.mxu0 %v2447
    %3437 = vmatpush.bf16.msra.mxu0 %v2445
    %3438 = vmatmul.bf16.gmra.mxu0 %v170
    %v3439 = vpop.f32.mrf.mxu0
    %v3440 = vadd.f32 %v3427, %v3439
    %v3441 = vpop.f32.mrf.mxu0
    %3442 = vdwg.mxu0
    %3443 = vmatpush.bf16.msra.mxu0 %v2475
    %3444 = vmatpush.bf16.msra.mxu0 %v2473
    %3445 = vmatpush.bf16.msra.mxu0 %v2471
    %3446 = vmatpush.bf16.msra.mxu0 %v2469
    %3447 = vmatpush.bf16.msra.mxu0 %v2467
    %3448 = vmatpush.bf16.msra.mxu0 %v2465
    %3449 = vmatpush.bf16.msra.mxu0 %v2463
    %3450 = vmatpush.bf16.msra.mxu0 %v2461
    %3451 = vmatmul.bf16.gmra.mxu0 %v171
    %v3452 = vpop.f32.mrf.mxu0
    %v3453 = vadd.f32 %v3440, %v3452
    %v3454 = vpop.f32.mrf.mxu0
    %3455 = vdwg.mxu0
    %3456 = vmatpush.bf16.msra.mxu0 %v2491
    %3457 = vmatpush.bf16.msra.mxu0 %v2489
    %3458 = vmatpush.bf16.msra.mxu0 %v2487
    %3459 = vmatpush.bf16.msra.mxu0 %v2485
    %3460 = vmatpush.bf16.msra.mxu0 %v2483
    %3461 = vmatpush.bf16.msra.mxu0 %v2481
    %3462 = vmatpush.bf16.msra.mxu0 %v2479
    %3463 = vmatpush.bf16.msra.mxu0 %v2477
    %3464 = vmatmul.bf16.gmra.mxu0 %v172
    %v3465 = vpop.f32.mrf.mxu0
    %v3466 = vadd.f32 %v3453, %v3465
    %v3467 = vpop.f32.mrf.mxu0
    %3468 = vdwg.mxu0
    %3469 = vmatpush.bf16.msra.mxu0 %v2507
    %3470 = vmatpush.bf16.msra.mxu0 %v2505
    %3471 = vmatpush.bf16.msra.mxu0 %v2503
    %3472 = vmatpush.bf16.msra.mxu0 %v2501
    %3473 = vmatpush.bf16.msra.mxu0 %v2499
    %3474 = vmatpush.bf16.msra.mxu0 %v2497
    %3475 = vmatpush.bf16.msra.mxu0 %v2495
    %3476 = vmatpush.bf16.msra.mxu0 %v2493
    %3477 = vmatmul.bf16.gmra.mxu0 %v173
    %v3478 = vpop.f32.mrf.mxu0
    %v3479 = vadd.f32 %v3466, %v3478
    %v3480 = vpop.f32.mrf.mxu0
    %3481 = vdwg.mxu0
    %3482 = vmatpush.bf16.msra.mxu0 %v2523
    %3483 = vmatpush.bf16.msra.mxu0 %v2521
    %3484 = vmatpush.bf16.msra.mxu0 %v2519
    %3485 = vmatpush.bf16.msra.mxu0 %v2517
    %3486 = vmatpush.bf16.msra.mxu0 %v2515
    %3487 = vmatpush.bf16.msra.mxu0 %v2513
    %3488 = vmatpush.bf16.msra.mxu0 %v2511
    %3489 = vmatpush.bf16.msra.mxu0 %v2509
    %3490 = vmatmul.bf16.gmra.mxu0 %v174
    %v3491 = vpop.f32.mrf.mxu0
    %v3492 = vadd.f32 %v3479, %v3491
    %v3493 = vpop.f32.mrf.mxu0
    %3494 = vdwg.mxu0
    %3495 = vmatpush.bf16.msra.mxu0 %v2539
    %3496 = vmatpush.bf16.msra.mxu0 %v2537
    %3497 = vmatpush.bf16.msra.mxu0 %v2535
    %3498 = vmatpush.bf16.msra.mxu0 %v2533
    %3499 = vmatpush.bf16.msra.mxu0 %v2531
    %3500 = vmatpush.bf16.msra.mxu0 %v2529
    %3501 = vmatpush.bf16.msra.mxu0 %v2527
    %3502 = vmatpush.bf16.msra.mxu0 %v2525
    %3503 = vmatmul.bf16.gmra.mxu0 %v175
    %v3504 = vpop.f32.mrf.mxu0
    %v3505 = vadd.f32 %v3492, %v3504
    %v3506 = vpop.f32.mrf.mxu0
    %3507 = vdwg.mxu0
    %3508 = vmatpush.bf16.msra.mxu0 %v2555
    %3509 = vmatpush.bf16.msra.mxu0 %v2553
    %3510 = vmatpush.bf16.msra.mxu0 %v2551
    %3511 = vmatpush.bf16.msra.mxu0 %v2549
    %3512 = vmatpush.bf16.msra.mxu0 %v2547
    %3513 = vmatpush.bf16.msra.mxu0 %v2545
    %3514 = vmatpush.bf16.msra.mxu0 %v2543
    %3515 = vmatpush.bf16.msra.mxu0 %v2541
    %3516 = vmatmul.bf16.gmra.mxu0 %v176
    %v3517 = vpop.f32.mrf.mxu0
    %v3518 = vadd.f32 %v3505, %v3517
    %v3519 = vpop.f32.mrf.mxu0
    %3520 = vdwg.mxu0
    %3521 = vmatpush.bf16.msra.mxu0 %v2571
    %3522 = vmatpush.bf16.msra.mxu0 %v2569
    %3523 = vmatpush.bf16.msra.mxu0 %v2567
    %3524 = vmatpush.bf16.msra.mxu0 %v2565
    %3525 = vmatpush.bf16.msra.mxu0 %v2563
    %3526 = vmatpush.bf16.msra.mxu0 %v2561
    %3527 = vmatpush.bf16.msra.mxu0 %v2559
    %3528 = vmatpush.bf16.msra.mxu0 %v2557
    %3529 = vmatmul.bf16.gmra.mxu0 %v177
    %v3530 = vpop.f32.mrf.mxu0
    %v3531 = vadd.f32 %v3518, %v3530
    %v3532 = vpop.f32.mrf.mxu0
    %3533 = vdwg.mxu0
    %3534 = vmatpush.bf16.msra.mxu0 %v2587
    %3535 = vmatpush.bf16.msra.mxu0 %v2585
    %3536 = vmatpush.bf16.msra.mxu0 %v2583
    %3537 = vmatpush.bf16.msra.mxu0 %v2581
    %3538 = vmatpush.bf16.msra.mxu0 %v2579
    %3539 = vmatpush.bf16.msra.mxu0 %v2577
    %3540 = vmatpush.bf16.msra.mxu0 %v2575
    %3541 = vmatpush.bf16.msra.mxu0 %v2573
    %3542 = vmatmul.bf16.gmra.mxu0 %v178
    %v3543 = vpop.f32.mrf.mxu0
    %v3544 = vadd.f32 %v3531, %v3543
    %v3545 = vpop.f32.mrf.mxu0
    %3546 = vdwg.mxu0
    %3547 = vmatpush.bf16.msra.mxu0 %v2603
    %3548 = vmatpush.bf16.msra.mxu0 %v2601
    %3549 = vmatpush.bf16.msra.mxu0 %v2599
    %3550 = vmatpush.bf16.msra.mxu0 %v2597
    %3551 = vmatpush.bf16.msra.mxu0 %v2595
    %3552 = vmatpush.bf16.msra.mxu0 %v2593
    %3553 = vmatpush.bf16.msra.mxu0 %v2591
    %3554 = vmatpush.bf16.msra.mxu0 %v2589
    %3555 = vmatmul.bf16.gmra.mxu0 %v179
    %v3556 = vpop.f32.mrf.mxu0
    %v3557 = vadd.f32 %v3544, %v3556
    %v3558 = vpop.f32.mrf.mxu0
    %3559 = vdwg.mxu0
    %3560 = vmatpush.bf16.msra.mxu0 %v2619
    %3561 = vmatpush.bf16.msra.mxu0 %v2617
    %3562 = vmatpush.bf16.msra.mxu0 %v2615
    %3563 = vmatpush.bf16.msra.mxu0 %v2613
    %3564 = vmatpush.bf16.msra.mxu0 %v2611
    %3565 = vmatpush.bf16.msra.mxu0 %v2609
    %3566 = vmatpush.bf16.msra.mxu0 %v2607
    %3567 = vmatpush.bf16.msra.mxu0 %v2605
    %3568 = vmatmul.bf16.gmra.mxu0 %v180
    %v3569 = vpop.f32.mrf.mxu0
    %v3570 = vadd.f32 %v3557, %v3569
    %v3571 = vpop.f32.mrf.mxu0
    %3572 = vdwg.mxu0
    %3573 = vmatpush.bf16.msra.mxu0 %v2635
    %3574 = vmatpush.bf16.msra.mxu0 %v2633
    %3575 = vmatpush.bf16.msra.mxu0 %v2631
    %3576 = vmatpush.bf16.msra.mxu0 %v2629
    %3577 = vmatpush.bf16.msra.mxu0 %v2627
    %3578 = vmatpush.bf16.msra.mxu0 %v2625
    %3579 = vmatpush.bf16.msra.mxu0 %v2623
    %3580 = vmatpush.bf16.msra.mxu0 %v2621
    %3581 = vmatmul.bf16.gmra.mxu0 %v181
    %v3582 = vpop.f32.mrf.mxu0
    %v3583 = vadd.f32 %v3570, %v3582
    %v3584 = vpop.f32.mrf.mxu0
    %3585 = vdwg.mxu0
    %3586 = vmatpush.bf16.msra.mxu0 %v2651
    %3587 = vmatpush.bf16.msra.mxu0 %v2649
    %3588 = vmatpush.bf16.msra.mxu0 %v2647
    %3589 = vmatpush.bf16.msra.mxu0 %v2645
    %3590 = vmatpush.bf16.msra.mxu0 %v2643
    %3591 = vmatpush.bf16.msra.mxu0 %v2641
    %3592 = vmatpush.bf16.msra.mxu0 %v2639
    %3593 = vmatpush.bf16.msra.mxu0 %v2637
    %3594 = vmatmul.bf16.gmra.mxu0 %v182
    %v3595 = vpop.f32.mrf.mxu0
    %v3596 = vadd.f32 %v3583, %v3595
    %v3597 = vpop.f32.mrf.mxu0
    %3598 = vdwg.mxu0
    %3599 = vmatpush.bf16.msra.mxu0 %v2667
    %3600 = vmatpush.bf16.msra.mxu0 %v2665
    %3601 = vmatpush.bf16.msra.mxu0 %v2663
    %3602 = vmatpush.bf16.msra.mxu0 %v2661
    %3603 = vmatpush.bf16.msra.mxu0 %v2659
    %3604 = vmatpush.bf16.msra.mxu0 %v2657
    %3605 = vmatpush.bf16.msra.mxu0 %v2655
    %3606 = vmatpush.bf16.msra.mxu0 %v2653
    %3607 = vmatmul.bf16.gmra.mxu0 %v183
    %v3608 = vpop.f32.mrf.mxu0
    %v3609 = vadd.f32 %v3596, %v3608
    %v3610 = vpop.f32.mrf.mxu0
    %3611 = vdwg.mxu0
    %3612 = vmatpush.bf16.msra.mxu0 %v2683
    %3613 = vmatpush.bf16.msra.mxu0 %v2681
    %3614 = vmatpush.bf16.msra.mxu0 %v2679
    %3615 = vmatpush.bf16.msra.mxu0 %v2677
    %3616 = vmatpush.bf16.msra.mxu0 %v2675
    %3617 = vmatpush.bf16.msra.mxu0 %v2673
    %3618 = vmatpush.bf16.msra.mxu0 %v2671
    %3619 = vmatpush.bf16.msra.mxu0 %v2669
    %3620 = vmatmul.bf16.gmra.mxu0 %v184
    %v3621 = vpop.f32.mrf.mxu0
    %v3622 = vadd.f32 %v3609, %v3621
    %v3623 = vpop.f32.mrf.mxu0
    %3624 = vdwg.mxu0
    %3625 = vmatpush.bf16.msra.mxu0 %v2699
    %3626 = vmatpush.bf16.msra.mxu0 %v2697
    %3627 = vmatpush.bf16.msra.mxu0 %v2695
    %3628 = vmatpush.bf16.msra.mxu0 %v2693
    %3629 = vmatpush.bf16.msra.mxu0 %v2691
    %3630 = vmatpush.bf16.msra.mxu0 %v2689
    %3631 = vmatpush.bf16.msra.mxu0 %v2687
    %3632 = vmatpush.bf16.msra.mxu0 %v2685
    %3633 = vmatmul.bf16.gmra.mxu0 %v185
    %v3634 = vpop.f32.mrf.mxu0
    %v3635 = vadd.f32 %v3622, %v3634
    %v3636 = vpop.f32.mrf.mxu0
    %3637 = vdwg.mxu0
    %3638 = vmatpush.bf16.msra.mxu0 %v2715
    %3639 = vmatpush.bf16.msra.mxu0 %v2713
    %3640 = vmatpush.bf16.msra.mxu0 %v2711
    %3641 = vmatpush.bf16.msra.mxu0 %v2709
    %3642 = vmatpush.bf16.msra.mxu0 %v2707
    %3643 = vmatpush.bf16.msra.mxu0 %v2705
    %3644 = vmatpush.bf16.msra.mxu0 %v2703
    %3645 = vmatpush.bf16.msra.mxu0 %v2701
    %3646 = vmatmul.bf16.gmra.mxu0 %v186
    %v3647 = vpop.f32.mrf.mxu0
    %v3648 = vadd.f32 %v3635, %v3647
    %v3649 = vpop.f32.mrf.mxu0
    %3650 = vdwg.mxu0
    %3651 = vmatpush.bf16.msra.mxu0 %v2731
    %3652 = vmatpush.bf16.msra.mxu0 %v2729
    %3653 = vmatpush.bf16.msra.mxu0 %v2727
    %3654 = vmatpush.bf16.msra.mxu0 %v2725
    %3655 = vmatpush.bf16.msra.mxu0 %v2723
    %3656 = vmatpush.bf16.msra.mxu0 %v2721
    %3657 = vmatpush.bf16.msra.mxu0 %v2719
    %3658 = vmatpush.bf16.msra.mxu0 %v2717
    %3659 = vmatmul.bf16.gmra.mxu0 %v187
    %v3660 = vpop.f32.mrf.mxu0
    %v3661 = vadd.f32 %v3648, %v3660
    %v3662 = vpop.f32.mrf.mxu0
    %3663 = vdwg.mxu0
    %3664 = vmatpush.bf16.msra.mxu0 %v2747
    %3665 = vmatpush.bf16.msra.mxu0 %v2745
    %3666 = vmatpush.bf16.msra.mxu0 %v2743
    %3667 = vmatpush.bf16.msra.mxu0 %v2741
    %3668 = vmatpush.bf16.msra.mxu0 %v2739
    %3669 = vmatpush.bf16.msra.mxu0 %v2737
    %3670 = vmatpush.bf16.msra.mxu0 %v2735
    %3671 = vmatpush.bf16.msra.mxu0 %v2733
    %3672 = vmatmul.bf16.gmra.mxu0 %v188
    %v3673 = vpop.f32.mrf.mxu0
    %v3674 = vadd.f32 %v3661, %v3673
    %v3675 = vpop.f32.mrf.mxu0
    %3676 = vdwg.mxu0
    %3677 = vmatpush.bf16.msra.mxu0 %v2252
    %3678 = vmatpush.bf16.msra.mxu0 %v2250
    %3679 = vmatpush.bf16.msra.mxu0 %v2248
    %3680 = vmatpush.bf16.msra.mxu0 %v2246
    %3681 = vmatpush.bf16.msra.mxu0 %v2244
    %3682 = vmatpush.bf16.msra.mxu0 %v2242
    %3683 = vmatpush.bf16.msra.mxu0 %v2240
    %3684 = vmatpush.bf16.msra.mxu0 %v2238
    %3685 = vmatmul.bf16.gmra.mxu0 %v157
    %v3686 = vpop.f32.mrf.mxu0
    %v3687 = vadd.f32 0.0, %v3686
    %v3688 = vpop.f32.mrf.mxu0
    %3689 = vdwg.mxu0
    %3690 = vmatpush.bf16.msra.mxu0 %v2268
    %3691 = vmatpush.bf16.msra.mxu0 %v2266
    %3692 = vmatpush.bf16.msra.mxu0 %v2264
    %3693 = vmatpush.bf16.msra.mxu0 %v2262
    %3694 = vmatpush.bf16.msra.mxu0 %v2260
    %3695 = vmatpush.bf16.msra.mxu0 %v2258
    %3696 = vmatpush.bf16.msra.mxu0 %v2256
    %3697 = vmatpush.bf16.msra.mxu0 %v2254
    %3698 = vmatmul.bf16.gmra.mxu0 %v158
    %v3699 = vpop.f32.mrf.mxu0
    %v3700 = vadd.f32 %v3687, %v3699
    %v3701 = vpop.f32.mrf.mxu0
    %3702 = vdwg.mxu0
    %3703 = vmatpush.bf16.msra.mxu0 %v2284
    %3704 = vmatpush.bf16.msra.mxu0 %v2282
    %3705 = vmatpush.bf16.msra.mxu0 %v2280
    %3706 = vmatpush.bf16.msra.mxu0 %v2278
    %3707 = vmatpush.bf16.msra.mxu0 %v2276
    %3708 = vmatpush.bf16.msra.mxu0 %v2274
    %3709 = vmatpush.bf16.msra.mxu0 %v2272
    %3710 = vmatpush.bf16.msra.mxu0 %v2270
    %3711 = vmatmul.bf16.gmra.mxu0 %v159
    %v3712 = vpop.f32.mrf.mxu0
    %v3713 = vadd.f32 %v3700, %v3712
    %v3714 = vpop.f32.mrf.mxu0
    %3715 = vdwg.mxu0
    %3716 = vmatpush.bf16.msra.mxu0 %v2300
    %3717 = vmatpush.bf16.msra.mxu0 %v2298
    %3718 = vmatpush.bf16.msra.mxu0 %v2296
    %3719 = vmatpush.bf16.msra.mxu0 %v2294
    %3720 = vmatpush.bf16.msra.mxu0 %v2292
    %3721 = vmatpush.bf16.msra.mxu0 %v2290
    %3722 = vmatpush.bf16.msra.mxu0 %v2288
    %3723 = vmatpush.bf16.msra.mxu0 %v2286
    %3724 = vmatmul.bf16.gmra.mxu0 %v160
    %v3725 = vpop.f32.mrf.mxu0
    %v3726 = vadd.f32 %v3713, %v3725
    %v3727 = vpop.f32.mrf.mxu0
    %3728 = vdwg.mxu0
    %3729 = vmatpush.bf16.msra.mxu0 %v2316
    %3730 = vmatpush.bf16.msra.mxu0 %v2314
    %3731 = vmatpush.bf16.msra.mxu0 %v2312
    %3732 = vmatpush.bf16.msra.mxu0 %v2310
    %3733 = vmatpush.bf16.msra.mxu0 %v2308
    %3734 = vmatpush.bf16.msra.mxu0 %v2306
    %3735 = vmatpush.bf16.msra.mxu0 %v2304
    %3736 = vmatpush.bf16.msra.mxu0 %v2302
    %3737 = vmatmul.bf16.gmra.mxu0 %v161
    %v3738 = vpop.f32.mrf.mxu0
    %v3739 = vadd.f32 %v3726, %v3738
    %v3740 = vpop.f32.mrf.mxu0
    %3741 = vdwg.mxu0
    %3742 = vmatpush.bf16.msra.mxu0 %v2332
    %3743 = vmatpush.bf16.msra.mxu0 %v2330
    %3744 = vmatpush.bf16.msra.mxu0 %v2328
    %3745 = vmatpush.bf16.msra.mxu0 %v2326
    %3746 = vmatpush.bf16.msra.mxu0 %v2324
    %3747 = vmatpush.bf16.msra.mxu0 %v2322
    %3748 = vmatpush.bf16.msra.mxu0 %v2320
    %3749 = vmatpush.bf16.msra.mxu0 %v2318
    %3750 = vmatmul.bf16.gmra.mxu0 %v162
    %v3751 = vpop.f32.mrf.mxu0
    %v3752 = vadd.f32 %v3739, %v3751
    %v3753 = vpop.f32.mrf.mxu0
    %3754 = vdwg.mxu0
    %3755 = vmatpush.bf16.msra.mxu0 %v2348
    %3756 = vmatpush.bf16.msra.mxu0 %v2346
    %3757 = vmatpush.bf16.msra.mxu0 %v2344
    %3758 = vmatpush.bf16.msra.mxu0 %v2342
    %3759 = vmatpush.bf16.msra.mxu0 %v2340
    %3760 = vmatpush.bf16.msra.mxu0 %v2338
    %3761 = vmatpush.bf16.msra.mxu0 %v2336
    %3762 = vmatpush.bf16.msra.mxu0 %v2334
    %3763 = vmatmul.bf16.gmra.mxu0 %v163
    %v3764 = vpop.f32.mrf.mxu0
    %v3765 = vadd.f32 %v3752, %v3764
    %v3766 = vpop.f32.mrf.mxu0
    %3767 = vdwg.mxu0
    %3768 = vmatpush.bf16.msra.mxu0 %v2364
    %3769 = vmatpush.bf16.msra.mxu0 %v2362
    %3770 = vmatpush.bf16.msra.mxu0 %v2360
    %3771 = vmatpush.bf16.msra.mxu0 %v2358
    %3772 = vmatpush.bf16.msra.mxu0 %v2356
    %3773 = vmatpush.bf16.msra.mxu0 %v2354
    %3774 = vmatpush.bf16.msra.mxu0 %v2352
    %3775 = vmatpush.bf16.msra.mxu0 %v2350
    %3776 = vmatmul.bf16.gmra.mxu0 %v164
    %v3777 = vpop.f32.mrf.mxu0
    %v3778 = vadd.f32 %v3765, %v3777
    %v3779 = vpop.f32.mrf.mxu0
    %3780 = vdwg.mxu0
    %3781 = vmatpush.bf16.msra.mxu0 %v2380
    %3782 = vmatpush.bf16.msra.mxu0 %v2378
    %3783 = vmatpush.bf16.msra.mxu0 %v2376
    %3784 = vmatpush.bf16.msra.mxu0 %v2374
    %3785 = vmatpush.bf16.msra.mxu0 %v2372
    %3786 = vmatpush.bf16.msra.mxu0 %v2370
    %3787 = vmatpush.bf16.msra.mxu0 %v2368
    %3788 = vmatpush.bf16.msra.mxu0 %v2366
    %3789 = vmatmul.bf16.gmra.mxu0 %v165
    %v3790 = vpop.f32.mrf.mxu0
    %v3791 = vadd.f32 %v3778, %v3790
    %v3792 = vpop.f32.mrf.mxu0
    %3793 = vdwg.mxu0
    %3794 = vmatpush.bf16.msra.mxu0 %v2396
    %3795 = vmatpush.bf16.msra.mxu0 %v2394
    %3796 = vmatpush.bf16.msra.mxu0 %v2392
    %3797 = vmatpush.bf16.msra.mxu0 %v2390
    %3798 = vmatpush.bf16.msra.mxu0 %v2388
    %3799 = vmatpush.bf16.msra.mxu0 %v2386
    %3800 = vmatpush.bf16.msra.mxu0 %v2384
    %3801 = vmatpush.bf16.msra.mxu0 %v2382
    %3802 = vmatmul.bf16.gmra.mxu0 %v166
    %v3803 = vpop.f32.mrf.mxu0
    %v3804 = vadd.f32 %v3791, %v3803
    %v3805 = vpop.f32.mrf.mxu0
    %3806 = vdwg.mxu0
    %3807 = vmatpush.bf16.msra.mxu0 %v2412
    %3808 = vmatpush.bf16.msra.mxu0 %v2410
    %3809 = vmatpush.bf16.msra.mxu0 %v2408
    %3810 = vmatpush.bf16.msra.mxu0 %v2406
    %3811 = vmatpush.bf16.msra.mxu0 %v2404
    %3812 = vmatpush.bf16.msra.mxu0 %v2402
    %3813 = vmatpush.bf16.msra.mxu0 %v2400
    %3814 = vmatpush.bf16.msra.mxu0 %v2398
    %3815 = vmatmul.bf16.gmra.mxu0 %v167
    %v3816 = vpop.f32.mrf.mxu0
    %v3817 = vadd.f32 %v3804, %v3816
    %v3818 = vpop.f32.mrf.mxu0
    %3819 = vdwg.mxu0
    %3820 = vmatpush.bf16.msra.mxu0 %v2428
    %3821 = vmatpush.bf16.msra.mxu0 %v2426
    %3822 = vmatpush.bf16.msra.mxu0 %v2424
    %3823 = vmatpush.bf16.msra.mxu0 %v2422
    %3824 = vmatpush.bf16.msra.mxu0 %v2420
    %3825 = vmatpush.bf16.msra.mxu0 %v2418
    %3826 = vmatpush.bf16.msra.mxu0 %v2416
    %3827 = vmatpush.bf16.msra.mxu0 %v2414
    %3828 = vmatmul.bf16.gmra.mxu0 %v168
    %v3829 = vpop.f32.mrf.mxu0
    %v3830 = vadd.f32 %v3817, %v3829
    %v3831 = vpop.f32.mrf.mxu0
    %3832 = vdwg.mxu0
    %3833 = vmatpush.bf16.msra.mxu0 %v2444
    %3834 = vmatpush.bf16.msra.mxu0 %v2442
    %3835 = vmatpush.bf16.msra.mxu0 %v2440
    %3836 = vmatpush.bf16.msra.mxu0 %v2438
    %3837 = vmatpush.bf16.msra.mxu0 %v2436
    %3838 = vmatpush.bf16.msra.mxu0 %v2434
    %3839 = vmatpush.bf16.msra.mxu0 %v2432
    %3840 = vmatpush.bf16.msra.mxu0 %v2430
    %3841 = vmatmul.bf16.gmra.mxu0 %v169
    %v3842 = vpop.f32.mrf.mxu0
    %v3843 = vadd.f32 %v3830, %v3842
    %v3844 = vpop.f32.mrf.mxu0
    %3845 = vdwg.mxu0
    %3846 = vmatpush.bf16.msra.mxu0 %v2460
    %3847 = vmatpush.bf16.msra.mxu0 %v2458
    %3848 = vmatpush.bf16.msra.mxu0 %v2456
    %3849 = vmatpush.bf16.msra.mxu0 %v2454
    %3850 = vmatpush.bf16.msra.mxu0 %v2452
    %3851 = vmatpush.bf16.msra.mxu0 %v2450
    %3852 = vmatpush.bf16.msra.mxu0 %v2448
    %3853 = vmatpush.bf16.msra.mxu0 %v2446
    %3854 = vmatmul.bf16.gmra.mxu0 %v170
    %v3855 = vpop.f32.mrf.mxu0
    %v3856 = vadd.f32 %v3843, %v3855
    %v3857 = vpop.f32.mrf.mxu0
    %3858 = vdwg.mxu0
    %3859 = vmatpush.bf16.msra.mxu0 %v2476
    %3860 = vmatpush.bf16.msra.mxu0 %v2474
    %3861 = vmatpush.bf16.msra.mxu0 %v2472
    %3862 = vmatpush.bf16.msra.mxu0 %v2470
    %3863 = vmatpush.bf16.msra.mxu0 %v2468
    %3864 = vmatpush.bf16.msra.mxu0 %v2466
    %3865 = vmatpush.bf16.msra.mxu0 %v2464
    %3866 = vmatpush.bf16.msra.mxu0 %v2462
    %3867 = vmatmul.bf16.gmra.mxu0 %v171
    %v3868 = vpop.f32.mrf.mxu0
    %v3869 = vadd.f32 %v3856, %v3868
    %v3870 = vpop.f32.mrf.mxu0
    %3871 = vdwg.mxu0
    %3872 = vmatpush.bf16.msra.mxu0 %v2492
    %3873 = vmatpush.bf16.msra.mxu0 %v2490
    %3874 = vmatpush.bf16.msra.mxu0 %v2488
    %3875 = vmatpush.bf16.msra.mxu0 %v2486
    %3876 = vmatpush.bf16.msra.mxu0 %v2484
    %3877 = vmatpush.bf16.msra.mxu0 %v2482
    %3878 = vmatpush.bf16.msra.mxu0 %v2480
    %3879 = vmatpush.bf16.msra.mxu0 %v2478
    %3880 = vmatmul.bf16.gmra.mxu0 %v172
    %v3881 = vpop.f32.mrf.mxu0
    %v3882 = vadd.f32 %v3869, %v3881
    %v3883 = vpop.f32.mrf.mxu0
    %3884 = vdwg.mxu0
    %3885 = vmatpush.bf16.msra.mxu0 %v2508
    %3886 = vmatpush.bf16.msra.mxu0 %v2506
    %3887 = vmatpush.bf16.msra.mxu0 %v2504
    %3888 = vmatpush.bf16.msra.mxu0 %v2502
    %3889 = vmatpush.bf16.msra.mxu0 %v2500
    %3890 = vmatpush.bf16.msra.mxu0 %v2498
    %3891 = vmatpush.bf16.msra.mxu0 %v2496
    %3892 = vmatpush.bf16.msra.mxu0 %v2494
    %3893 = vmatmul.bf16.gmra.mxu0 %v173
    %v3894 = vpop.f32.mrf.mxu0
    %v3895 = vadd.f32 %v3882, %v3894
    %v3896 = vpop.f32.mrf.mxu0
    %3897 = vdwg.mxu0
    %3898 = vmatpush.bf16.msra.mxu0 %v2524
    %3899 = vmatpush.bf16.msra.mxu0 %v2522
    %3900 = vmatpush.bf16.msra.mxu0 %v2520
    %3901 = vmatpush.bf16.msra.mxu0 %v2518
    %3902 = vmatpush.bf16.msra.mxu0 %v2516
    %3903 = vmatpush.bf16.msra.mxu0 %v2514
    %3904 = vmatpush.bf16.msra.mxu0 %v2512
    %3905 = vmatpush.bf16.msra.mxu0 %v2510
    %3906 = vmatmul.bf16.gmra.mxu0 %v174
    %v3907 = vpop.f32.mrf.mxu0
    %v3908 = vadd.f32 %v3895, %v3907
    %v3909 = vpop.f32.mrf.mxu0
    %3910 = vdwg.mxu0
    %3911 = vmatpush.bf16.msra.mxu0 %v2540
    %3912 = vmatpush.bf16.msra.mxu0 %v2538
    %3913 = vmatpush.bf16.msra.mxu0 %v2536
    %3914 = vmatpush.bf16.msra.mxu0 %v2534
    %3915 = vmatpush.bf16.msra.mxu0 %v2532
    %3916 = vmatpush.bf16.msra.mxu0 %v2530
    %3917 = vmatpush.bf16.msra.mxu0 %v2528
    %3918 = vmatpush.bf16.msra.mxu0 %v2526
    %3919 = vmatmul.bf16.gmra.mxu0 %v175
    %v3920 = vpop.f32.mrf.mxu0
    %v3921 = vadd.f32 %v3908, %v3920
    %v3922 = vpop.f32.mrf.mxu0
    %3923 = vdwg.mxu0
    %3924 = vmatpush.bf16.msra.mxu0 %v2556
    %3925 = vmatpush.bf16.msra.mxu0 %v2554
    %3926 = vmatpush.bf16.msra.mxu0 %v2552
    %3927 = vmatpush.bf16.msra.mxu0 %v2550
    %3928 = vmatpush.bf16.msra.mxu0 %v2548
    %3929 = vmatpush.bf16.msra.mxu0 %v2546
    %3930 = vmatpush.bf16.msra.mxu0 %v2544
    %3931 = vmatpush.bf16.msra.mxu0 %v2542
    %3932 = vmatmul.bf16.gmra.mxu0 %v176
    %v3933 = vpop.f32.mrf.mxu0
    %v3934 = vadd.f32 %v3921, %v3933
    %v3935 = vpop.f32.mrf.mxu0
    %3936 = vdwg.mxu0
    %3937 = vmatpush.bf16.msra.mxu0 %v2572
    %3938 = vmatpush.bf16.msra.mxu0 %v2570
    %3939 = vmatpush.bf16.msra.mxu0 %v2568
    %3940 = vmatpush.bf16.msra.mxu0 %v2566
    %3941 = vmatpush.bf16.msra.mxu0 %v2564
    %3942 = vmatpush.bf16.msra.mxu0 %v2562
    %3943 = vmatpush.bf16.msra.mxu0 %v2560
    %3944 = vmatpush.bf16.msra.mxu0 %v2558
    %3945 = vmatmul.bf16.gmra.mxu0 %v177
    %v3946 = vpop.f32.mrf.mxu0
    %v3947 = vadd.f32 %v3934, %v3946
    %v3948 = vpop.f32.mrf.mxu0
    %3949 = vdwg.mxu0
    %3950 = vmatpush.bf16.msra.mxu0 %v2588
    %3951 = vmatpush.bf16.msra.mxu0 %v2586
    %3952 = vmatpush.bf16.msra.mxu0 %v2584
    %3953 = vmatpush.bf16.msra.mxu0 %v2582
    %3954 = vmatpush.bf16.msra.mxu0 %v2580
    %3955 = vmatpush.bf16.msra.mxu0 %v2578
    %3956 = vmatpush.bf16.msra.mxu0 %v2576
    %3957 = vmatpush.bf16.msra.mxu0 %v2574
    %3958 = vmatmul.bf16.gmra.mxu0 %v178
    %v3959 = vpop.f32.mrf.mxu0
    %v3960 = vadd.f32 %v3947, %v3959
    %v3961 = vpop.f32.mrf.mxu0
    %3962 = vdwg.mxu0
    %3963 = vmatpush.bf16.msra.mxu0 %v2604
    %3964 = vmatpush.bf16.msra.mxu0 %v2602
    %3965 = vmatpush.bf16.msra.mxu0 %v2600
    %3966 = vmatpush.bf16.msra.mxu0 %v2598
    %3967 = vmatpush.bf16.msra.mxu0 %v2596
    %3968 = vmatpush.bf16.msra.mxu0 %v2594
    %3969 = vmatpush.bf16.msra.mxu0 %v2592
    %3970 = vmatpush.bf16.msra.mxu0 %v2590
    %3971 = vmatmul.bf16.gmra.mxu0 %v179
    %v3972 = vpop.f32.mrf.mxu0
    %v3973 = vadd.f32 %v3960, %v3972
    %v3974 = vpop.f32.mrf.mxu0
    %3975 = vdwg.mxu0
    %3976 = vmatpush.bf16.msra.mxu0 %v2620
    %3977 = vmatpush.bf16.msra.mxu0 %v2618
    %3978 = vmatpush.bf16.msra.mxu0 %v2616
    %3979 = vmatpush.bf16.msra.mxu0 %v2614
    %3980 = vmatpush.bf16.msra.mxu0 %v2612
    %3981 = vmatpush.bf16.msra.mxu0 %v2610
    %3982 = vmatpush.bf16.msra.mxu0 %v2608
    %3983 = vmatpush.bf16.msra.mxu0 %v2606
    %3984 = vmatmul.bf16.gmra.mxu0 %v180
    %v3985 = vpop.f32.mrf.mxu0
    %v3986 = vadd.f32 %v3973, %v3985
    %v3987 = vpop.f32.mrf.mxu0
    %3988 = vdwg.mxu0
    %3989 = vmatpush.bf16.msra.mxu0 %v2636
    %3990 = vmatpush.bf16.msra.mxu0 %v2634
    %3991 = vmatpush.bf16.msra.mxu0 %v2632
    %3992 = vmatpush.bf16.msra.mxu0 %v2630
    %3993 = vmatpush.bf16.msra.mxu0 %v2628
    %3994 = vmatpush.bf16.msra.mxu0 %v2626
    %3995 = vmatpush.bf16.msra.mxu0 %v2624
    %3996 = vmatpush.bf16.msra.mxu0 %v2622
    %3997 = vmatmul.bf16.gmra.mxu0 %v181
    %v3998 = vpop.f32.mrf.mxu0
    %v3999 = vadd.f32 %v3986, %v3998
    %v4000 = vpop.f32.mrf.mxu0
    %4001 = vdwg.mxu0
    %4002 = vmatpush.bf16.msra.mxu0 %v2652
    %4003 = vmatpush.bf16.msra.mxu0 %v2650
    %4004 = vmatpush.bf16.msra.mxu0 %v2648
    %4005 = vmatpush.bf16.msra.mxu0 %v2646
    %4006 = vmatpush.bf16.msra.mxu0 %v2644
    %4007 = vmatpush.bf16.msra.mxu0 %v2642
    %4008 = vmatpush.bf16.msra.mxu0 %v2640
    %4009 = vmatpush.bf16.msra.mxu0 %v2638
    %4010 = vmatmul.bf16.gmra.mxu0 %v182
    %v4011 = vpop.f32.mrf.mxu0
    %v4012 = vadd.f32 %v3999, %v4011
    %v4013 = vpop.f32.mrf.mxu0
    %4014 = vdwg.mxu0
    %4015 = vmatpush.bf16.msra.mxu0 %v2668
    %4016 = vmatpush.bf16.msra.mxu0 %v2666
    %4017 = vmatpush.bf16.msra.mxu0 %v2664
    %4018 = vmatpush.bf16.msra.mxu0 %v2662
    %4019 = vmatpush.bf16.msra.mxu0 %v2660
    %4020 = vmatpush.bf16.msra.mxu0 %v2658
    %4021 = vmatpush.bf16.msra.mxu0 %v2656
    %4022 = vmatpush.bf16.msra.mxu0 %v2654
    %4023 = vmatmul.bf16.gmra.mxu0 %v183
    %v4024 = vpop.f32.mrf.mxu0
    %v4025 = vadd.f32 %v4012, %v4024
    %v4026 = vpop.f32.mrf.mxu0
    %4027 = vdwg.mxu0
    %4028 = vmatpush.bf16.msra.mxu0 %v2684
    %4029 = vmatpush.bf16.msra.mxu0 %v2682
    %4030 = vmatpush.bf16.msra.mxu0 %v2680
    %4031 = vmatpush.bf16.msra.mxu0 %v2678
    %4032 = vmatpush.bf16.msra.mxu0 %v2676
    %4033 = vmatpush.bf16.msra.mxu0 %v2674
    %4034 = vmatpush.bf16.msra.mxu0 %v2672
    %4035 = vmatpush.bf16.msra.mxu0 %v2670
    %4036 = vmatmul.bf16.gmra.mxu0 %v184
    %v4037 = vpop.f32.mrf.mxu0
    %v4038 = vadd.f32 %v4025, %v4037
    %v4039 = vpop.f32.mrf.mxu0
    %4040 = vdwg.mxu0
    %4041 = vmatpush.bf16.msra.mxu0 %v2700
    %4042 = vmatpush.bf16.msra.mxu0 %v2698
    %4043 = vmatpush.bf16.msra.mxu0 %v2696
    %4044 = vmatpush.bf16.msra.mxu0 %v2694
    %4045 = vmatpush.bf16.msra.mxu0 %v2692
    %4046 = vmatpush.bf16.msra.mxu0 %v2690
    %4047 = vmatpush.bf16.msra.mxu0 %v2688
    %4048 = vmatpush.bf16.msra.mxu0 %v2686
    %4049 = vmatmul.bf16.gmra.mxu0 %v185
    %v4050 = vpop.f32.mrf.mxu0
    %v4051 = vadd.f32 %v4038, %v4050
    %v4052 = vpop.f32.mrf.mxu0
    %4053 = vdwg.mxu0
    %4054 = vmatpush.bf16.msra.mxu0 %v2716
    %4055 = vmatpush.bf16.msra.mxu0 %v2714
    %4056 = vmatpush.bf16.msra.mxu0 %v2712
    %4057 = vmatpush.bf16.msra.mxu0 %v2710
    %4058 = vmatpush.bf16.msra.mxu0 %v2708
    %4059 = vmatpush.bf16.msra.mxu0 %v2706
    %4060 = vmatpush.bf16.msra.mxu0 %v2704
    %4061 = vmatpush.bf16.msra.mxu0 %v2702
    %4062 = vmatmul.bf16.gmra.mxu0 %v186
    %v4063 = vpop.f32.mrf.mxu0
    %v4064 = vadd.f32 %v4051, %v4063
    %v4065 = vpop.f32.mrf.mxu0
    %4066 = vdwg.mxu0
    %4067 = vmatpush.bf16.msra.mxu0 %v2732
    %4068 = vmatpush.bf16.msra.mxu0 %v2730
    %4069 = vmatpush.bf16.msra.mxu0 %v2728
    %4070 = vmatpush.bf16.msra.mxu0 %v2726
    %4071 = vmatpush.bf16.msra.mxu0 %v2724
    %4072 = vmatpush.bf16.msra.mxu0 %v2722
    %4073 = vmatpush.bf16.msra.mxu0 %v2720
    %4074 = vmatpush.bf16.msra.mxu0 %v2718
    %4075 = vmatmul.bf16.gmra.mxu0 %v187
    %v4076 = vpop.f32.mrf.mxu0
    %v4077 = vadd.f32 %v4064, %v4076
    %v4078 = vpop.f32.mrf.mxu0
    %4079 = vdwg.mxu0
    %4080 = vmatpush.bf16.msra.mxu0 %v2748
    %4081 = vmatpush.bf16.msra.mxu0 %v2746
    %4082 = vmatpush.bf16.msra.mxu0 %v2744
    %4083 = vmatpush.bf16.msra.mxu0 %v2742
    %4084 = vmatpush.bf16.msra.mxu0 %v2740
    %4085 = vmatpush.bf16.msra.mxu0 %v2738
    %4086 = vmatpush.bf16.msra.mxu0 %v2736
    %4087 = vmatpush.bf16.msra.mxu0 %v2734
    %4088 = vmatmul.bf16.gmra.mxu0 %v188
    %v4089 = vpop.f32.mrf.mxu0
    %v4090 = vadd.f32 %v4077, %v4089
    %v4091 = vpop.f32.mrf.mxu0
    %4092 = vdwg.mxu0
    %v4095 = vrot.slane %v4090, 6
    %vm4096 = vcmask 1041408
    %v4097 = vsel %vm4096, %v3674, %v4095
    %v4099 = vadd.f32 %v67, %v4097
    %4100 = vst [vmem:[%s4] sm:$0xf] %v4099
    // Predicated region
    $region34: #{_lambda_.1} parent=1 // pred_check
      %p4101 = pneg %p62
    $region35: #{_lambda_.1} parent=1 // pred_check_branch
      %4103 = sbr.rel (%p4101) target = $region37
    $region36: #{_lambda_.1} parent=1 // pred_region
      %v4104 = vld [vmem:[%s4] sm:$0xf]
      %4106 = vst [vmem:[#allocation1] ss:$4 sm:$0xff] %v4104
      %v4107 = vld.sshfl [vmem:[#allocation1] sm:$0xff pattern:$0x73625140]
      %v4108 = vld.sshfl [vmem:[#allocation1 + $0x8] sm:$0xff pattern:$0x73625140]
      %v4111 = vsel %vm4096, %v4107, 0.0
      %v4112 = vrot.slane %v4111, 4
      %v4113 = vadd.f32 %v4111, %v4112
      %v4114 = vrot.slane %v4113, 2
      %v4115 = vadd.f32 %v4113, %v4114
      %v4116 = vrot.slane %v4115, 1
      %v4117 = vadd.f32 %v4115, %v4116
      %v4118 = vsel %vm4096, %v4108, 0.0
      %v4119 = vrot.slane %v4118, 4
      %v4120 = vadd.f32 %v4118, %v4119
      %v4121 = vrot.slane %v4120, 2
      %v4122 = vadd.f32 %v4120, %v4121
      %v4123 = vrot.slane %v4122, 1
      %v4124 = vadd.f32 %v4122, %v4123
      %v4125 = vrcp.pop 2.0
      %v4126 = vmul.f32 2.0, %v4125
      %v4127 = vsub.f32 1.0, %v4126
      %v4128 = vmul.f32 %v4125, %v4127
      %v4129 = vadd.f32 %v4125, %v4128
      %vm4130 = vweird.f32 %v4125
      %v4131 = vsel %vm4130, %v4125, %v4129
      %v4132 = vmul.f32 %v4117, %v4131
      %v4133 = vmul.f32 %v4124, %v4131
      %v4136 = vrot.slane %v4133, 6
      %v4137 = vsel %vm4096, %v4132, %v4136
      %v4139 = vsub.f32 %v4104, %v4137
      %v4140 = vmul.f32 %v4139, %v4139
      %4142 = vst [vmem:[#allocation1] ss:$4 sm:$0xff] %v4140
      %v4143 = vld.sshfl [vmem:[#allocation1] sm:$0xff pattern:$0x73625140]
      %v4144 = vld.sshfl [vmem:[#allocation1 + $0x8] sm:$0xff pattern:$0x73625140]
      %v4147 = vsel %vm4096, %v4143, 0.0
      %v4148 = vrot.slane %v4147, 4
      %v4149 = vadd.f32 %v4147, %v4148
      %v4150 = vrot.slane %v4149, 2
      %v4151 = vadd.f32 %v4149, %v4150
      %v4152 = vrot.slane %v4151, 1
      %v4153 = vadd.f32 %v4151, %v4152
      %v4154 = vsel %vm4096, %v4144, 0.0
      %v4155 = vrot.slane %v4154, 4
      %v4156 = vadd.f32 %v4154, %v4155
      %v4157 = vrot.slane %v4156, 2
      %v4158 = vadd.f32 %v4156, %v4157
      %v4159 = vrot.slane %v4158, 1
      %v4160 = vadd.f32 %v4158, %v4159
      %v4161 = vmul.f32 %v4153, %v4131
      %v4162 = vmul.f32 %v4160, %v4131
      %v4163 = vld [vmem:[#allocation4] sm:$0x77]
      %v4164 = vadd.f32 %v4161, 1e-05
      %v4165 = vadd.f32 %v4162, 1e-05
      %v4166 = vrsqrt.pop %v4164
      %v4167 = vmul.f32 %v4166, %v4164
      %v4168 = vmul.f32 %v4167, %v4166
      %v4169 = vmul.f32 0.5, %v4168
      %v4170 = vsub.f32 1.5, %v4169
      %v4171 = vmul.f32 %v4166, %v4170
      %vm4172 = vweird.f32 %v4164
      %vm4173 = vweird.f32 %v4166
      %vm4174 = vmor %vm4172, %vm4173
      %v4175 = vsel %vm4174, %v4166, %v4171
      %v4176 = vrsqrt.pop %v4165
      %v4177 = vmul.f32 %v4176, %v4165
      %v4178 = vmul.f32 %v4177, %v4176
      %v4179 = vmul.f32 0.5, %v4178
      %v4180 = vsub.f32 1.5, %v4179
      %v4181 = vmul.f32 %v4176, %v4180
      %vm4182 = vweird.f32 %v4165
      %vm4183 = vweird.f32 %v4176
      %vm4184 = vmor %vm4182, %vm4183
      %v4185 = vsel %vm4184, %v4176, %v4181
      %v4188 = vrot.slane %v4185, 6
      %v4189 = vsel %vm4096, %v4175, %v4188
      %v4191 = vmul.f32 %v4139, %v4189
      %v4193 = vperm.slane %v4163, 0
      %v4194 = vperm.slane %v4163, 4
      %v4197 = vperm.slane %v4193, 0
      %v4198 = vperm.slane %v4194, 0
      %v4201 = vrot.slane %v4198, 6
      %v4202 = vsel %vm4096, %v4197, %v4201
      %v4204 = vmul.f32 %v4191, %v4202
      %v4205 = vperm.slane %v4163, 1
      %v4206 = vperm.slane %v4163, 5
      %v4209 = vperm.slane %v4205, 1
      %v4210 = vperm.slane %v4206, 1
      %v4213 = vrot.slane %v4210, 6
      %v4214 = vsel %vm4096, %v4209, %v4213
      %v4216 = vadd.f32 %v4204, %v4214
      %vm4217 = vcmp.ge.f32.partialorder %v4216, 0.0
      %v4218 = vmul.f32 %v4216, 0.1
      %v4219 = vsel %vm4217, %v4216, %v4218
      %4221 = vst [vmem:[#allocation1] ss:$4 sm:$0xff] %v4219
      %v4222 = vld.sshfl [vmem:[#allocation1] sm:$0xff pattern:$0x73625140]
      %v4223 = vld.sshfl [vmem:[#allocation1 + $0x8] sm:$0xff pattern:$0x73625140]
      %v4226 = vpack.c.bf16 %v4222, %v4222
      %v4227 = vpack.c.bf16 %v4223, %v4223
      %v4228 = vld [vmem:[#allocation6] sm:$0xff]
      %v4229 = vld [vmem:[#allocation6 + $0x8] sm:$0xff]
      %v4230 = vld [vmem:[#allocation6 + $0x10] sm:$0xff]
      %v4231 = vld [vmem:[#allocation6 + $0x18] sm:$0xff]
      %v4232 = vld [vmem:[#allocation6 + $0x20] sm:$0xff]
      %v4233 = vld [vmem:[#allocation6 + $0x28] sm:$0xff]
      %v4234 = vld [vmem:[#allocation6 + $0x30] sm:$0xff]
      %v4235 = vld [vmem:[#allocation6 + $0x38] sm:$0xff]
      %v4236 = vld [vmem:[#allocation6 + $0x40] sm:$0xff]
      %v4237 = vld [vmem:[#allocation6 + $0x48] sm:$0xff]
      %v4238 = vld [vmem:[#allocation6 + $0x50] sm:$0xff]
      %v4239 = vld [vmem:[#allocation6 + $0x58] sm:$0xff]
      %v4240 = vld [vmem:[#allocation6 + $0x60] sm:$0xff]
      %v4241 = vld [vmem:[#allocation6 + $0x68] sm:$0xff]
      %v4242 = vld [vmem:[#allocation6 + $0x70] sm:$0xff]
      %v4243 = vld [vmem:[#allocation6 + $0x78] sm:$0xff]
      %v4244 = vld [vmem:[#allocation6 + $0x80] sm:$0xff]
      %v4245 = vld [vmem:[#allocation6 + $0x88] sm:$0xff]
      %v4246 = vld [vmem:[#allocation6 + $0x90] sm:$0xff]
      %v4247 = vld [vmem:[#allocation6 + $0x98] sm:$0xff]
      %v4248 = vld [vmem:[#allocation6 + $0xa0] sm:$0xff]
      %v4249 = vld [vmem:[#allocation6 + $0xa8] sm:$0xff]
      %v4250 = vld [vmem:[#allocation6 + $0xb0] sm:$0xff]
      %v4251 = vld [vmem:[#allocation6 + $0xb8] sm:$0xff]
      %v4252 = vld [vmem:[#allocation6 + $0xc0] sm:$0xff]
      %v4253 = vld [vmem:[#allocation6 + $0xc8] sm:$0xff]
      %v4254 = vld [vmem:[#allocation6 + $0xd0] sm:$0xff]
      %v4255 = vld [vmem:[#allocation6 + $0xd8] sm:$0xff]
      %v4256 = vld [vmem:[#allocation6 + $0xe0] sm:$0xff]
      %v4257 = vld [vmem:[#allocation6 + $0xe8] sm:$0xff]
      %v4258 = vld [vmem:[#allocation6 + $0xf0] sm:$0xff]
      %v4259 = vld [vmem:[#allocation6 + $0xf8] sm:$0xff]
      %v4260 = vperm.slane %v4163, 2
      %v4261 = vperm.slane %v4163, 6
      %v4264 = vperm.slane %v4260, 2
      %v4265 = vperm.slane %v4261, 2
      %v4298 = vunpack.c.l.b16 %v4228
      %v4299 = vunpack.c.h.b16 %v4228
      %v4300 = vunpack.c.l.b16 %v4229
      %v4301 = vunpack.c.h.b16 %v4229
      %v4302 = vunpack.c.l.b16 %v4230
      %v4303 = vunpack.c.h.b16 %v4230
      %v4304 = vunpack.c.l.b16 %v4231
      %v4305 = vunpack.c.h.b16 %v4231
      %v4306 = vunpack.c.l.b16 %v4232
      %v4307 = vunpack.c.h.b16 %v4232
      %v4308 = vunpack.c.l.b16 %v4233
      %v4309 = vunpack.c.h.b16 %v4233
      %v4310 = vunpack.c.l.b16 %v4234
      %v4311 = vunpack.c.h.b16 %v4234
      %v4312 = vunpack.c.l.b16 %v4235
      %v4313 = vunpack.c.h.b16 %v4235
      %v4314 = vunpack.c.l.b16 %v4236
      %v4315 = vunpack.c.h.b16 %v4236
      %v4316 = vunpack.c.l.b16 %v4237
      %v4317 = vunpack.c.h.b16 %v4237
      %v4318 = vunpack.c.l.b16 %v4238
      %v4319 = vunpack.c.h.b16 %v4238
      %v4320 = vunpack.c.l.b16 %v4239
      %v4321 = vunpack.c.h.b16 %v4239
      %v4322 = vunpack.c.l.b16 %v4240
      %v4323 = vunpack.c.h.b16 %v4240
      %v4324 = vunpack.c.l.b16 %v4241
      %v4325 = vunpack.c.h.b16 %v4241
      %v4326 = vunpack.c.l.b16 %v4242
      %v4327 = vunpack.c.h.b16 %v4242
      %v4328 = vunpack.c.l.b16 %v4243
      %v4329 = vunpack.c.h.b16 %v4243
      %v4330 = vunpack.c.l.b16 %v4244
      %v4331 = vunpack.c.h.b16 %v4244
      %v4332 = vunpack.c.l.b16 %v4245
      %v4333 = vunpack.c.h.b16 %v4245
      %v4334 = vunpack.c.l.b16 %v4246
      %v4335 = vunpack.c.h.b16 %v4246
      %v4336 = vunpack.c.l.b16 %v4247
      %v4337 = vunpack.c.h.b16 %v4247
      %v4338 = vunpack.c.l.b16 %v4248
      %v4339 = vunpack.c.h.b16 %v4248
      %v4340 = vunpack.c.l.b16 %v4249
      %v4341 = vunpack.c.h.b16 %v4249
      %v4342 = vunpack.c.l.b16 %v4250
      %v4343 = vunpack.c.h.b16 %v4250
      %v4344 = vunpack.c.l.b16 %v4251
      %v4345 = vunpack.c.h.b16 %v4251
      %v4346 = vunpack.c.l.b16 %v4252
      %v4347 = vunpack.c.h.b16 %v4252
      %v4348 = vunpack.c.l.b16 %v4253
      %v4349 = vunpack.c.h.b16 %v4253
      %v4350 = vunpack.c.l.b16 %v4254
      %v4351 = vunpack.c.h.b16 %v4254
      %v4352 = vunpack.c.l.b16 %v4255
      %v4353 = vunpack.c.h.b16 %v4255
      %v4354 = vunpack.c.l.b16 %v4256
      %v4355 = vunpack.c.h.b16 %v4256
      %v4356 = vunpack.c.l.b16 %v4257
      %v4357 = vunpack.c.h.b16 %v4257
      %v4358 = vunpack.c.l.b16 %v4258
      %v4359 = vunpack.c.h.b16 %v4258
      %v4360 = vunpack.c.l.b16 %v4259
      %v4361 = vunpack.c.h.b16 %v4259
      %v4362 = vpack.c.b16 %v4300, %v4298
      %v4363 = vpack.c.b16 %v4301, %v4299
      %v4364 = vpack.c.b16 %v4304, %v4302
      %v4365 = vpack.c.b16 %v4305, %v4303
      %v4366 = vpack.c.b16 %v4308, %v4306
      %v4367 = vpack.c.b16 %v4309, %v4307
      %v4368 = vpack.c.b16 %v4312, %v4310
      %v4369 = vpack.c.b16 %v4313, %v4311
      %v4370 = vpack.c.b16 %v4316, %v4314
      %v4371 = vpack.c.b16 %v4317, %v4315
      %v4372 = vpack.c.b16 %v4320, %v4318
      %v4373 = vpack.c.b16 %v4321, %v4319
      %v4374 = vpack.c.b16 %v4324, %v4322
      %v4375 = vpack.c.b16 %v4325, %v4323
      %v4376 = vpack.c.b16 %v4328, %v4326
      %v4377 = vpack.c.b16 %v4329, %v4327
      %v4378 = vpack.c.b16 %v4332, %v4330
      %v4379 = vpack.c.b16 %v4333, %v4331
      %v4380 = vpack.c.b16 %v4336, %v4334
      %v4381 = vpack.c.b16 %v4337, %v4335
      %v4382 = vpack.c.b16 %v4340, %v4338
      %v4383 = vpack.c.b16 %v4341, %v4339
      %v4384 = vpack.c.b16 %v4344, %v4342
      %v4385 = vpack.c.b16 %v4345, %v4343
      %v4386 = vpack.c.b16 %v4348, %v4346
      %v4387 = vpack.c.b16 %v4349, %v4347
      %v4388 = vpack.c.b16 %v4352, %v4350
      %v4389 = vpack.c.b16 %v4353, %v4351
      %v4390 = vpack.c.b16 %v4356, %v4354
      %v4391 = vpack.c.b16 %v4357, %v4355
      %v4392 = vpack.c.b16 %v4360, %v4358
      %v4393 = vpack.c.b16 %v4361, %v4359
      %4426 = vmatpush.bf16.msra.mxu0 %v4376
      %4427 = vmatpush.bf16.msra.mxu0 %v4374
      %4428 = vmatpush.bf16.msra.mxu0 %v4372
      %4429 = vmatpush.bf16.msra.mxu0 %v4370
      %4430 = vmatpush.bf16.msra.mxu0 %v4368
      %4431 = vmatpush.bf16.msra.mxu0 %v4366
      %4432 = vmatpush.bf16.msra.mxu0 %v4364
      %4433 = vmatpush.bf16.msra.mxu0 %v4362
      %4434 = vmatmul.bf16.gmra.mxu0 %v4226
      %v4435 = vpop.f32.mrf.mxu0
      %v4436 = vadd.f32 %v4264, %v4435
      %v4437 = vpop.f32.mrf.mxu0
      %4438 = vdwg.mxu0
      %4439 = vmatpush.bf16.msra.mxu0 %v4392
      %4440 = vmatpush.bf16.msra.mxu0 %v4390
      %4441 = vmatpush.bf16.msra.mxu0 %v4388
      %4442 = vmatpush.bf16.msra.mxu0 %v4386
      %4443 = vmatpush.bf16.msra.mxu0 %v4384
      %4444 = vmatpush.bf16.msra.mxu0 %v4382
      %4445 = vmatpush.bf16.msra.mxu0 %v4380
      %4446 = vmatpush.bf16.msra.mxu0 %v4378
      %4447 = vmatmul.bf16.gmra.mxu0 %v4227
      %v4448 = vpop.f32.mrf.mxu0
      %v4449 = vadd.f32 %v4436, %v4448
      %v4450 = vpop.f32.mrf.mxu0
      %4451 = vdwg.mxu0
      %4452 = vmatpush.bf16.msra.mxu0 %v4377
      %4453 = vmatpush.bf16.msra.mxu0 %v4375
      %4454 = vmatpush.bf16.msra.mxu0 %v4373
      %4455 = vmatpush.bf16.msra.mxu0 %v4371
      %4456 = vmatpush.bf16.msra.mxu0 %v4369
      %4457 = vmatpush.bf16.msra.mxu0 %v4367
      %4458 = vmatpush.bf16.msra.mxu0 %v4365
      %4459 = vmatpush.bf16.msra.mxu0 %v4363
      %4460 = vmatmul.bf16.gmra.mxu0 %v4226
      %v4461 = vpop.f32.mrf.mxu0
      %v4462 = vadd.f32 %v4265, %v4461
      %v4463 = vpop.f32.mrf.mxu0
      %4464 = vdwg.mxu0
      %4465 = vmatpush.bf16.msra.mxu0 %v4393
      %4466 = vmatpush.bf16.msra.mxu0 %v4391
      %4467 = vmatpush.bf16.msra.mxu0 %v4389
      %4468 = vmatpush.bf16.msra.mxu0 %v4387
      %4469 = vmatpush.bf16.msra.mxu0 %v4385
      %4470 = vmatpush.bf16.msra.mxu0 %v4383
      %4471 = vmatpush.bf16.msra.mxu0 %v4381
      %4472 = vmatpush.bf16.msra.mxu0 %v4379
      %4473 = vmatmul.bf16.gmra.mxu0 %v4227
      %v4474 = vpop.f32.mrf.mxu0
      %v4475 = vadd.f32 %v4462, %v4474
      %v4476 = vpop.f32.mrf.mxu0
      %4477 = vdwg.mxu0
      %v4478 = vlaneseq
      %v4479 = vand.u32 %v4478, 127
      %v4480 = vadd.s32 %v4479, 128
      %vm4481 = vcmp.lt.s32.totalorder %v4479, 128
      %vm4482 = vcmp.lt.s32.totalorder %v4480, 128
      %v4483 = vmul.f32 %v4449, 1.442695
      %v4484 = vpow.pop %v4483
      %v4485 = vmul.f32 %v4475, 1.442695
      %v4486 = vpow.pop %v4485
      %v4487 = vsel %vm4481, %v4449, %v4484
      %v4488 = vsel %vm4482, %v4475, %v4486
      %v4491 = vrot.slane %v4488, 6
      %v4492 = vsel %vm4096, %v4487, %v4491
      %4494 = vst [vmem:[%s4] sm:$0xf] %v4492
    $region37: #{_lambda_.1} parent=1 // pred_fallthru
      _
    // Predicated region
    $region38: #{_lambda_.1} parent=1 // pred_check
      _
    $region39: #{_lambda_.1} parent=1 // pred_check_branch
      %4496 = sbr.rel (0) target = $region41
    $region40: #{_lambda_.1} parent=1 // pred_region
      _
    $region41: #{_lambda_.1} parent=1 // pred_fallthru
      _
    // Predicated region
    $region42: #{_lambda_.1} parent=1 // pred_check
      _
    $region43: #{_lambda_.1} parent=1 // pred_check_branch
      %4498 = sbr.rel (0) target = $region45
    $region44: #{_lambda_.1} parent=1 // pred_region
      _
    $region45: #{_lambda_.1} parent=1 // pred_fallthru
      _
    %4499 = vsyncpa [#allocation3], 1
    %4500 = vsyncpa [#allocation5], 1

</llo_original>
